<compile_context>
chip_gen: v7x
topology: tpu7x:2x2x1
jax: 0.10.0
libtpu: 0.0.40
codegen_flags: <defaults>
</compile_context>

<pallas_src>
import jax
import jax.numpy as jnp
from jax.experimental import pallas as pl
from jax.experimental.pallas import tpu as pltpu

LANE = 128
ROW_GRANULE = 16          # bf16 sublane tile => row tiles are multiples of 16
TM_CONV = 512             # max pooled-output rows per conv grid step
TM_FC = 512               # max batch rows per fc grid step
K1PAD = 128               # conv1 im2col K: 3*5*5 = 75  -> 128
K2PAD = 256               # conv2 im2col K: 6*5*5 = 150 -> 256


def _round_up(x, m):
    return ((x + m - 1) // m) * m


def _pad_to(a, axis, target):
    pad = target - a.shape[axis]
    if pad <= 0:
        return a
    widths = [(0, 0)] * a.ndim
    widths[axis] = (0, pad)
    return jnp.pad(a, widths)


def _choose_tile(m, tm_max, granule=ROW_GRANULE):
    """Pick (row_tile, padded_rows).  Prefers a tile that divides the rounded
    row count (so no pad copy of the large patch matrix) and that yields >=2
    grid steps so both v7x TensorCores get work; tiles are multiples of the
    bf16 sublane granule (16)."""
    mg = _round_up(m, granule)
    if mg <= granule:
        return granule, granule
    hi = min(tm_max, _round_up(-(-mg // 2), granule))   # cap => >=2 grid steps
    lo = max(granule, hi - 256)                         # don't shrink tiles too far
    for t in range(hi, lo - 1, -granule):
        if mg % t == 0:
            return t, mg
    return hi, _round_up(mg, hi)


# ----------------------------- Pallas kernels -----------------------------

def _conv_relu_pool_kernel(x_ref, w_ref, b_ref, o_ref):
    # x_ref: (4, TM, Kpad) bf16 -- axis 0 = the four 2x2 pooling-window positions.
    # w_ref: (Kpad, Npad) bf16 shared across windows; b_ref: (1, Npad) f32.
    # o_ref: (TM, Npad) bf16 pooled output.
    w = w_ref[...]
    a0 = jnp.dot(x_ref[0], w, preferred_element_type=jnp.float32)
    a1 = jnp.dot(x_ref[1], w, preferred_element_type=jnp.float32)
    a2 = jnp.dot(x_ref[2], w, preferred_element_type=jnp.float32)
    a3 = jnp.dot(x_ref[3], w, preferred_element_type=jnp.float32)
    pooled = jnp.maximum(jnp.maximum(a0, a1), jnp.maximum(a2, a3))
    # Single bias + ReLU AFTER the max (bias shared across windows, ReLU monotone).
    o_ref[...] = jnp.maximum(pooled + b_ref[...], 0.0).astype(o_ref.dtype)


def _fc_stack_kernel(x_ref, w1_ref, b1_ref, w2_ref, b2_ref, w3_ref, b3_ref, o_ref):
    # bf16 operands, f32 accumulation, f32 epilogues (v5e-safe).
    h = jnp.dot(x_ref[...], w1_ref[...], preferred_element_type=jnp.float32)
    h = jnp.maximum(h + b1_ref[...], 0.0)
    h = jnp.dot(h.astype(jnp.bfloat16), w2_ref[...], preferred_element_type=jnp.float32)
    h = jnp.maximum(h + b2_ref[...], 0.0)
    h = jnp.dot(h.astype(jnp.bfloat16), w3_ref[...], preferred_element_type=jnp.float32)
    o_ref[...] = (h + b3_ref[...]).astype(o_ref.dtype)


# ------------------------------ call wrappers ------------------------------

def conv_relu_pool(patches, w, b):
    """patches: (4, M, Kpad) bf16 pooled-window im2col rows; w: (Kpad, Npad) bf16;
    b: (1, Npad) f32.  Returns pooled+ReLU'd conv output (M, Npad) bf16."""
    _, m, kp = patches.shape
    npad = w.shape[1]
    tm, mp = _choose_tile(m, TM_CONV)
    patches = _pad_to(patches, 1, mp)        # no-op when tile divides the row count

    cost = pl.CostEstimate(
        flops=2 * 4 * mp * kp * npad,
        transcendentals=0,
        bytes_accessed=int(4 * mp * kp * 2 + kp * npad * 2 + npad * 4 + mp * npad * 2),
    )
    out = pl.pallas_call(
        _conv_relu_pool_kernel,
        out_shape=jax.ShapeDtypeStruct((mp, npad), jnp.bfloat16),
        grid=(mp // tm,),
        in_specs=[
            pl.BlockSpec((4, tm, kp), lambda i: (0, i, 0)),
            pl.BlockSpec((kp, npad), lambda i: (0, 0)),
            pl.BlockSpec((1, npad), lambda i: (0, 0)),
        ],
        out_specs=pl.BlockSpec((tm, npad), lambda i: (i, 0)),
        compiler_params=pltpu.CompilerParams(
            dimension_semantics=("parallel",),
            vmem_limit_bytes=32 * 1024 * 1024,
        ),
        cost_estimate=cost,
    )(patches, w, b)
    return out[:m]


def fc_stack(x, w1, b1, w2, b2, w3, b3):
    """Fused fc1->relu->fc2->relu->fc3.  x: (M, 3200) bf16 packed conv2 output;
    weights pre-padded bf16, biases f32."""
    m, kin = x.shape
    n1, n2, nout = w1.shape[1], w2.shape[1], w3.shape[1]
    tm, mp = _choose_tile(m, TM_FC)
    x = _pad_to(x, 0, mp)

    cost = pl.CostEstimate(
        flops=2 * mp * (kin * n1 + n1 * n2 + n2 * nout),
        transcendentals=0,
        bytes_accessed=int(mp * kin * 2 + (kin * n1 + n1 * n2 + n2 * nout) * 2
                           + (n1 + n2 + nout) * 4 + mp * nout * 4),
    )
    out = pl.pallas_call(
        _fc_stack_kernel,
        out_shape=jax.ShapeDtypeStruct((mp, nout), jnp.float32),
        grid=(mp // tm,),
        in_specs=[
            pl.BlockSpec((tm, kin), lambda i: (i, 0)),
            pl.BlockSpec(w1.shape, lambda i: (0, 0)),
            pl.BlockSpec(b1.shape, lambda i: (0, 0)),
            pl.BlockSpec(w2.shape, lambda i: (0, 0)),
            pl.BlockSpec(b2.shape, lambda i: (0, 0)),
            pl.BlockSpec(w3.shape, lambda i: (0, 0)),
            pl.BlockSpec(b3.shape, lambda i: (0, 0)),
        ],
        out_specs=pl.BlockSpec((tm, nout), lambda i: (i, 0)),
        compiler_params=pltpu.CompilerParams(
            dimension_semantics=("parallel",),
            vmem_limit_bytes=32 * 1024 * 1024,
        ),
        cost_estimate=cost,
    )(x, w1, b1, w2, b2, w3, b3)
    return out[:m]


# ------------------------------- JAX glue ---------------------------------

def _im2col_pooled_nhwc(x, cin, kh, kw, kpad):
    """NHWC valid-conv im2col with rows grouped by 2x2 pooling window.
    Only the first `cin` channels of x are used (x may carry padded lanes).
    Column order is (ci, ky, kx) to match torch weight.reshape(Cout, -1); the
    K zero-pad to `kpad` is folded into the stack (no separate pad copy).
    Returns (4, N*PH*PW, kpad); axis 0 is the window position (wy*2+wx)."""
    n, h, w = x.shape[:3]
    oh, ow = h - kh + 1, w - kw + 1           # oh, ow even for this net
    ph, pw = oh // 2, ow // 2
    cols = [x[:, ky:ky + oh, kx:kx + ow, ci]
            for ci in range(cin) for ky in range(kh) for kx in range(kw)]
    k = cin * kh * kw
    if kpad > k:
        z = jnp.zeros_like(cols[0])
        cols.extend([z] * (kpad - k))
    patches = jnp.stack(cols, axis=-1)                       # (N, OH, OW, Kpad)
    patches = patches.reshape(n, ph, 2, pw, 2, kpad)
    patches = jnp.transpose(patches, (2, 4, 0, 1, 3, 5))     # (2, 2, N, PH, PW, Kpad)
    return patches.reshape(4, n * ph * pw, kpad)


def net_forward(x, prep):
    # x: (N, 3, 32, 32) NCHW f32
    n = x.shape[0]
    x_nhwc = jnp.transpose(x, (0, 2, 3, 1)).astype(jnp.bfloat16)     # (N,32,32,3)

    p1 = _im2col_pooled_nhwc(x_nhwc, 3, 5, 5, K1PAD)                 # (4, N*196, 128)
    h = conv_relu_pool(p1, prep["conv1_w"], prep["conv1_b"])         # (N*196, 128) bf16
    h = h.reshape(n, 14, 14, LANE)                                   # NHWC, 6 real chans

    p2 = _im2col_pooled_nhwc(h, 6, 5, 5, K2PAD)                      # (4, N*25, 256)
    h = conv_relu_pool(p2, prep["conv2_w"], prep["conv2_b"])         # (N*25, 128) bf16

    # fc1 consumes the packed (h, w, 128-lane) layout directly (weight rows were
    # permuted/zero-embedded in prepare_params), so this reshape is free.
    h = h.reshape(n, 5 * 5 * LANE)

    out = fc_stack(h,
                   prep["fc1_w"], prep["fc1_b"],
                   prep["fc2_w"], prep["fc2_b"],
                   prep["fc3_w"], prep["fc3_b"])                     # (N, 128) f32
    return out[:, :10]


# -------------------- one-time parameter preparation -----------------------

def prepare_params(params):
    """Pre-transpose, zero-pad and bf16-cast all weights; biases stay f32."""
    def conv_w(w):                       # (Cout, Cin, KH, KW) -> (Kpad, 128) bf16
        cout = w.shape[0]
        k = w.shape[1] * w.shape[2] * w.shape[3]
        w2 = w.reshape(cout, k).T
        w2 = _pad_to(w2, 0, _round_up(k, LANE))
        w2 = _pad_to(w2, 1, _round_up(cout, LANE))
        return w2.astype(jnp.bfloat16)

    def fc_w(w):                         # (Nout, K) -> (Kpad, Npad) bf16
        nout, k = w.shape
        w2 = w.T
        w2 = _pad_to(w2, 0, _round_up(k, LANE))
        w2 = _pad_to(w2, 1, _round_up(nout, LANE))
        return w2.astype(jnp.bfloat16)

    def fc1_w(w):                        # (120, 400), torch flat order (c, h, w)
        # Fold the NCHW flatten + lane-padding of the conv2 output into the
        # weight: rows indexed (h, w, c) with c in a 128-lane slot; only
        # c < 16 carries data, the remaining rows are zero.
        nout = w.shape[0]
        w4 = w.reshape(nout, 16, 5, 5)                     # (out, c, h, w)
        w4 = jnp.transpose(w4, (2, 3, 1, 0))               # (h, w, c, out)
        w4 = jnp.pad(w4, ((0, 0), (0, 0), (0, LANE - 16), (0, LANE - nout)))
        return w4.reshape(5 * 5 * LANE, LANE).astype(jnp.bfloat16)

    def bias(b):
        return _pad_to(b.reshape(1, -1).astype(jnp.float32), 1,
                       _round_up(b.shape[0], LANE))

    return {
        "conv1_w": conv_w(params["conv1_w"]), "conv1_b": bias(params["conv1_b"]),
        "conv2_w": conv_w(params["conv2_w"]), "conv2_b": bias(params["conv2_b"]),
        "fc1_w": fc1_w(params["fc1_w"]),      "fc1_b": bias(params["fc1_b"]),
        "fc2_w": fc_w(params["fc2_w"]),       "fc2_b": bias(params["fc2_b"]),
        "fc3_w": fc_w(params["fc3_w"]),       "fc3_b": bias(params["fc3_b"]),
    }


# -------------------------- deterministic params ---------------------------

def init_params(key):
    ks = jax.random.split(key, 10)

    def u(k, shape, fan_in):
        bound = 1.0 / (fan_in ** 0.5)
        return jax.random.uniform(k, shape, jnp.float32, -bound, bound)

    return {
        "conv1_w": u(ks[0], (6, 3, 5, 5), 3 * 5 * 5),
        "conv1_b": u(ks[1], (6,), 3 * 5 * 5),
        "conv2_w": u(ks[2], (16, 6, 5, 5), 6 * 5 * 5),
        "conv2_b": u(ks[3], (16,), 6 * 5 * 5),
        "fc1_w": u(ks[4], (120, 400), 400),
        "fc1_b": u(ks[5], (120,), 400),
        "fc2_w": u(ks[6], (84, 120), 120),
        "fc2_b": u(ks[7], (84,), 120),
        "fc3_w": u(ks[8], (10, 84), 84),
        "fc3_b": u(ks[9], (10,), 84),
    }


if __name__ == "__main__":
    key = jax.random.PRNGKey(0)
    pkey, xkey = jax.random.split(key)
    params = init_params(pkey)
    prep = prepare_params(params)                 # one-time transpose/pad/bf16-cast
    x = jax.random.normal(xkey, (2, 3, 32, 32), jnp.float32)

    fwd = jax.jit(net_forward)
    out = jax.block_until_ready(fwd(x, prep))

    assert out.shape == (2, 10) and out.dtype == jnp.float32
    print("KERNEL_OK")
</pallas_src>

<mosaic_0001>
module attributes {stable_mosaic.version = 11 : i64} {
  func.func @_conv_relu_pool_kernel(%arg0: i32, %arg1: memref<4x80x128xbf16, #tpu.memory_space<vmem>>, %arg2: memref<128x128xbf16, #tpu.memory_space<vmem>>, %arg3: memref<1x128xf32, #tpu.memory_space<vmem>>, %arg4: memref<80x128xbf16, #tpu.memory_space<vmem>>) attributes {dimension_semantics = [#tpu.dimension_semantics<parallel>], iteration_bounds = array<i64: 5>, scalar_prefetch = 0 : i64, scratch_operands = 0 : i64, tpu.core_type = #tpu.core_type<tc>, window_params = [{transform_indices = @transform_0, window_bounds = array<i64: 4, 80, 128>}, {pipeline_mode = #tpu.pipeline_mode<synchronous>, transform_indices = @transform_1, window_bounds = array<i64: 128, 128>}, {pipeline_mode = #tpu.pipeline_mode<synchronous>, transform_indices = @transform_2, window_bounds = array<i64: 1, 128>}, {transform_indices = @transform_3, window_bounds = array<i64: 80, 128>}]} {
    %c0 = arith.constant 0 : index
    %c0_0 = arith.constant 0 : index
    %0 = vector.load %arg2[%c0, %c0_0] : memref<128x128xbf16, #tpu.memory_space<vmem>>, vector<128x128xbf16>
    %c0_1 = arith.constant 0 : index
    %c0_2 = arith.constant 0 : index
    %c0_3 = arith.constant 0 : index
    %1 = vector.load %arg1[%c0_1, %c0_2, %c0_3] : memref<4x80x128xbf16, #tpu.memory_space<vmem>>, vector<1x80x128xbf16>
    %2 = vector.shape_cast %1 : vector<1x80x128xbf16> to vector<80x128xbf16>
    %cst = arith.constant dense<0.000000e+00> : vector<80x128xf32>
    %3 = tpu.matmul %2, %0, %cst {dimension_numbers = #tpu.dot_dimension_numbers<[1], [0], [0], [1], [0, 0, 1, 1], [], []>} : vector<80x128xbf16>, vector<128x128xbf16>, vector<80x128xf32> -> vector<80x128xf32>
    %c1 = arith.constant 1 : index
    %c0_4 = arith.constant 0 : index
    %c0_5 = arith.constant 0 : index
    %4 = vector.load %arg1[%c1, %c0_4, %c0_5] : memref<4x80x128xbf16, #tpu.memory_space<vmem>>, vector<1x80x128xbf16>
    %5 = vector.shape_cast %4 : vector<1x80x128xbf16> to vector<80x128xbf16>
    %cst_6 = arith.constant dense<0.000000e+00> : vector<80x128xf32>
    %6 = tpu.matmul %5, %0, %cst_6 {dimension_numbers = #tpu.dot_dimension_numbers<[1], [0], [0], [1], [0, 0, 1, 1], [], []>} : vector<80x128xbf16>, vector<128x128xbf16>, vector<80x128xf32> -> vector<80x128xf32>
    %c2 = arith.constant 2 : index
    %c0_7 = arith.constant 0 : index
    %c0_8 = arith.constant 0 : index
    %7 = vector.load %arg1[%c2, %c0_7, %c0_8] : memref<4x80x128xbf16, #tpu.memory_space<vmem>>, vector<1x80x128xbf16>
    %8 = vector.shape_cast %7 : vector<1x80x128xbf16> to vector<80x128xbf16>
    %cst_9 = arith.constant dense<0.000000e+00> : vector<80x128xf32>
    %9 = tpu.matmul %8, %0, %cst_9 {dimension_numbers = #tpu.dot_dimension_numbers<[1], [0], [0], [1], [0, 0, 1, 1], [], []>} : vector<80x128xbf16>, vector<128x128xbf16>, vector<80x128xf32> -> vector<80x128xf32>
    %c3 = arith.constant 3 : index
    %c0_10 = arith.constant 0 : index
    %c0_11 = arith.constant 0 : index
    %10 = vector.load %arg1[%c3, %c0_10, %c0_11] : memref<4x80x128xbf16, #tpu.memory_space<vmem>>, vector<1x80x128xbf16>
    %11 = vector.shape_cast %10 : vector<1x80x128xbf16> to vector<80x128xbf16>
    %cst_12 = arith.constant dense<0.000000e+00> : vector<80x128xf32>
    %12 = tpu.matmul %11, %0, %cst_12 {dimension_numbers = #tpu.dot_dimension_numbers<[1], [0], [0], [1], [0, 0, 1, 1], [], []>} : vector<80x128xbf16>, vector<128x128xbf16>, vector<80x128xf32> -> vector<80x128xf32>
    %13 = arith.maximumf %3, %6 : vector<80x128xf32>
    %14 = arith.maximumf %9, %12 : vector<80x128xf32>
    %15 = arith.maximumf %13, %14 : vector<80x128xf32>
    %c0_13 = arith.constant 0 : index
    %c0_14 = arith.constant 0 : index
    %16 = vector.load %arg3[%c0_13, %c0_14] : memref<1x128xf32, #tpu.memory_space<vmem>>, vector<1x128xf32>
    %17 = vector.broadcast %16 : vector<1x128xf32> to vector<80x128xf32>
    %18 = arith.addf %15, %17 : vector<80x128xf32>
    %cst_15 = arith.constant 0.000000e+00 : f32
    %19 = vector.broadcast %cst_15 : f32 to vector<80x128xf32>
    %20 = arith.maximumf %18, %19 : vector<80x128xf32>
    %21 = arith.truncf %20 : vector<80x128xf32> to vector<80x128xbf16>
    %c0_16 = arith.constant 0 : index
    %c0_17 = arith.constant 0 : index
    %22 = vector.load %arg4[%c0_16, %c0_17] : memref<80x128xbf16, #tpu.memory_space<vmem>>, vector<80x128xbf16>
    tpu.vector_store %arg4[%c0_16, %c0_17], %21 {strides = array<i32>} : memref<80x128xbf16, #tpu.memory_space<vmem>>, vector<80x128xbf16>,
    return
  }
  func.func @transform_0(%arg0: i32) -> (i32, i32, i32) {
    %c0_i32 = arith.constant 0 : i32
    %c0_i32_0 = arith.constant 0 : i32
    %c0_i32_1 = arith.constant 0 : i32
    return %c0_i32, %arg0, %c0_i32_0 : i32, i32, i32
  }
  func.func @transform_1(%arg0: i32) -> (i32, i32) {
    %c0_i32 = arith.constant 0 : i32
    %c0_i32_0 = arith.constant 0 : i32
    %c0_i32_1 = arith.constant 0 : i32
    return %c0_i32, %c0_i32_0 : i32, i32
  }
  func.func @transform_2(%arg0: i32) -> (i32, i32) {
    %c0_i32 = arith.constant 0 : i32
    %c0_i32_0 = arith.constant 0 : i32
    %c0_i32_1 = arith.constant 0 : i32
    return %c0_i32, %c0_i32_0 : i32, i32
  }
  func.func @transform_3(%arg0: i32) -> (i32, i32) {
    %c0_i32 = arith.constant 0 : i32
    %c0_i32_0 = arith.constant 0 : i32
    return %arg0, %c0_i32 : i32, i32
  }
}

module attributes {stable_mosaic.version = 11 : i64} {
  func.func @_conv_relu_pool_kernel(%arg0: i32, %arg1: memref<4x32x256xbf16, #tpu.memory_space<vmem>>, %arg2: memref<256x128xbf16, #tpu.memory_space<vmem>>, %arg3: memref<1x128xf32, #tpu.memory_space<vmem>>, %arg4: memref<32x128xbf16, #tpu.memory_space<vmem>>) attributes {dimension_semantics = [#tpu.dimension_semantics<parallel>], iteration_bounds = array<i64: 2>, scalar_prefetch = 0 : i64, scratch_operands = 0 : i64, tpu.core_type = #tpu.core_type<tc>, window_params = [{transform_indices = @transform_0, window_bounds = array<i64: 4, 32, 256>}, {pipeline_mode = #tpu.pipeline_mode<synchronous>, transform_indices = @transform_1, window_bounds = array<i64: 256, 128>}, {pipeline_mode = #tpu.pipeline_mode<synchronous>, transform_indices = @transform_2, window_bounds = array<i64: 1, 128>}, {transform_indices = @transform_3, window_bounds = array<i64: 32, 128>}]} {
    %c0 = arith.constant 0 : index
    %c0_0 = arith.constant 0 : index
    %0 = vector.load %arg2[%c0, %c0_0] : memref<256x128xbf16, #tpu.memory_space<vmem>>, vector<256x128xbf16>
    %c0_1 = arith.constant 0 : index
    %c0_2 = arith.constant 0 : index
    %c0_3 = arith.constant 0 : index
    %1 = vector.load %arg1[%c0_1, %c0_2, %c0_3] : memref<4x32x256xbf16, #tpu.memory_space<vmem>>, vector<1x32x256xbf16>
    %2 = vector.shape_cast %1 : vector<1x32x256xbf16> to vector<32x256xbf16>
    %cst = arith.constant dense<0.000000e+00> : vector<32x128xf32>
    %3 = tpu.matmul %2, %0, %cst {dimension_numbers = #tpu.dot_dimension_numbers<[1], [0], [0], [1], [0, 0, 1, 1], [], []>} : vector<32x256xbf16>, vector<256x128xbf16>, vector<32x128xf32> -> vector<32x128xf32>
    %c1 = arith.constant 1 : index
    %c0_4 = arith.constant 0 : index
    %c0_5 = arith.constant 0 : index
    %4 = vector.load %arg1[%c1, %c0_4, %c0_5] : memref<4x32x256xbf16, #tpu.memory_space<vmem>>, vector<1x32x256xbf16>
    %5 = vector.shape_cast %4 : vector<1x32x256xbf16> to vector<32x256xbf16>
    %cst_6 = arith.constant dense<0.000000e+00> : vector<32x128xf32>
    %6 = tpu.matmul %5, %0, %cst_6 {dimension_numbers = #tpu.dot_dimension_numbers<[1], [0], [0], [1], [0, 0, 1, 1], [], []>} : vector<32x256xbf16>, vector<256x128xbf16>, vector<32x128xf32> -> vector<32x128xf32>
    %c2 = arith.constant 2 : index
    %c0_7 = arith.constant 0 : index
    %c0_8 = arith.constant 0 : index
    %7 = vector.load %arg1[%c2, %c0_7, %c0_8] : memref<4x32x256xbf16, #tpu.memory_space<vmem>>, vector<1x32x256xbf16>
    %8 = vector.shape_cast %7 : vector<1x32x256xbf16> to vector<32x256xbf16>
    %cst_9 = arith.constant dense<0.000000e+00> : vector<32x128xf32>
    %9 = tpu.matmul %8, %0, %cst_9 {dimension_numbers = #tpu.dot_dimension_numbers<[1], [0], [0], [1], [0, 0, 1, 1], [], []>} : vector<32x256xbf16>, vector<256x128xbf16>, vector<32x128xf32> -> vector<32x128xf32>
    %c3 = arith.constant 3 : index
    %c0_10 = arith.constant 0 : index
    %c0_11 = arith.constant 0 : index
    %10 = vector.load %arg1[%c3, %c0_10, %c0_11] : memref<4x32x256xbf16, #tpu.memory_space<vmem>>, vector<1x32x256xbf16>
    %11 = vector.shape_cast %10 : vector<1x32x256xbf16> to vector<32x256xbf16>
    %cst_12 = arith.constant dense<0.000000e+00> : vector<32x128xf32>
    %12 = tpu.matmul %11, %0, %cst_12 {dimension_numbers = #tpu.dot_dimension_numbers<[1], [0], [0], [1], [0, 0, 1, 1], [], []>} : vector<32x256xbf16>, vector<256x128xbf16>, vector<32x128xf32> -> vector<32x128xf32>
    %13 = arith.maximumf %3, %6 : vector<32x128xf32>
    %14 = arith.maximumf %9, %12 : vector<32x128xf32>
    %15 = arith.maximumf %13, %14 : vector<32x128xf32>
    %c0_13 = arith.constant 0 : index
    %c0_14 = arith.constant 0 : index
    %16 = vector.load %arg3[%c0_13, %c0_14] : memref<1x128xf32, #tpu.memory_space<vmem>>, vector<1x128xf32>
    %17 = vector.broadcast %16 : vector<1x128xf32> to vector<32x128xf32>
    %18 = arith.addf %15, %17 : vector<32x128xf32>
    %cst_15 = arith.constant 0.000000e+00 : f32
    %19 = vector.broadcast %cst_15 : f32 to vector<32x128xf32>
    %20 = arith.maximumf %18, %19 : vector<32x128xf32>
    %21 = arith.truncf %20 : vector<32x128xf32> to vector<32x128xbf16>
    %c0_16 = arith.constant 0 : index
    %c0_17 = arith.constant 0 : index
    %22 = vector.load %arg4[%c0_16, %c0_17] : memref<32x128xbf16, #tpu.memory_space<vmem>>, vector<32x128xbf16>
    tpu.vector_store %arg4[%c0_16, %c0_17], %21 {strides = array<i32>} : memref<32x128xbf16, #tpu.memory_space<vmem>>, vector<32x128xbf16>,
    return
  }
  func.func @transform_0(%arg0: i32) -> (i32, i32, i32) {
    %c0_i32 = arith.constant 0 : i32
    %c0_i32_0 = arith.constant 0 : i32
    %c0_i32_1 = arith.constant 0 : i32
    return %c0_i32, %arg0, %c0_i32_0 : i32, i32, i32
  }
  func.func @transform_1(%arg0: i32) -> (i32, i32) {
    %c0_i32 = arith.constant 0 : i32
    %c0_i32_0 = arith.constant 0 : i32
    %c0_i32_1 = arith.constant 0 : i32
    return %c0_i32, %c0_i32_0 : i32, i32
  }
  func.func @transform_2(%arg0: i32) -> (i32, i32) {
    %c0_i32 = arith.constant 0 : i32
    %c0_i32_0 = arith.constant 0 : i32
    %c0_i32_1 = arith.constant 0 : i32
    return %c0_i32, %c0_i32_0 : i32, i32
  }
  func.func @transform_3(%arg0: i32) -> (i32, i32) {
    %c0_i32 = arith.constant 0 : i32
    %c0_i32_0 = arith.constant 0 : i32
    return %arg0, %c0_i32 : i32, i32
  }
}

module attributes {stable_mosaic.version = 11 : i64} {
  func.func @_fc_stack_kernel(%arg0: i32, %arg1: memref<16x3200xbf16, #tpu.memory_space<vmem>>, %arg2: memref<3200x128xbf16, #tpu.memory_space<vmem>>, %arg3: memref<1x128xf32, #tpu.memory_space<vmem>>, %arg4: memref<128x128xbf16, #tpu.memory_space<vmem>>, %arg5: memref<1x128xf32, #tpu.memory_space<vmem>>, %arg6: memref<128x128xbf16, #tpu.memory_space<vmem>>, %arg7: memref<1x128xf32, #tpu.memory_space<vmem>>, %arg8: memref<16x128xf32, #tpu.memory_space<vmem>>) attributes {dimension_semantics = [#tpu.dimension_semantics<parallel>], iteration_bounds = array<i64: 1>, scalar_prefetch = 0 : i64, scratch_operands = 0 : i64, tpu.core_type = #tpu.core_type<tc>, window_params = [{transform_indices = @transform_0, window_bounds = array<i64: 16, 3200>}, {pipeline_mode = #tpu.pipeline_mode<synchronous>, transform_indices = @transform_1, window_bounds = array<i64: 3200, 128>}, {pipeline_mode = #tpu.pipeline_mode<synchronous>, transform_indices = @transform_2, window_bounds = array<i64: 1, 128>}, {pipeline_mode = #tpu.pipeline_mode<synchronous>, transform_indices = @transform_3, window_bounds = array<i64: 128, 128>}, {pipeline_mode = #tpu.pipeline_mode<synchronous>, transform_indices = @transform_4, window_bounds = array<i64: 1, 128>}, {pipeline_mode = #tpu.pipeline_mode<synchronous>, transform_indices = @transform_5, window_bounds = array<i64: 128, 128>}, {pipeline_mode = #tpu.pipeline_mode<synchronous>, transform_indices = @transform_6, window_bounds = array<i64: 1, 128>}, {transform_indices = @transform_7, window_bounds = array<i64: 16, 128>}]} {
    %c0 = arith.constant 0 : index
    %c0_0 = arith.constant 0 : index
    %0 = vector.load %arg1[%c0, %c0_0] : memref<16x3200xbf16, #tpu.memory_space<vmem>>, vector<16x3200xbf16>
    %c0_1 = arith.constant 0 : index
    %c0_2 = arith.constant 0 : index
    %1 = vector.load %arg2[%c0_1, %c0_2] : memref<3200x128xbf16, #tpu.memory_space<vmem>>, vector<3200x128xbf16>
    %cst = arith.constant dense<0.000000e+00> : vector<16x128xf32>
    %2 = tpu.matmul %0, %1, %cst {dimension_numbers = #tpu.dot_dimension_numbers<[1], [0], [0], [1], [0, 0, 1, 1], [], []>} : vector<16x3200xbf16>, vector<3200x128xbf16>, vector<16x128xf32> -> vector<16x128xf32>
    %c0_3 = arith.constant 0 : index
    %c0_4 = arith.constant 0 : index
    %3 = vector.load %arg3[%c0_3, %c0_4] : memref<1x128xf32, #tpu.memory_space<vmem>>, vector<1x128xf32>
    %4 = vector.broadcast %3 : vector<1x128xf32> to vector<16x128xf32>
    %5 = arith.addf %2, %4 : vector<16x128xf32>
    %cst_5 = arith.constant 0.000000e+00 : f32
    %6 = vector.broadcast %cst_5 : f32 to vector<16x128xf32>
    %7 = arith.maximumf %5, %6 : vector<16x128xf32>
    %8 = arith.truncf %7 : vector<16x128xf32> to vector<16x128xbf16>
    %c0_6 = arith.constant 0 : index
    %c0_7 = arith.constant 0 : index
    %9 = vector.load %arg4[%c0_6, %c0_7] : memref<128x128xbf16, #tpu.memory_space<vmem>>, vector<128x128xbf16>
    %cst_8 = arith.constant dense<0.000000e+00> : vector<16x128xf32>
    %10 = tpu.matmul %8, %9, %cst_8 {dimension_numbers = #tpu.dot_dimension_numbers<[1], [0], [0], [1], [0, 0, 1, 1], [], []>} : vector<16x128xbf16>, vector<128x128xbf16>, vector<16x128xf32> -> vector<16x128xf32>
    %c0_9 = arith.constant 0 : index
    %c0_10 = arith.constant 0 : index
    %11 = vector.load %arg5[%c0_9, %c0_10] : memref<1x128xf32, #tpu.memory_space<vmem>>, vector<1x128xf32>
    %12 = vector.broadcast %11 : vector<1x128xf32> to vector<16x128xf32>
    %13 = arith.addf %10, %12 : vector<16x128xf32>
    %cst_11 = arith.constant 0.000000e+00 : f32
    %14 = vector.broadcast %cst_11 : f32 to vector<16x128xf32>
    %15 = arith.maximumf %13, %14 : vector<16x128xf32>
    %16 = arith.truncf %15 : vector<16x128xf32> to vector<16x128xbf16>
    %c0_12 = arith.constant 0 : index
    %c0_13 = arith.constant 0 : index
    %17 = vector.load %arg6[%c0_12, %c0_13] : memref<128x128xbf16, #tpu.memory_space<vmem>>, vector<128x128xbf16>
    %cst_14 = arith.constant dense<0.000000e+00> : vector<16x128xf32>
    %18 = tpu.matmul %16, %17, %cst_14 {dimension_numbers = #tpu.dot_dimension_numbers<[1], [0], [0], [1], [0, 0, 1, 1], [], []>} : vector<16x128xbf16>, vector<128x128xbf16>, vector<16x128xf32> -> vector<16x128xf32>
    %c0_15 = arith.constant 0 : index
    %c0_16 = arith.constant 0 : index
    %19 = vector.load %arg7[%c0_15, %c0_16] : memref<1x128xf32, #tpu.memory_space<vmem>>, vector<1x128xf32>
    %20 = vector.broadcast %19 : vector<1x128xf32> to vector<16x128xf32>
    %21 = arith.addf %18, %20 : vector<16x128xf32>
    %c0_17 = arith.constant 0 : index
    %c0_18 = arith.constant 0 : index
    %22 = vector.load %arg8[%c0_17, %c0_18] : memref<16x128xf32, #tpu.memory_space<vmem>>, vector<16x128xf32>
    tpu.vector_store %arg8[%c0_17, %c0_18], %21 {strides = array<i32>} : memref<16x128xf32, #tpu.memory_space<vmem>>, vector<16x128xf32>,
    return
  }
  func.func @transform_0(%arg0: i32) -> (i32, i32) {
    %c0_i32 = arith.constant 0 : i32
    %c0_i32_0 = arith.constant 0 : i32
    return %arg0, %c0_i32 : i32, i32
  }
  func.func @transform_1(%arg0: i32) -> (i32, i32) {
    %c0_i32 = arith.constant 0 : i32
    %c0_i32_0 = arith.constant 0 : i32
    %c0_i32_1 = arith.constant 0 : i32
    return %c0_i32, %c0_i32_0 : i32, i32
  }
  func.func @transform_2(%arg0: i32) -> (i32, i32) {
    %c0_i32 = arith.constant 0 : i32
    %c0_i32_0 = arith.constant 0 : i32
    %c0_i32_1 = arith.constant 0 : i32
    return %c0_i32, %c0_i32_0 : i32, i32
  }
  func.func @transform_3(%arg0: i32) -> (i32, i32) {
    %c0_i32 = arith.constant 0 : i32
    %c0_i32_0 = arith.constant 0 : i32
    %c0_i32_1 = arith.constant 0 : i32
    return %c0_i32, %c0_i32_0 : i32, i32
  }
  func.func @transform_4(%arg0: i32) -> (i32, i32) {
    %c0_i32 = arith.constant 0 : i32
    %c0_i32_0 = arith.constant 0 : i32
    %c0_i32_1 = arith.constant 0 : i32
    return %c0_i32, %c0_i32_0 : i32, i32
  }
  func.func @transform_5(%arg0: i32) -> (i32, i32) {
    %c0_i32 = arith.constant 0 : i32
    %c0_i32_0 = arith.constant 0 : i32
    %c0_i32_1 = arith.constant 0 : i32
    return %c0_i32, %c0_i32_0 : i32, i32
  }
  func.func @transform_6(%arg0: i32) -> (i32, i32) {
    %c0_i32 = arith.constant 0 : i32
    %c0_i32_0 = arith.constant 0 : i32
    %c0_i32_1 = arith.constant 0 : i32
    return %c0_i32, %c0_i32_0 : i32, i32
  }
  func.func @transform_7(%arg0: i32) -> (i32, i32) {
    %c0_i32 = arith.constant 0 : i32
    %c0_i32_0 = arith.constant 0 : i32
    return %arg0, %c0_i32 : i32, i32
  }
}

</mosaic_0001>

<llo_original>
// kernel: net_forward.3
$region0: #{net_forward.3}
  #allocation0 [shape = 'u32[]', space=smem, size = 0x4, offset = 0x4, fixed_abs, tag = 'smem constant byte address 0x4 - core index']
  #allocation1 [shape = 'u32[144,128]{1,0:T(1,128)}', space=vmem, size = 0x12000, scoped, tag = 'internal scratch']
  %s0 = inlined_call_operand.vmem [shape: bf16[4,400,128], index: 0, kind: input, shape index: {}]
  %s1 = inlined_call_operand.vmem [shape: bf16[128,128], index: 1, kind: input, shape index: {}]
  %s2 = inlined_call_operand.vmem [shape: f32[1,128], index: 2, kind: input, shape index: {}]
  %s3 = inlined_call_operand.vmem [shape: bf16[400,128], index: 3, kind: output, shape index: {}]
  %s4 = sld [smem:[#allocation0]]
  $region86: #{net_forward.3} parent=0
    _
  %s6 = ssub.s32 1, %s4
  %s7 = scalar_select 0, %s6, %s4
  $region1: #{net_forward.3} parent=0
    #allocation2 [shape = 'u8[163840]{0}', space=vmem, size = 0x28000, scoped, tag = 'input window, operand 0']
    loop: start=0, step=1, limit=7
    $region2: #{net_forward.3} parent=1 // loop_pre_header
      _
    $region3: #{net_forward.3} parent=1 // loop_header
      %s9 = sphi 0, %s13
      %p10 = scmp.ge.s32.totalorder %s9, 7
      %s19 = sphi 0, %s21
      %s22 = sphi 0, %s19
      %s23 = sphi 0, %s22
      %s39 = sphi 0, %s23
      %s43 = sphi 0, %s43
      %s45 = sphi 0, %s43
      %s46 = sphi 0, %s45
      %s60 = sphi 0, %s46
      %s64 = sphi 0, %s64
      %s66 = sphi 0, %s64
      %s67 = sphi 0, %s66
      %s81 = sphi 0, %s67
      %s87 = sphi 0, %s89
      %s90 = sphi 0, %s87
      %s91 = sphi 0, %s90
      %s107 = sphi 0, %s91
    $region4: #{net_forward.3} parent=1 // loop_header_branch
      %12 = sbr.rel (%p10) target = $region8
    $region5: #{net_forward.3} parent=1 // loop_body
      %s14 = ssub.s32 %s9, 1
      %s15 = ssub.s32 %s9, 2
      %s16 = sadd.s32 %s9, 1
      %s17 = ssub.s32 %s9, %s16
      %p18 = scmp.eq.s32.totalorder %s17, 0
      %s20 = sadd.s32 %s19, 1
      %s21 = scalar_select %p18, %s19, %s20
      %p24 = pneg %p18
      %p25 = scmp.eq.s32.totalorder %s9, 4
      %p26 = por %p24, %p25
      %p27 = scmp.ne.s32.totalorder %s19, %s22
      %p28 = scmp.eq.s32.totalorder %s9, 0
      %p29 = por %p27, %p28
      %p30 = scmp.ne.s32.totalorder %s19, %s22
      %p31 = scmp.eq.s32.totalorder %s14, 4
      %p32 = por %p30, %p31
      %p33 = scmp.ne.s32.totalorder %s22, %s23
      %p34 = scmp.eq.s32.totalorder %s14, 0
      %p35 = por %p33, %p34
      %p36 = scmp.ne.s32.totalorder %s22, %s23
      %p37 = scmp.eq.s32.totalorder %s15, 4
      %p38 = por %p36, %p37
      %p40 = scmp.ne.s32.totalorder %s23, %s39
      %p41 = scmp.eq.s32.totalorder %s15, 0
      %p42 = por %p40, %p41
      %s44 = sadd.s32 %s43, 1
      %p47 = scmp.eq.s32.totalorder %s9, 4
      %p48 = scmp.ne.s32.totalorder %s43, %s45
      %p49 = scmp.eq.s32.totalorder %s9, 0
      %p50 = por %p48, %p49
      %p51 = scmp.ne.s32.totalorder %s43, %s45
      %p52 = scmp.eq.s32.totalorder %s14, 4
      %p53 = por %p51, %p52
      %p54 = scmp.ne.s32.totalorder %s45, %s46
      %p55 = scmp.eq.s32.totalorder %s14, 0
      %p56 = por %p54, %p55
      %p57 = scmp.ne.s32.totalorder %s45, %s46
      %p58 = scmp.eq.s32.totalorder %s15, 4
      %p59 = por %p57, %p58
      %p61 = scmp.ne.s32.totalorder %s46, %s60
      %p62 = scmp.eq.s32.totalorder %s15, 0
      %p63 = por %p61, %p62
      %s65 = sadd.s32 %s64, 1
      %p68 = scmp.eq.s32.totalorder %s9, 4
      %p69 = scmp.ne.s32.totalorder %s64, %s66
      %p70 = scmp.eq.s32.totalorder %s9, 0
      %p71 = por %p69, %p70
      %p72 = scmp.ne.s32.totalorder %s64, %s66
      %p73 = scmp.eq.s32.totalorder %s14, 4
      %p74 = por %p72, %p73
      %p75 = scmp.ne.s32.totalorder %s66, %s67
      %p76 = scmp.eq.s32.totalorder %s14, 0
      %p77 = por %p75, %p76
      %p78 = scmp.ne.s32.totalorder %s66, %s67
      %p79 = scmp.eq.s32.totalorder %s15, 4
      %p80 = por %p78, %p79
      %p82 = scmp.ne.s32.totalorder %s67, %s81
      %p83 = scmp.eq.s32.totalorder %s15, 0
      %p84 = por %p82, %p83
      %s85 = ssub.s32 %s9, %s16
      %p86 = scmp.eq.s32.totalorder %s85, 0
      %s88 = sadd.s32 %s87, 1
      %s89 = scalar_select %p86, %s87, %s88
      %p92 = pneg %p86
      %p93 = scmp.eq.s32.totalorder %s9, 4
      %p94 = por %p92, %p93
      %p95 = scmp.ne.s32.totalorder %s87, %s90
      %p96 = scmp.eq.s32.totalorder %s9, 0
      %p97 = por %p95, %p96
      %p98 = scmp.ne.s32.totalorder %s87, %s90
      %p99 = scmp.eq.s32.totalorder %s14, 4
      %p100 = por %p98, %p99
      %p101 = scmp.ne.s32.totalorder %s90, %s91
      %p102 = scmp.eq.s32.totalorder %s14, 0
      %p103 = por %p101, %p102
      %p104 = scmp.ne.s32.totalorder %s90, %s91
      %p105 = scmp.eq.s32.totalorder %s15, 4
      %p106 = por %p104, %p105
      %p108 = scmp.ne.s32.totalorder %s91, %s107
      %p109 = scmp.eq.s32.totalorder %s15, 0
      %p110 = por %p108, %p109
      %p111 = scmp.le.s32.totalorder 1, %s9
      %p112 = scmp.lt.s32.totalorder %s9, 6
      %p113 = pnand %p111, %p112
      %p114 = pneg %p113
      // Predicated region
      $region9: #{net_forward.3} parent=5 // pred_check
        _
      $region10: #{net_forward.3} parent=5 // pred_check_branch
        %116 = sbr.rel (%p113) target = $region12
      $region11: #{net_forward.3} parent=5 // pred_region
        %s117 = ssub.s32 %s9, 1
        // Predicated region
        $region13: #{net_forward.3} parent=11 // pred_check
          %p118 = pneg %p56
        $region14: #{net_forward.3} parent=11 // pred_check_branch
          %120 = sbr.rel (%p118) target = $region16
        $region15: #{net_forward.3} parent=11 // pred_region
          _
        $region16: #{net_forward.3} parent=11 // pred_fallthru
          _
        // Predicated region
        $region17: #{net_forward.3} parent=11 // pred_check
          %p121 = pneg %p77
        $region18: #{net_forward.3} parent=11 // pred_check_branch
          %123 = sbr.rel (%p121) target = $region20
        $region19: #{net_forward.3} parent=11 // pred_region
          _
        $region20: #{net_forward.3} parent=11 // pred_fallthru
          _
      $region12: #{net_forward.3} parent=5 // pred_fallthru
        _
      %p124 = scmp.lt.s32.totalorder %s9, 5
      // Predicated region
      $region21: #{net_forward.3} parent=5 // pred_check
        %p125 = pneg %p124
      $region22: #{net_forward.3} parent=5 // pred_check_branch
        %127 = sbr.rel (%p125) target = $region24
      $region23: #{net_forward.3} parent=5 // pred_region
        // Predicated region
        $region25: #{net_forward.3} parent=23 // pred_check
          %p128 = pneg %p29
        $region26: #{net_forward.3} parent=23 // pred_check_branch
          %130 = sbr.rel (%p128) target = $region28
        $region27: #{net_forward.3} parent=23 // pred_region
          %s131 = sand.u32 %s19, 1
          %s132 = sand.u32 %s19, 1
          %s133 = smul.addr %s132, 160
          %s134 = scalar_lea.vmem [#allocation2], %s133
          %s135 = smul.u32 10, %s9
          %s136 = smul.addr %s135, 4
          %s137 = scalar_lea.vmem %s0, %s136
          // Predicated region
          $region29: #{net_forward.3} parent=27 // pred_check
            _
          $region30: #{net_forward.3} parent=27 // pred_check_branch
            %139 = sbr.rel (0) target = $region32
          $region31: #{net_forward.3} parent=27 // pred_region
            // Predicated region
            $region33: #{net_forward.3} parent=31 // pred_check
              _
            $region34: #{net_forward.3} parent=31 // pred_check_branch
              %141 = sbr.rel target = $region36
            $region35: #{net_forward.3} parent=31 // pred_region
              // Predicated region
              $region48: #{net_forward.3} parent=35 // pred_check
                _
              $region49: #{net_forward.3} parent=35 // pred_check_branch
                %234 = sbr.rel (0) target = $region51
              $region50: #{net_forward.3} parent=35 // pred_region
                loop: start=0, step=1, limit=1
                $region52: #{net_forward.3} parent=50 // loop_pre_header
                  _
                $region53: #{net_forward.3} parent=50 // loop_header
                  %s236 = sphi 0, %s240
                  %p237 = scmp.ge.s32.totalorder %s236, 1
                  %s241 = sphi %s137, %s137
                  %s242 = sphi %s134, %s134
                $region54: #{net_forward.3} parent=50 // loop_header_branch
                  %239 = sbr.rel (%p237) target = $region58
                $region55: #{net_forward.3} parent=50 // loop_body
                  _
                $region56: #{net_forward.3} parent=50 // loop_footer
                  %s240 = sadd.s32 1, %s236
                $region57: #{net_forward.3} parent=50 // loop_footer_branch
                  %235 = sbr.rel target = $region53
                $region58: #{net_forward.3} parent=50 // loop_exit
                  _
                loop: start=0, step=1, limit=1
                $region59: #{net_forward.3} parent=50 // loop_pre_header
                  _
                $region60: #{net_forward.3} parent=50 // loop_header
                  %s245 = sphi 0, %s249
                  %p246 = scmp.ge.s32.totalorder %s245, 1
                  %s250 = sphi %s137, %s137
                  %s251 = sphi %s134, %s134
                $region61: #{net_forward.3} parent=50 // loop_header_branch
                  %248 = sbr.rel (%p246) target = $region65
                $region62: #{net_forward.3} parent=50 // loop_body
                  %v252 = vld [vmem:[%s250] sm:$0xf]
                  %253 = vst [vmem:[%s251] sm:$0xf] %v252
                  %v254 = vld [vmem:[%s250 + $0x4] sm:$0xf]
                  %255 = vst [vmem:[%s251 + $0x4] sm:$0xf] %v254
                  %v256 = vld [vmem:[%s250 + $0x8] sm:$0xf]
                  %257 = vst [vmem:[%s251 + $0x8] sm:$0xf] %v256
                  %v258 = vld [vmem:[%s250 + $0xc] sm:$0xf]
                  %259 = vst [vmem:[%s251 + $0xc] sm:$0xf] %v258
                  %v260 = vld [vmem:[%s250 + $0x10] sm:$0xf]
                  %261 = vst [vmem:[%s251 + $0x10] sm:$0xf] %v260
                  %v262 = vld [vmem:[%s250 + $0x14] sm:$0xf]
                  %263 = vst [vmem:[%s251 + $0x14] sm:$0xf] %v262
                  %v264 = vld [vmem:[%s250 + $0x18] sm:$0xf]
                  %265 = vst [vmem:[%s251 + $0x18] sm:$0xf] %v264
                  %v266 = vld [vmem:[%s250 + $0x1c] sm:$0xf]
                  %267 = vst [vmem:[%s251 + $0x1c] sm:$0xf] %v266
                  %v268 = vld [vmem:[%s250 + $0x20] sm:$0xf]
                  %269 = vst [vmem:[%s251 + $0x20] sm:$0xf] %v268
                  %v270 = vld [vmem:[%s250 + $0x24] sm:$0xf]
                  %271 = vst [vmem:[%s251 + $0x24] sm:$0xf] %v270
                  %v272 = vld [vmem:[%s250 + $0xc8] sm:$0xf]
                  %273 = vst [vmem:[%s251 + $0x28] sm:$0xf] %v272
                  %v274 = vld [vmem:[%s250 + $0xcc] sm:$0xf]
                  %275 = vst [vmem:[%s251 + $0x2c] sm:$0xf] %v274
                  %v276 = vld [vmem:[%s250 + $0xd0] sm:$0xf]
                  %277 = vst [vmem:[%s251 + $0x30] sm:$0xf] %v276
                  %v278 = vld [vmem:[%s250 + $0xd4] sm:$0xf]
                  %279 = vst [vmem:[%s251 + $0x34] sm:$0xf] %v278
                  %v280 = vld [vmem:[%s250 + $0xd8] sm:$0xf]
                  %281 = vst [vmem:[%s251 + $0x38] sm:$0xf] %v280
                  %v282 = vld [vmem:[%s250 + $0xdc] sm:$0xf]
                  %283 = vst [vmem:[%s251 + $0x3c] sm:$0xf] %v282
                  %v284 = vld [vmem:[%s250 + $0xe0] sm:$0xf]
                  %285 = vst [vmem:[%s251 + $0x40] sm:$0xf] %v284
                  %v286 = vld [vmem:[%s250 + $0xe4] sm:$0xf]
                  %287 = vst [vmem:[%s251 + $0x44] sm:$0xf] %v286
                  %v288 = vld [vmem:[%s250 + $0xe8] sm:$0xf]
                  %289 = vst [vmem:[%s251 + $0x48] sm:$0xf] %v288
                  %v290 = vld [vmem:[%s250 + $0xec] sm:$0xf]
                  %291 = vst [vmem:[%s251 + $0x4c] sm:$0xf] %v290
                  %v292 = vld [vmem:[%s250 + $0x190] sm:$0xf]
                  %293 = vst [vmem:[%s251 + $0x50] sm:$0xf] %v292
                  %v294 = vld [vmem:[%s250 + $0x194] sm:$0xf]
                  %295 = vst [vmem:[%s251 + $0x54] sm:$0xf] %v294
                  %v296 = vld [vmem:[%s250 + $0x198] sm:$0xf]
                  %297 = vst [vmem:[%s251 + $0x58] sm:$0xf] %v296
                  %v298 = vld [vmem:[%s250 + $0x19c] sm:$0xf]
                  %299 = vst [vmem:[%s251 + $0x5c] sm:$0xf] %v298
                  %v300 = vld [vmem:[%s250 + $0x1a0] sm:$0xf]
                  %301 = vst [vmem:[%s251 + $0x60] sm:$0xf] %v300
                  %v302 = vld [vmem:[%s250 + $0x1a4] sm:$0xf]
                  %303 = vst [vmem:[%s251 + $0x64] sm:$0xf] %v302
                  %v304 = vld [vmem:[%s250 + $0x1a8] sm:$0xf]
                  %305 = vst [vmem:[%s251 + $0x68] sm:$0xf] %v304
                  %v306 = vld [vmem:[%s250 + $0x1ac] sm:$0xf]
                  %307 = vst [vmem:[%s251 + $0x6c] sm:$0xf] %v306
                  %v308 = vld [vmem:[%s250 + $0x1b0] sm:$0xf]
                  %309 = vst [vmem:[%s251 + $0x70] sm:$0xf] %v308
                  %v310 = vld [vmem:[%s250 + $0x1b4] sm:$0xf]
                  %311 = vst [vmem:[%s251 + $0x74] sm:$0xf] %v310
                  %v312 = vld [vmem:[%s250 + $0x258] sm:$0xf]
                  %313 = vst [vmem:[%s251 + $0x78] sm:$0xf] %v312
                  %v314 = vld [vmem:[%s250 + $0x25c] sm:$0xf]
                  %315 = vst [vmem:[%s251 + $0x7c] sm:$0xf] %v314
                  %v316 = vld [vmem:[%s250 + $0x260] sm:$0xf]
                  %317 = vst [vmem:[%s251 + $0x80] sm:$0xf] %v316
                  %v318 = vld [vmem:[%s250 + $0x264] sm:$0xf]
                  %319 = vst [vmem:[%s251 + $0x84] sm:$0xf] %v318
                  %v320 = vld [vmem:[%s250 + $0x268] sm:$0xf]
                  %321 = vst [vmem:[%s251 + $0x88] sm:$0xf] %v320
                  %v322 = vld [vmem:[%s250 + $0x26c] sm:$0xf]
                  %323 = vst [vmem:[%s251 + $0x8c] sm:$0xf] %v322
                  %v324 = vld [vmem:[%s250 + $0x270] sm:$0xf]
                  %325 = vst [vmem:[%s251 + $0x90] sm:$0xf] %v324
                  %v326 = vld [vmem:[%s250 + $0x274] sm:$0xf]
                  %327 = vst [vmem:[%s251 + $0x94] sm:$0xf] %v326
                  %v328 = vld [vmem:[%s250 + $0x278] sm:$0xf]
                  %329 = vst [vmem:[%s251 + $0x98] sm:$0xf] %v328
                  %v330 = vld [vmem:[%s250 + $0x27c] sm:$0xf]
                  %331 = vst [vmem:[%s251 + $0x9c] sm:$0xf] %v330
                $region63: #{net_forward.3} parent=50 // loop_footer
                  %s249 = sadd.s32 1, %s245
                $region64: #{net_forward.3} parent=50 // loop_footer_branch
                  %244 = sbr.rel target = $region60
                $region65: #{net_forward.3} parent=50 // loop_exit
                  _
              $region51: #{net_forward.3} parent=35 // pred_fallthru
                _
            $region36: #{net_forward.3} parent=31 // pred_fallthru
              _
            // Predicated region
            $region37: #{net_forward.3} parent=31 // pred_check
              _
            $region38: #{net_forward.3} parent=31 // pred_check_branch
              %143 = sbr.rel (0) target = $region40
            $region39: #{net_forward.3} parent=31 // pred_region
              loop: start=0, step=1, limit=1
              $region41: #{net_forward.3} parent=39 // loop_pre_header
                _
              $region42: #{net_forward.3} parent=39 // loop_header
                %s146 = sphi 0, %s150
                %p147 = scmp.ge.s32.totalorder %s146, 1
                %s151 = sphi %s137, %s137
                %s152 = sphi %s134, %s134
              $region43: #{net_forward.3} parent=39 // loop_header_branch
                %149 = sbr.rel (%p147) target = $region47
              $region44: #{net_forward.3} parent=39 // loop_body
                %v153 = vld [vmem:[%s151] sm:$0xf]
                %154 = vst [vmem:[%s152] sm:$0xf] %v153
                %v155 = vld [vmem:[%s151 + $0x4] sm:$0xf]
                %156 = vst [vmem:[%s152 + $0x4] sm:$0xf] %v155
                %v157 = vld [vmem:[%s151 + $0x8] sm:$0xf]
                %158 = vst [vmem:[%s152 + $0x8] sm:$0xf] %v157
                %v159 = vld [vmem:[%s151 + $0xc] sm:$0xf]
                %160 = vst [vmem:[%s152 + $0xc] sm:$0xf] %v159
                %v161 = vld [vmem:[%s151 + $0x10] sm:$0xf]
                %162 = vst [vmem:[%s152 + $0x10] sm:$0xf] %v161
                %v163 = vld [vmem:[%s151 + $0x14] sm:$0xf]
                %164 = vst [vmem:[%s152 + $0x14] sm:$0xf] %v163
                %v165 = vld [vmem:[%s151 + $0x18] sm:$0xf]
                %166 = vst [vmem:[%s152 + $0x18] sm:$0xf] %v165
                %v167 = vld [vmem:[%s151 + $0x1c] sm:$0xf]
                %168 = vst [vmem:[%s152 + $0x1c] sm:$0xf] %v167
                %v169 = vld [vmem:[%s151 + $0x20] sm:$0xf]
                %170 = vst [vmem:[%s152 + $0x20] sm:$0xf] %v169
                %v171 = vld [vmem:[%s151 + $0x24] sm:$0xf]
                %172 = vst [vmem:[%s152 + $0x24] sm:$0xf] %v171
                %v173 = vld [vmem:[%s151 + $0xc8] sm:$0xf]
                %174 = vst [vmem:[%s152 + $0x28] sm:$0xf] %v173
                %v175 = vld [vmem:[%s151 + $0xcc] sm:$0xf]
                %176 = vst [vmem:[%s152 + $0x2c] sm:$0xf] %v175
                %v177 = vld [vmem:[%s151 + $0xd0] sm:$0xf]
                %178 = vst [vmem:[%s152 + $0x30] sm:$0xf] %v177
                %v179 = vld [vmem:[%s151 + $0xd4] sm:$0xf]
                %180 = vst [vmem:[%s152 + $0x34] sm:$0xf] %v179
                %v181 = vld [vmem:[%s151 + $0xd8] sm:$0xf]
                %182 = vst [vmem:[%s152 + $0x38] sm:$0xf] %v181
                %v183 = vld [vmem:[%s151 + $0xdc] sm:$0xf]
                %184 = vst [vmem:[%s152 + $0x3c] sm:$0xf] %v183
                %v185 = vld [vmem:[%s151 + $0xe0] sm:$0xf]
                %186 = vst [vmem:[%s152 + $0x40] sm:$0xf] %v185
                %v187 = vld [vmem:[%s151 + $0xe4] sm:$0xf]
                %188 = vst [vmem:[%s152 + $0x44] sm:$0xf] %v187
                %v189 = vld [vmem:[%s151 + $0xe8] sm:$0xf]
                %190 = vst [vmem:[%s152 + $0x48] sm:$0xf] %v189
                %v191 = vld [vmem:[%s151 + $0xec] sm:$0xf]
                %192 = vst [vmem:[%s152 + $0x4c] sm:$0xf] %v191
                %v193 = vld [vmem:[%s151 + $0x190] sm:$0xf]
                %194 = vst [vmem:[%s152 + $0x50] sm:$0xf] %v193
                %v195 = vld [vmem:[%s151 + $0x194] sm:$0xf]
                %196 = vst [vmem:[%s152 + $0x54] sm:$0xf] %v195
                %v197 = vld [vmem:[%s151 + $0x198] sm:$0xf]
                %198 = vst [vmem:[%s152 + $0x58] sm:$0xf] %v197
                %v199 = vld [vmem:[%s151 + $0x19c] sm:$0xf]
                %200 = vst [vmem:[%s152 + $0x5c] sm:$0xf] %v199
                %v201 = vld [vmem:[%s151 + $0x1a0] sm:$0xf]
                %202 = vst [vmem:[%s152 + $0x60] sm:$0xf] %v201
                %v203 = vld [vmem:[%s151 + $0x1a4] sm:$0xf]
                %204 = vst [vmem:[%s152 + $0x64] sm:$0xf] %v203
                %v205 = vld [vmem:[%s151 + $0x1a8] sm:$0xf]
                %206 = vst [vmem:[%s152 + $0x68] sm:$0xf] %v205
                %v207 = vld [vmem:[%s151 + $0x1ac] sm:$0xf]
                %208 = vst [vmem:[%s152 + $0x6c] sm:$0xf] %v207
                %v209 = vld [vmem:[%s151 + $0x1b0] sm:$0xf]
                %210 = vst [vmem:[%s152 + $0x70] sm:$0xf] %v209
                %v211 = vld [vmem:[%s151 + $0x1b4] sm:$0xf]
                %212 = vst [vmem:[%s152 + $0x74] sm:$0xf] %v211
                %v213 = vld [vmem:[%s151 + $0x258] sm:$0xf]
                %214 = vst [vmem:[%s152 + $0x78] sm:$0xf] %v213
                %v215 = vld [vmem:[%s151 + $0x25c] sm:$0xf]
                %216 = vst [vmem:[%s152 + $0x7c] sm:$0xf] %v215
                %v217 = vld [vmem:[%s151 + $0x260] sm:$0xf]
                %218 = vst [vmem:[%s152 + $0x80] sm:$0xf] %v217
                %v219 = vld [vmem:[%s151 + $0x264] sm:$0xf]
                %220 = vst [vmem:[%s152 + $0x84] sm:$0xf] %v219
                %v221 = vld [vmem:[%s151 + $0x268] sm:$0xf]
                %222 = vst [vmem:[%s152 + $0x88] sm:$0xf] %v221
                %v223 = vld [vmem:[%s151 + $0x26c] sm:$0xf]
                %224 = vst [vmem:[%s152 + $0x8c] sm:$0xf] %v223
                %v225 = vld [vmem:[%s151 + $0x270] sm:$0xf]
                %226 = vst [vmem:[%s152 + $0x90] sm:$0xf] %v225
                %v227 = vld [vmem:[%s151 + $0x274] sm:$0xf]
                %228 = vst [vmem:[%s152 + $0x94] sm:$0xf] %v227
                %v229 = vld [vmem:[%s151 + $0x278] sm:$0xf]
                %230 = vst [vmem:[%s152 + $0x98] sm:$0xf] %v229
                %v231 = vld [vmem:[%s151 + $0x27c] sm:$0xf]
                %232 = vst [vmem:[%s152 + $0x9c] sm:$0xf] %v231
              $region45: #{net_forward.3} parent=39 // loop_footer
                %s150 = sadd.s32 1, %s146
              $region46: #{net_forward.3} parent=39 // loop_footer_branch
                %145 = sbr.rel target = $region42
              $region47: #{net_forward.3} parent=39 // loop_exit
                _
            $region40: #{net_forward.3} parent=31 // pred_fallthru
              _
          $region32: #{net_forward.3} parent=27 // pred_fallthru
            _
          %332 = vnop
        $region28: #{net_forward.3} parent=23 // pred_fallthru
          _
      $region24: #{net_forward.3} parent=5 // pred_fallthru
        _
      %p333 = scmp.le.s32.totalorder 1, %s9
      %p334 = scmp.lt.s32.totalorder %s9, 6
      %p335 = pnand %p333, %p334
      %p336 = pneg %p335
      // Predicated region
      $region66: #{net_forward.3} parent=5 // pred_check
        _
      $region67: #{net_forward.3} parent=5 // pred_check_branch
        %338 = sbr.rel (%p335) target = $region69
      $region68: #{net_forward.3} parent=5 // pred_region
        %s339 = ssub.s32 %s9, 1
        %s340 = sand.u32 %s22, 1
        %s341 = sand.u32 %s22, 1
        %s342 = smul.addr %s341, 160
        %s343 = scalar_lea.vmem [#allocation2], %s342
        // Predicated region
        $region70: #{net_forward.3} parent=68 // pred_check
          %p344 = pneg %p35
        $region71: #{net_forward.3} parent=68 // pred_check_branch
          %346 = sbr.rel (%p344) target = $region73
        $region72: #{net_forward.3} parent=68 // pred_region
          _
        $region73: #{net_forward.3} parent=68 // pred_fallthru
          _
        %s347 = sand.u32 %s22, 1
        %s348 = sand.u32 %s22, 1
        %s349 = smul.addr %s348, 160
        %s350 = scalar_lea.vmem [#allocation2], %s349
        %p351 = pneg %p35
        %p352 = pneg %p32
        %p353 = pneg %p56
        %p354 = pneg %p53
        %p355 = pneg %p77
        %p356 = pneg %p74
        %p357 = pneg %p103
        %p358 = pneg %p100
        %s359 = smul.u32 10, %s14
        %p360 = scmp.lt.s32.totalorder %s359, 49
        %s361 = scalar_select %p360, %s359, 49
        %s362 = smul.addr %s361, 4
        %s363 = scalar_lea.vmem %s3, %s362
        %s364 = smul.u32 10, %s14
        %s365 = smul.u32 10, %s14
        %p366 = scmp.lt.s32.totalorder %s365, 49
        %s367 = scalar_select %p366, %s365, 49
        %s368 = smul.addr %s367, 4
        %s369 = scalar_lea.vmem %s3, %s368
        %s370 = smul.u32 10, %s14
        %v372 = vld [vmem:[%s1] sm:$0xf]
        %v373 = vld [vmem:[%s1 + $0x4] sm:$0xf]
        %v374 = vld [vmem:[%s1 + $0x8] sm:$0xf]
        %v375 = vld [vmem:[%s1 + $0xc] sm:$0xf]
        %v376 = vld [vmem:[%s1 + $0x10] sm:$0xf]
        %v377 = vld [vmem:[%s1 + $0x14] sm:$0xf]
        %v378 = vld [vmem:[%s1 + $0x18] sm:$0xf]
        %v379 = vld [vmem:[%s1 + $0x1c] sm:$0xf]
        %v380 = vld [vmem:[%s1 + $0x20] sm:$0xf]
        %v381 = vld [vmem:[%s1 + $0x24] sm:$0xf]
        %v382 = vld [vmem:[%s1 + $0x28] sm:$0xf]
        %v383 = vld [vmem:[%s1 + $0x2c] sm:$0xf]
        %v384 = vld [vmem:[%s1 + $0x30] sm:$0xf]
        %v385 = vld [vmem:[%s1 + $0x34] sm:$0xf]
        %v386 = vld [vmem:[%s1 + $0x38] sm:$0xf]
        %v387 = vld [vmem:[%s1 + $0x3c] sm:$0xf]
        %v388 = vld [vmem:[%s343] sm:$0xf]
        %v389 = vld [vmem:[%s343 + $0x4] sm:$0xf]
        %v390 = vld [vmem:[%s343 + $0x8] sm:$0xf]
        %v391 = vld [vmem:[%s343 + $0xc] sm:$0xf]
        %v392 = vld [vmem:[%s343 + $0x10] sm:$0xf]
        %v393 = vld [vmem:[%s343 + $0x14] sm:$0xf]
        %v394 = vld [vmem:[%s343 + $0x18] sm:$0xf]
        %v395 = vld [vmem:[%s343 + $0x1c] sm:$0xf]
        %v396 = vld [vmem:[%s343 + $0x20] sm:$0xf]
        %v397 = vld [vmem:[%s343 + $0x24] sm:$0xf]
        %v408 = vunpack.c.l.b16 %v388
        %v409 = vunpack.c.l.b16 %v389
        %v410 = vunpack.c.l.b16 %v390
        %v411 = vunpack.c.l.b16 %v391
        %v412 = vunpack.c.l.b16 %v392
        %v413 = vunpack.c.l.b16 %v393
        %v414 = vunpack.c.l.b16 %v394
        %v415 = vunpack.c.l.b16 %v395
        %v416 = vunpack.c.l.b16 %v396
        %v417 = vunpack.c.l.b16 %v397
        %v418 = vpack.c.b16 %v409, %v408
        %v419 = vpack.c.b16 %v411, %v410
        %v420 = vpack.c.b16 %v413, %v412
        %v421 = vpack.c.b16 %v415, %v414
        %v422 = vpack.c.b16 %v417, %v416
        %v444 = vunpack.c.l.b16 %v372
        %v445 = vunpack.c.l.b16 %v373
        %v446 = vunpack.c.l.b16 %v374
        %v447 = vunpack.c.l.b16 %v375
        %v448 = vunpack.c.l.b16 %v376
        %v449 = vunpack.c.l.b16 %v377
        %v450 = vunpack.c.l.b16 %v378
        %v451 = vunpack.c.l.b16 %v379
        %v452 = vunpack.c.l.b16 %v380
        %v453 = vunpack.c.l.b16 %v381
        %v454 = vunpack.c.l.b16 %v382
        %v455 = vunpack.c.l.b16 %v383
        %v456 = vunpack.c.l.b16 %v384
        %v457 = vunpack.c.l.b16 %v385
        %v458 = vunpack.c.l.b16 %v386
        %v459 = vunpack.c.l.b16 %v387
        %v460 = vpack.c.b16 %v445, %v444
        %v461 = vpack.c.b16 %v447, %v446
        %v462 = vpack.c.b16 %v449, %v448
        %v463 = vpack.c.b16 %v451, %v450
        %v464 = vpack.c.b16 %v453, %v452
        %v465 = vpack.c.b16 %v455, %v454
        %v466 = vpack.c.b16 %v457, %v456
        %v467 = vpack.c.b16 %v459, %v458
        %476 = vmatprep.subr.bf16.mxu0 0
        %477 = vmatpush1.bf16.msra.mxu0 %v460
        %478 = vmatprep.subr.bf16.mxu0 0
        %479 = vmatpush1.bf16.msra.mxu0 %v461
        %480 = vmatprep.subr.bf16.mxu0 0
        %481 = vmatpush1.bf16.msra.mxu0 %v462
        %482 = vmatprep.subr.bf16.mxu0 0
        %483 = vmatpush1.bf16.msra.mxu0 %v463
        %484 = vmatprep.subr.bf16.mxu0 0
        %485 = vmatpush1.bf16.msra.mxu0 %v464
        %486 = vmatprep.subr.bf16.mxu0 0
        %487 = vmatpush1.bf16.msra.mxu0 %v465
        %488 = vmatprep.subr.bf16.mxu0 0
        %489 = vmatpush1.bf16.msra.mxu0 %v466
        %490 = vmatprep.subr.bf16.mxu0 0
        %491 = vmatpush1.bf16.msra.mxu0 %v467
        %492 = vmatprep.subr.bf16.mxu0 0
        %493 = vmatpush1.bf16.msra.mxu0 0
        %494 = vmatprep.subr.bf16.mxu0 0
        %495 = vmatpush1.bf16.msra.mxu0 0
        %496 = vmatprep.subr.bf16.mxu0 0
        %497 = vmatpush1.bf16.msra.mxu0 0
        %498 = vmatprep.subr.bf16.mxu0 0
        %499 = vmatpush1.bf16.msra.mxu0 0
        %500 = vmatprep.subr.bf16.mxu0 0
        %501 = vmatpush1.bf16.msra.mxu0 0
        %502 = vmatprep.subr.bf16.mxu0 0
        %503 = vmatpush1.bf16.msra.mxu0 0
        %504 = vmatprep.subr.bf16.mxu0 0
        %505 = vmatpush1.bf16.msra.mxu0 0
        %506 = vmatprep.subr.bf16.mxu0 0
        %507 = vmatpush1.bf16.msra.mxu0 0
        %508 = vmatprep.mubr.bf16.mxu0 0
        %509 = vmatmul.mubr.bf16.gmra.mrb[0].mxu0 %v418
        %v510 = vpop.f32.mrb[0].mxu0
        %v511 = vadd.f32 0.0, %v510
        %v512 = vpop.f32.mrb[0].mxu0
        %v513 = vpop.f32.mrb[0].mxu0
        %v514 = vadd.f32 0.0, %v513
        %v515 = vpop.f32.mrb[0].mxu0
        %516 = vmatprep.mubr.bf16.mxu0 0
        %517 = vmatmul.mubr.bf16.gmra.mrb[0].mxu0 %v419
        %v518 = vpop.f32.mrb[0].mxu0
        %v519 = vadd.f32 0.0, %v518
        %v520 = vpop.f32.mrb[0].mxu0
        %v521 = vpop.f32.mrb[0].mxu0
        %v522 = vadd.f32 0.0, %v521
        %v523 = vpop.f32.mrb[0].mxu0
        %524 = vmatprep.mubr.bf16.mxu0 0
        %525 = vmatmul.mubr.bf16.gmra.mrb[0].mxu0 %v420
        %v526 = vpop.f32.mrb[0].mxu0
        %v527 = vadd.f32 0.0, %v526
        %v528 = vpop.f32.mrb[0].mxu0
        %v529 = vpop.f32.mrb[0].mxu0
        %v530 = vadd.f32 0.0, %v529
        %v531 = vpop.f32.mrb[0].mxu0
        %532 = vmatprep.mubr.bf16.mxu0 0
        %533 = vmatmul.mubr.bf16.gmra.mrb[0].mxu0 %v421
        %v534 = vpop.f32.mrb[0].mxu0
        %v535 = vadd.f32 0.0, %v534
        %v536 = vpop.f32.mrb[0].mxu0
        %v537 = vpop.f32.mrb[0].mxu0
        %v538 = vadd.f32 0.0, %v537
        %v539 = vpop.f32.mrb[0].mxu0
        %540 = vmatprep.mubr.bf16.mxu0 0
        %541 = vmatmul.mubr.bf16.gmra.mrb[0].mxu0 %v422
        %v542 = vpop.f32.mrb[0].mxu0
        %v543 = vadd.f32 0.0, %v542
        %v544 = vpop.f32.mrb[0].mxu0
        %v545 = vpop.f32.mrb[0].mxu0
        %v546 = vadd.f32 0.0, %v545
        %v547 = vpop.f32.mrb[0].mxu0
        %548 = vdwg.mxu0
        %s549 = scalar_lea.vmem %s343, 40 [#allocation2]
        %v550 = vld [vmem:[%s549] sm:$0xf]
        %v551 = vld [vmem:[%s549 + $0x4] sm:$0xf]
        %v552 = vld [vmem:[%s549 + $0x8] sm:$0xf]
        %v553 = vld [vmem:[%s549 + $0xc] sm:$0xf]
        %v554 = vld [vmem:[%s549 + $0x10] sm:$0xf]
        %v555 = vld [vmem:[%s549 + $0x14] sm:$0xf]
        %v556 = vld [vmem:[%s549 + $0x18] sm:$0xf]
        %v557 = vld [vmem:[%s549 + $0x1c] sm:$0xf]
        %v558 = vld [vmem:[%s549 + $0x20] sm:$0xf]
        %v559 = vld [vmem:[%s549 + $0x24] sm:$0xf]
        %v570 = vunpack.c.l.b16 %v550
        %v571 = vunpack.c.l.b16 %v551
        %v572 = vunpack.c.l.b16 %v552
        %v573 = vunpack.c.l.b16 %v553
        %v574 = vunpack.c.l.b16 %v554
        %v575 = vunpack.c.l.b16 %v555
        %v576 = vunpack.c.l.b16 %v556
        %v577 = vunpack.c.l.b16 %v557
        %v578 = vunpack.c.l.b16 %v558
        %v579 = vunpack.c.l.b16 %v559
        %v580 = vpack.c.b16 %v571, %v570
        %v581 = vpack.c.b16 %v573, %v572
        %v582 = vpack.c.b16 %v575, %v574
        %v583 = vpack.c.b16 %v577, %v576
        %v584 = vpack.c.b16 %v579, %v578
        %590 = vmatprep.subr.bf16.mxu0 0
        %591 = vmatpush1.bf16.msra.mxu0 %v460
        %592 = vmatprep.subr.bf16.mxu0 0
        %593 = vmatpush1.bf16.msra.mxu0 %v461
        %594 = vmatprep.subr.bf16.mxu0 0
        %595 = vmatpush1.bf16.msra.mxu0 %v462
        %596 = vmatprep.subr.bf16.mxu0 0
        %597 = vmatpush1.bf16.msra.mxu0 %v463
        %598 = vmatprep.subr.bf16.mxu0 0
        %599 = vmatpush1.bf16.msra.mxu0 %v464
        %600 = vmatprep.subr.bf16.mxu0 0
        %601 = vmatpush1.bf16.msra.mxu0 %v465
        %602 = vmatprep.subr.bf16.mxu0 0
        %603 = vmatpush1.bf16.msra.mxu0 %v466
        %604 = vmatprep.subr.bf16.mxu0 0
        %605 = vmatpush1.bf16.msra.mxu0 %v467
        %606 = vmatprep.subr.bf16.mxu0 0
        %607 = vmatpush1.bf16.msra.mxu0 0
        %608 = vmatprep.subr.bf16.mxu0 0
        %609 = vmatpush1.bf16.msra.mxu0 0
        %610 = vmatprep.subr.bf16.mxu0 0
        %611 = vmatpush1.bf16.msra.mxu0 0
        %612 = vmatprep.subr.bf16.mxu0 0
        %613 = vmatpush1.bf16.msra.mxu0 0
        %614 = vmatprep.subr.bf16.mxu0 0
        %615 = vmatpush1.bf16.msra.mxu0 0
        %616 = vmatprep.subr.bf16.mxu0 0
        %617 = vmatpush1.bf16.msra.mxu0 0
        %618 = vmatprep.subr.bf16.mxu0 0
        %619 = vmatpush1.bf16.msra.mxu0 0
        %620 = vmatprep.subr.bf16.mxu0 0
        %621 = vmatpush1.bf16.msra.mxu0 0
        %622 = vmatprep.mubr.bf16.mxu0 0
        %623 = vmatmul.mubr.bf16.gmra.mrb[0].mxu0 %v580
        %v624 = vpop.f32.mrb[0].mxu0
        %v625 = vadd.f32 0.0, %v624
        %v626 = vpop.f32.mrb[0].mxu0
        %v627 = vpop.f32.mrb[0].mxu0
        %v628 = vadd.f32 0.0, %v627
        %v629 = vpop.f32.mrb[0].mxu0
        %630 = vmatprep.mubr.bf16.mxu0 0
        %631 = vmatmul.mubr.bf16.gmra.mrb[0].mxu0 %v581
        %v632 = vpop.f32.mrb[0].mxu0
        %v633 = vadd.f32 0.0, %v632
        %v634 = vpop.f32.mrb[0].mxu0
        %v635 = vpop.f32.mrb[0].mxu0
        %v636 = vadd.f32 0.0, %v635
        %v637 = vpop.f32.mrb[0].mxu0
        %638 = vmatprep.mubr.bf16.mxu0 0
        %639 = vmatmul.mubr.bf16.gmra.mrb[0].mxu0 %v582
        %v640 = vpop.f32.mrb[0].mxu0
        %v641 = vadd.f32 0.0, %v640
        %v642 = vpop.f32.mrb[0].mxu0
        %v643 = vpop.f32.mrb[0].mxu0
        %v644 = vadd.f32 0.0, %v643
        %v645 = vpop.f32.mrb[0].mxu0
        %646 = vmatprep.mubr.bf16.mxu0 0
        %647 = vmatmul.mubr.bf16.gmra.mrb[0].mxu0 %v583
        %v648 = vpop.f32.mrb[0].mxu0
        %v649 = vadd.f32 0.0, %v648
        %v650 = vpop.f32.mrb[0].mxu0
        %v651 = vpop.f32.mrb[0].mxu0
        %v652 = vadd.f32 0.0, %v651
        %v653 = vpop.f32.mrb[0].mxu0
        %654 = vmatprep.mubr.bf16.mxu0 0
        %655 = vmatmul.mubr.bf16.gmra.mrb[0].mxu0 %v584
        %v656 = vpop.f32.mrb[0].mxu0
        %v657 = vadd.f32 0.0, %v656
        %v658 = vpop.f32.mrb[0].mxu0
        %v659 = vpop.f32.mrb[0].mxu0
        %v660 = vadd.f32 0.0, %v659
        %v661 = vpop.f32.mrb[0].mxu0
        %662 = vdwg.mxu0
        %s663 = scalar_lea.vmem %s343, 80 [#allocation2]
        %v664 = vld [vmem:[%s663] sm:$0xf]
        %v665 = vld [vmem:[%s663 + $0x4] sm:$0xf]
        %v666 = vld [vmem:[%s663 + $0x8] sm:$0xf]
        %v667 = vld [vmem:[%s663 + $0xc] sm:$0xf]
        %v668 = vld [vmem:[%s663 + $0x10] sm:$0xf]
        %v669 = vld [vmem:[%s663 + $0x14] sm:$0xf]
        %v670 = vld [vmem:[%s663 + $0x18] sm:$0xf]
        %v671 = vld [vmem:[%s663 + $0x1c] sm:$0xf]
        %v672 = vld [vmem:[%s663 + $0x20] sm:$0xf]
        %v673 = vld [vmem:[%s663 + $0x24] sm:$0xf]
        %v684 = vunpack.c.l.b16 %v664
        %v685 = vunpack.c.l.b16 %v665
        %v686 = vunpack.c.l.b16 %v666
        %v687 = vunpack.c.l.b16 %v667
        %v688 = vunpack.c.l.b16 %v668
        %v689 = vunpack.c.l.b16 %v669
        %v690 = vunpack.c.l.b16 %v670
        %v691 = vunpack.c.l.b16 %v671
        %v692 = vunpack.c.l.b16 %v672
        %v693 = vunpack.c.l.b16 %v673
        %v694 = vpack.c.b16 %v685, %v684
        %v695 = vpack.c.b16 %v687, %v686
        %v696 = vpack.c.b16 %v689, %v688
        %v697 = vpack.c.b16 %v691, %v690
        %v698 = vpack.c.b16 %v693, %v692
        %704 = vmatprep.subr.bf16.mxu0 0
        %705 = vmatpush1.bf16.msra.mxu0 %v460
        %706 = vmatprep.subr.bf16.mxu0 0
        %707 = vmatpush1.bf16.msra.mxu0 %v461
        %708 = vmatprep.subr.bf16.mxu0 0
        %709 = vmatpush1.bf16.msra.mxu0 %v462
        %710 = vmatprep.subr.bf16.mxu0 0
        %711 = vmatpush1.bf16.msra.mxu0 %v463
        %712 = vmatprep.subr.bf16.mxu0 0
        %713 = vmatpush1.bf16.msra.mxu0 %v464
        %714 = vmatprep.subr.bf16.mxu0 0
        %715 = vmatpush1.bf16.msra.mxu0 %v465
        %716 = vmatprep.subr.bf16.mxu0 0
        %717 = vmatpush1.bf16.msra.mxu0 %v466
        %718 = vmatprep.subr.bf16.mxu0 0
        %719 = vmatpush1.bf16.msra.mxu0 %v467
        %720 = vmatprep.subr.bf16.mxu0 0
        %721 = vmatpush1.bf16.msra.mxu0 0
        %722 = vmatprep.subr.bf16.mxu0 0
        %723 = vmatpush1.bf16.msra.mxu0 0
        %724 = vmatprep.subr.bf16.mxu0 0
        %725 = vmatpush1.bf16.msra.mxu0 0
        %726 = vmatprep.subr.bf16.mxu0 0
        %727 = vmatpush1.bf16.msra.mxu0 0
        %728 = vmatprep.subr.bf16.mxu0 0
        %729 = vmatpush1.bf16.msra.mxu0 0
        %730 = vmatprep.subr.bf16.mxu0 0
        %731 = vmatpush1.bf16.msra.mxu0 0
        %732 = vmatprep.subr.bf16.mxu0 0
        %733 = vmatpush1.bf16.msra.mxu0 0
        %734 = vmatprep.subr.bf16.mxu0 0
        %735 = vmatpush1.bf16.msra.mxu0 0
        %736 = vmatprep.mubr.bf16.mxu0 0
        %737 = vmatmul.mubr.bf16.gmra.mrb[0].mxu0 %v694
        %v738 = vpop.f32.mrb[0].mxu0
        %v739 = vadd.f32 0.0, %v738
        %v740 = vpop.f32.mrb[0].mxu0
        %v741 = vpop.f32.mrb[0].mxu0
        %v742 = vadd.f32 0.0, %v741
        %v743 = vpop.f32.mrb[0].mxu0
        %744 = vmatprep.mubr.bf16.mxu0 0
        %745 = vmatmul.mubr.bf16.gmra.mrb[0].mxu0 %v695
        %v746 = vpop.f32.mrb[0].mxu0
        %v747 = vadd.f32 0.0, %v746
        %v748 = vpop.f32.mrb[0].mxu0
        %v749 = vpop.f32.mrb[0].mxu0
        %v750 = vadd.f32 0.0, %v749
        %v751 = vpop.f32.mrb[0].mxu0
        %752 = vmatprep.mubr.bf16.mxu0 0
        %753 = vmatmul.mubr.bf16.gmra.mrb[0].mxu0 %v696
        %v754 = vpop.f32.mrb[0].mxu0
        %v755 = vadd.f32 0.0, %v754
        %v756 = vpop.f32.mrb[0].mxu0
        %v757 = vpop.f32.mrb[0].mxu0
        %v758 = vadd.f32 0.0, %v757
        %v759 = vpop.f32.mrb[0].mxu0
        %760 = vmatprep.mubr.bf16.mxu0 0
        %761 = vmatmul.mubr.bf16.gmra.mrb[0].mxu0 %v697
        %v762 = vpop.f32.mrb[0].mxu0
        %v763 = vadd.f32 0.0, %v762
        %v764 = vpop.f32.mrb[0].mxu0
        %v765 = vpop.f32.mrb[0].mxu0
        %v766 = vadd.f32 0.0, %v765
        %v767 = vpop.f32.mrb[0].mxu0
        %768 = vmatprep.mubr.bf16.mxu0 0
        %769 = vmatmul.mubr.bf16.gmra.mrb[0].mxu0 %v698
        %v770 = vpop.f32.mrb[0].mxu0
        %v771 = vadd.f32 0.0, %v770
        %v772 = vpop.f32.mrb[0].mxu0
        %v773 = vpop.f32.mrb[0].mxu0
        %v774 = vadd.f32 0.0, %v773
        %v775 = vpop.f32.mrb[0].mxu0
        %776 = vdwg.mxu0
        %s777 = scalar_lea.vmem %s343, 120 [#allocation2]
        %v778 = vld [vmem:[%s777] sm:$0xf]
        %v779 = vld [vmem:[%s777 + $0x4] sm:$0xf]
        %v780 = vld [vmem:[%s777 + $0x8] sm:$0xf]
        %v781 = vld [vmem:[%s777 + $0xc] sm:$0xf]
        %v782 = vld [vmem:[%s777 + $0x10] sm:$0xf]
        %v783 = vld [vmem:[%s777 + $0x14] sm:$0xf]
        %v784 = vld [vmem:[%s777 + $0x18] sm:$0xf]
        %v785 = vld [vmem:[%s777 + $0x1c] sm:$0xf]
        %v786 = vld [vmem:[%s777 + $0x20] sm:$0xf]
        %v787 = vld [vmem:[%s777 + $0x24] sm:$0xf]
        %v798 = vunpack.c.l.b16 %v778
        %v799 = vunpack.c.l.b16 %v779
        %v800 = vunpack.c.l.b16 %v780
        %v801 = vunpack.c.l.b16 %v781
        %v802 = vunpack.c.l.b16 %v782
        %v803 = vunpack.c.l.b16 %v783
        %v804 = vunpack.c.l.b16 %v784
        %v805 = vunpack.c.l.b16 %v785
        %v806 = vunpack.c.l.b16 %v786
        %v807 = vunpack.c.l.b16 %v787
        %v808 = vpack.c.b16 %v799, %v798
        %v809 = vpack.c.b16 %v801, %v800
        %v810 = vpack.c.b16 %v803, %v802
        %v811 = vpack.c.b16 %v805, %v804
        %v812 = vpack.c.b16 %v807, %v806
        %818 = vmatprep.subr.bf16.mxu0 0
        %819 = vmatpush1.bf16.msra.mxu0 %v460
        %820 = vmatprep.subr.bf16.mxu0 0
        %821 = vmatpush1.bf16.msra.mxu0 %v461
        %822 = vmatprep.subr.bf16.mxu0 0
        %823 = vmatpush1.bf16.msra.mxu0 %v462
        %824 = vmatprep.subr.bf16.mxu0 0
        %825 = vmatpush1.bf16.msra.mxu0 %v463
        %826 = vmatprep.subr.bf16.mxu0 0
        %827 = vmatpush1.bf16.msra.mxu0 %v464
        %828 = vmatprep.subr.bf16.mxu0 0
        %829 = vmatpush1.bf16.msra.mxu0 %v465
        %830 = vmatprep.subr.bf16.mxu0 0
        %831 = vmatpush1.bf16.msra.mxu0 %v466
        %832 = vmatprep.subr.bf16.mxu0 0
        %833 = vmatpush1.bf16.msra.mxu0 %v467
        %834 = vmatprep.subr.bf16.mxu0 0
        %835 = vmatpush1.bf16.msra.mxu0 0
        %836 = vmatprep.subr.bf16.mxu0 0
        %837 = vmatpush1.bf16.msra.mxu0 0
        %838 = vmatprep.subr.bf16.mxu0 0
        %839 = vmatpush1.bf16.msra.mxu0 0
        %840 = vmatprep.subr.bf16.mxu0 0
        %841 = vmatpush1.bf16.msra.mxu0 0
        %842 = vmatprep.subr.bf16.mxu0 0
        %843 = vmatpush1.bf16.msra.mxu0 0
        %844 = vmatprep.subr.bf16.mxu0 0
        %845 = vmatpush1.bf16.msra.mxu0 0
        %846 = vmatprep.subr.bf16.mxu0 0
        %847 = vmatpush1.bf16.msra.mxu0 0
        %848 = vmatprep.subr.bf16.mxu0 0
        %849 = vmatpush1.bf16.msra.mxu0 0
        %850 = vmatprep.mubr.bf16.mxu0 0
        %851 = vmatmul.mubr.bf16.gmra.mrb[0].mxu0 %v808
        %v852 = vpop.f32.mrb[0].mxu0
        %v853 = vadd.f32 0.0, %v852
        %v854 = vpop.f32.mrb[0].mxu0
        %v855 = vpop.f32.mrb[0].mxu0
        %v856 = vadd.f32 0.0, %v855
        %v857 = vpop.f32.mrb[0].mxu0
        %858 = vmatprep.mubr.bf16.mxu0 0
        %859 = vmatmul.mubr.bf16.gmra.mrb[0].mxu0 %v809
        %v860 = vpop.f32.mrb[0].mxu0
        %v861 = vadd.f32 0.0, %v860
        %v862 = vpop.f32.mrb[0].mxu0
        %v863 = vpop.f32.mrb[0].mxu0
        %v864 = vadd.f32 0.0, %v863
        %v865 = vpop.f32.mrb[0].mxu0
        %866 = vmatprep.mubr.bf16.mxu0 0
        %867 = vmatmul.mubr.bf16.gmra.mrb[0].mxu0 %v810
        %v868 = vpop.f32.mrb[0].mxu0
        %v869 = vadd.f32 0.0, %v868
        %v870 = vpop.f32.mrb[0].mxu0
        %v871 = vpop.f32.mrb[0].mxu0
        %v872 = vadd.f32 0.0, %v871
        %v873 = vpop.f32.mrb[0].mxu0
        %874 = vmatprep.mubr.bf16.mxu0 0
        %875 = vmatmul.mubr.bf16.gmra.mrb[0].mxu0 %v811
        %v876 = vpop.f32.mrb[0].mxu0
        %v877 = vadd.f32 0.0, %v876
        %v878 = vpop.f32.mrb[0].mxu0
        %v879 = vpop.f32.mrb[0].mxu0
        %v880 = vadd.f32 0.0, %v879
        %v881 = vpop.f32.mrb[0].mxu0
        %882 = vmatprep.mubr.bf16.mxu0 0
        %883 = vmatmul.mubr.bf16.gmra.mrb[0].mxu0 %v812
        %v884 = vpop.f32.mrb[0].mxu0
        %v885 = vadd.f32 0.0, %v884
        %v886 = vpop.f32.mrb[0].mxu0
        %v887 = vpop.f32.mrb[0].mxu0
        %v888 = vadd.f32 0.0, %v887
        %v889 = vpop.f32.mrb[0].mxu0
        %890 = vdwg.mxu0
        %v891 = vmax.f32 %v511, %v625
        %v892 = vmax.f32 %v514, %v628
        %v893 = vmax.f32 %v519, %v633
        %v894 = vmax.f32 %v522, %v636
        %v895 = vmax.f32 %v527, %v641
        %v896 = vmax.f32 %v530, %v644
        %v897 = vmax.f32 %v535, %v649
        %v898 = vmax.f32 %v538, %v652
        %v899 = vmax.f32 %v543, %v657
        %v900 = vmax.f32 %v546, %v660
        %v901 = vmax.f32 %v739, %v853
        %v902 = vmax.f32 %v742, %v856
        %v903 = vmax.f32 %v747, %v861
        %v904 = vmax.f32 %v750, %v864
        %v905 = vmax.f32 %v755, %v869
        %v906 = vmax.f32 %v758, %v872
        %v907 = vmax.f32 %v763, %v877
        %v908 = vmax.f32 %v766, %v880
        %v909 = vmax.f32 %v771, %v885
        %v910 = vmax.f32 %v774, %v888
        %v911 = vmax.f32 %v891, %v901
        %v912 = vmax.f32 %v892, %v902
        %v913 = vmax.f32 %v893, %v903
        %v914 = vmax.f32 %v894, %v904
        %v915 = vmax.f32 %v895, %v905
        %v916 = vmax.f32 %v896, %v906
        %v917 = vmax.f32 %v897, %v907
        %v918 = vmax.f32 %v898, %v908
        %v919 = vmax.f32 %v899, %v909
        %v920 = vmax.f32 %v900, %v910
        %v921 = vld [vmem:[%s2] sm:$0x1]
        %v923 = vlaneseq
        %v924 = vshrl.u32 %v923, 7
        %v925 = vsub.s32 0, %v924
        %v926 = vrot.slane %v921, %v925
        %v928 = vadd.f32 %v911, %v926
        %v929 = vadd.f32 %v912, %v926
        %v930 = vadd.f32 %v913, %v926
        %v931 = vadd.f32 %v914, %v926
        %v932 = vadd.f32 %v915, %v926
        %v933 = vadd.f32 %v916, %v926
        %v934 = vadd.f32 %v917, %v926
        %v935 = vadd.f32 %v918, %v926
        %v936 = vadd.f32 %v919, %v926
        %v937 = vadd.f32 %v920, %v926
        %v938 = vmax.f32 %v928, 0.0
        %v939 = vmax.f32 %v929, 0.0
        %v940 = vmax.f32 %v930, 0.0
        %v941 = vmax.f32 %v931, 0.0
        %v942 = vmax.f32 %v932, 0.0
        %v943 = vmax.f32 %v933, 0.0
        %v944 = vmax.f32 %v934, 0.0
        %v945 = vmax.f32 %v935, 0.0
        %v946 = vmax.f32 %v936, 0.0
        %v947 = vmax.f32 %v937, 0.0
        %v948 = vpack.c.bf16 %v939, %v938
        %v949 = vpack.c.bf16 %v941, %v940
        %v950 = vpack.c.bf16 %v943, %v942
        %v951 = vpack.c.bf16 %v945, %v944
        %v952 = vpack.c.bf16 %v947, %v946
        %v958 = vunpack.c.l.b16 %v948
        %v959 = vunpack.c.h.b16 %v948
        %v960 = vunpack.c.l.b16 %v949
        %v961 = vunpack.c.h.b16 %v949
        %v962 = vunpack.c.l.b16 %v950
        %v963 = vunpack.c.h.b16 %v950
        %v964 = vunpack.c.l.b16 %v951
        %v965 = vunpack.c.h.b16 %v951
        %v966 = vunpack.c.l.b16 %v952
        %v967 = vunpack.c.h.b16 %v952
        %v968 = vpack.c.b16 %v958, %v958
        %v969 = vpack.c.b16 %v959, %v959
        %v970 = vpack.c.b16 %v960, %v960
        %v971 = vpack.c.b16 %v961, %v961
        %v972 = vpack.c.b16 %v962, %v962
        %v973 = vpack.c.b16 %v963, %v963
        %v974 = vpack.c.b16 %v964, %v964
        %v975 = vpack.c.b16 %v965, %v965
        %v976 = vpack.c.b16 %v966, %v966
        %v977 = vpack.c.b16 %v967, %v967
        %988 = vst [vmem:[%s369] sm:$0xf] %v968
        %989 = vst [vmem:[%s369 + $0x4] sm:$0xf] %v969
        %990 = vst [vmem:[%s369 + $0x8] sm:$0xf] %v970
        %991 = vst [vmem:[%s369 + $0xc] sm:$0xf] %v971
        %992 = vst [vmem:[%s369 + $0x10] sm:$0xf] %v972
        %993 = vst [vmem:[%s369 + $0x14] sm:$0xf] %v973
        %994 = vst [vmem:[%s369 + $0x18] sm:$0xf] %v974
        %995 = vst [vmem:[%s369 + $0x1c] sm:$0xf] %v975
        %996 = vst [vmem:[%s369 + $0x20] sm:$0xf] %v976
        %997 = vst [vmem:[%s369 + $0x24] sm:$0xf] %v977
        %s998 = smul.u32 10, %s14
        %p999 = scmp.lt.s32.totalorder %s998, 49
        %s1000 = scalar_select %p999, %s998, 49
        %s1001 = smul.addr %s1000, 4
        %s1002 = scalar_lea.vmem %s3, %s1001
        // Predicated region
        $region74: #{net_forward.3} parent=68 // pred_check
          %p1003 = pneg %p100
        $region75: #{net_forward.3} parent=68 // pred_check_branch
          %1005 = sbr.rel (%p1003) target = $region77
        $region76: #{net_forward.3} parent=68 // pred_region
          %s1006 = smul.u32 10, %s14
        $region77: #{net_forward.3} parent=68 // pred_fallthru
          _
      $region69: #{net_forward.3} parent=5 // pred_fallthru
        _
      %p1007 = scmp.le.s32.totalorder 2, %s9
      // Predicated region
      $region78: #{net_forward.3} parent=5 // pred_check
        %p1008 = pneg %p1007
      $region79: #{net_forward.3} parent=5 // pred_check_branch
        %1010 = sbr.rel (%p1008) target = $region81
      $region80: #{net_forward.3} parent=5 // pred_region
        %s1011 = ssub.s32 %s9, 2
        // Predicated region
        $region82: #{net_forward.3} parent=80 // pred_check
          %p1012 = pneg %p106
        $region83: #{net_forward.3} parent=80 // pred_check_branch
          %1014 = sbr.rel (%p1012) target = $region85
        $region84: #{net_forward.3} parent=80 // pred_region
          %s1015 = smul.u32 10, %s15
          %p1016 = scmp.lt.s32.totalorder %s1015, 49
          %s1017 = scalar_select %p1016, %s1015, 49
          %s1018 = smul.addr %s1017, 4
          %s1019 = scalar_lea.vmem %s3, %s1018
        $region85: #{net_forward.3} parent=80 // pred_fallthru
          _
      $region81: #{net_forward.3} parent=5 // pred_fallthru
        _
    $region6: #{net_forward.3} parent=1 // loop_footer
      %s13 = sadd.s32 1, %s9
    $region7: #{net_forward.3} parent=1 // loop_footer_branch
      %8 = sbr.rel target = $region3
    $region8: #{net_forward.3} parent=1 // loop_exit
      _

// kernel: net_forward.4
$region0: #{net_forward.4}
  #allocation0 [shape = 'u32[]', space=smem, size = 0x4, offset = 0x4, fixed_abs, tag = 'smem constant byte address 0x4 - core index']
  #allocation1 [shape = 'u32[144,128]{1,0:T(1,128)}', space=vmem, size = 0x12000, scoped, tag = 'internal scratch']
  %s0 = inlined_call_operand.vmem [shape: bf16[4,64,256], index: 0, kind: input, shape index: {}]
  %s1 = inlined_call_operand.vmem [shape: bf16[256,128], index: 1, kind: input, shape index: {}]
  %s2 = inlined_call_operand.vmem [shape: f32[1,128], index: 2, kind: input, shape index: {}]
  %s3 = inlined_call_operand.vmem [shape: bf16[64,128], index: 3, kind: output, shape index: {}]
  %s4 = sld [smem:[#allocation0]]
  $region83: #{net_forward.4} parent=0
    _
  %s6 = ssub.s32 1, %s4
  %s7 = scalar_select 0, %s6, %s4
  $region1: #{net_forward.4} parent=0
    #allocation2 [shape = 'u8[131072]{0}', space=vmem, size = 0x20000, scoped, tag = 'input window, operand 0']
    loop: start=0, step=1, limit=4
    $region2: #{net_forward.4} parent=1 // loop_pre_header
      _
    $region3: #{net_forward.4} parent=1 // loop_header
      %s9 = sphi 0, %s13
      %p10 = scmp.ge.s32.totalorder %s9, 4
      %s19 = sphi 0, %s21
      %s22 = sphi 0, %s19
      %s23 = sphi 0, %s22
      %s39 = sphi 0, %s23
      %s43 = sphi 0, %s43
      %s45 = sphi 0, %s43
      %s46 = sphi 0, %s45
      %s60 = sphi 0, %s46
      %s64 = sphi 0, %s64
      %s66 = sphi 0, %s64
      %s67 = sphi 0, %s66
      %s81 = sphi 0, %s67
      %s87 = sphi 0, %s89
      %s90 = sphi 0, %s87
      %s91 = sphi 0, %s90
      %s107 = sphi 0, %s91
    $region4: #{net_forward.4} parent=1 // loop_header_branch
      %12 = sbr.rel (%p10) target = $region8
    $region5: #{net_forward.4} parent=1 // loop_body
      %s14 = ssub.s32 %s9, 1
      %s15 = ssub.s32 %s9, 2
      %s16 = sadd.s32 %s9, 1
      %s17 = ssub.s32 %s9, %s16
      %p18 = scmp.eq.s32.totalorder %s17, 0
      %s20 = sadd.s32 %s19, 1
      %s21 = scalar_select %p18, %s19, %s20
      %p24 = pneg %p18
      %p25 = scmp.eq.s32.totalorder %s9, 1
      %p26 = por %p24, %p25
      %p27 = scmp.ne.s32.totalorder %s19, %s22
      %p28 = scmp.eq.s32.totalorder %s9, 0
      %p29 = por %p27, %p28
      %p30 = scmp.ne.s32.totalorder %s19, %s22
      %p31 = scmp.eq.s32.totalorder %s14, 1
      %p32 = por %p30, %p31
      %p33 = scmp.ne.s32.totalorder %s22, %s23
      %p34 = scmp.eq.s32.totalorder %s14, 0
      %p35 = por %p33, %p34
      %p36 = scmp.ne.s32.totalorder %s22, %s23
      %p37 = scmp.eq.s32.totalorder %s15, 1
      %p38 = por %p36, %p37
      %p40 = scmp.ne.s32.totalorder %s23, %s39
      %p41 = scmp.eq.s32.totalorder %s15, 0
      %p42 = por %p40, %p41
      %s44 = sadd.s32 %s43, 1
      %p47 = scmp.eq.s32.totalorder %s9, 1
      %p48 = scmp.ne.s32.totalorder %s43, %s45
      %p49 = scmp.eq.s32.totalorder %s9, 0
      %p50 = por %p48, %p49
      %p51 = scmp.ne.s32.totalorder %s43, %s45
      %p52 = scmp.eq.s32.totalorder %s14, 1
      %p53 = por %p51, %p52
      %p54 = scmp.ne.s32.totalorder %s45, %s46
      %p55 = scmp.eq.s32.totalorder %s14, 0
      %p56 = por %p54, %p55
      %p57 = scmp.ne.s32.totalorder %s45, %s46
      %p58 = scmp.eq.s32.totalorder %s15, 1
      %p59 = por %p57, %p58
      %p61 = scmp.ne.s32.totalorder %s46, %s60
      %p62 = scmp.eq.s32.totalorder %s15, 0
      %p63 = por %p61, %p62
      %s65 = sadd.s32 %s64, 1
      %p68 = scmp.eq.s32.totalorder %s9, 1
      %p69 = scmp.ne.s32.totalorder %s64, %s66
      %p70 = scmp.eq.s32.totalorder %s9, 0
      %p71 = por %p69, %p70
      %p72 = scmp.ne.s32.totalorder %s64, %s66
      %p73 = scmp.eq.s32.totalorder %s14, 1
      %p74 = por %p72, %p73
      %p75 = scmp.ne.s32.totalorder %s66, %s67
      %p76 = scmp.eq.s32.totalorder %s14, 0
      %p77 = por %p75, %p76
      %p78 = scmp.ne.s32.totalorder %s66, %s67
      %p79 = scmp.eq.s32.totalorder %s15, 1
      %p80 = por %p78, %p79
      %p82 = scmp.ne.s32.totalorder %s67, %s81
      %p83 = scmp.eq.s32.totalorder %s15, 0
      %p84 = por %p82, %p83
      %s85 = ssub.s32 %s9, %s16
      %p86 = scmp.eq.s32.totalorder %s85, 0
      %s88 = sadd.s32 %s87, 1
      %s89 = scalar_select %p86, %s87, %s88
      %p92 = pneg %p86
      %p93 = scmp.eq.s32.totalorder %s9, 1
      %p94 = por %p92, %p93
      %p95 = scmp.ne.s32.totalorder %s87, %s90
      %p96 = scmp.eq.s32.totalorder %s9, 0
      %p97 = por %p95, %p96
      %p98 = scmp.ne.s32.totalorder %s87, %s90
      %p99 = scmp.eq.s32.totalorder %s14, 1
      %p100 = por %p98, %p99
      %p101 = scmp.ne.s32.totalorder %s90, %s91
      %p102 = scmp.eq.s32.totalorder %s14, 0
      %p103 = por %p101, %p102
      %p104 = scmp.ne.s32.totalorder %s90, %s91
      %p105 = scmp.eq.s32.totalorder %s15, 1
      %p106 = por %p104, %p105
      %p108 = scmp.ne.s32.totalorder %s91, %s107
      %p109 = scmp.eq.s32.totalorder %s15, 0
      %p110 = por %p108, %p109
      %p111 = scmp.le.s32.totalorder 1, %s9
      %p112 = scmp.lt.s32.totalorder %s9, 3
      %p113 = pnand %p111, %p112
      %p114 = pneg %p113
      // Predicated region
      $region9: #{net_forward.4} parent=5 // pred_check
        _
      $region10: #{net_forward.4} parent=5 // pred_check_branch
        %116 = sbr.rel (%p113) target = $region12
      $region11: #{net_forward.4} parent=5 // pred_region
        %s117 = ssub.s32 %s9, 1
        // Predicated region
        $region13: #{net_forward.4} parent=11 // pred_check
          %p118 = pneg %p56
        $region14: #{net_forward.4} parent=11 // pred_check_branch
          %120 = sbr.rel (%p118) target = $region16
        $region15: #{net_forward.4} parent=11 // pred_region
          _
        $region16: #{net_forward.4} parent=11 // pred_fallthru
          _
        // Predicated region
        $region17: #{net_forward.4} parent=11 // pred_check
          %p121 = pneg %p77
        $region18: #{net_forward.4} parent=11 // pred_check_branch
          %123 = sbr.rel (%p121) target = $region20
        $region19: #{net_forward.4} parent=11 // pred_region
          _
        $region20: #{net_forward.4} parent=11 // pred_fallthru
          _
      $region12: #{net_forward.4} parent=5 // pred_fallthru
        _
      %p124 = scmp.lt.s32.totalorder %s9, 2
      // Predicated region
      $region21: #{net_forward.4} parent=5 // pred_check
        %p125 = pneg %p124
      $region22: #{net_forward.4} parent=5 // pred_check_branch
        %127 = sbr.rel (%p125) target = $region24
      $region23: #{net_forward.4} parent=5 // pred_region
        // Predicated region
        $region25: #{net_forward.4} parent=23 // pred_check
          %p128 = pneg %p29
        $region26: #{net_forward.4} parent=23 // pred_check_branch
          %130 = sbr.rel (%p128) target = $region28
        $region27: #{net_forward.4} parent=23 // pred_region
          %s131 = sand.u32 %s19, 1
          %s132 = sand.u32 %s19, 1
          %s133 = smul.addr %s132, 128
          %s134 = scalar_lea.vmem [#allocation2], %s133
          %s135 = smul.u32 4, %s9
          %s136 = smul.addr %s135, 2
          %s137 = smul.addr %s136, 4
          %s138 = scalar_lea.vmem %s0, %s137
          // Predicated region
          $region29: #{net_forward.4} parent=27 // pred_check
            _
          $region30: #{net_forward.4} parent=27 // pred_check_branch
            %140 = sbr.rel (0) target = $region32
          $region31: #{net_forward.4} parent=27 // pred_region
            // Predicated region
            $region33: #{net_forward.4} parent=31 // pred_check
              _
            $region34: #{net_forward.4} parent=31 // pred_check_branch
              %142 = sbr.rel (0) target = $region36
            $region35: #{net_forward.4} parent=31 // pred_region
              // Predicated region
              $region48: #{net_forward.4} parent=35 // pred_check
                _
              $region49: #{net_forward.4} parent=35 // pred_check_branch
                %187 = sbr.rel (0) target = $region51
              $region50: #{net_forward.4} parent=35 // pred_region
                loop: start=0, step=1, limit=1
                $region52: #{net_forward.4} parent=50 // loop_pre_header
                  _
                $region53: #{net_forward.4} parent=50 // loop_header
                  %s189 = sphi 0, %s193
                  %p190 = scmp.ge.s32.totalorder %s189, 1
                  %s194 = sphi %s138, %s138
                  %s195 = sphi %s134, %s134
                $region54: #{net_forward.4} parent=50 // loop_header_branch
                  %192 = sbr.rel (%p190) target = $region58
                $region55: #{net_forward.4} parent=50 // loop_body
                  %v196 = vld [vmem:[%s194] sm:$0xff]
                  %197 = vst [vmem:[%s195] sm:$0xff] %v196
                  %v198 = vld [vmem:[%s194 + $0x8] sm:$0xff]
                  %199 = vst [vmem:[%s195 + $0x8] sm:$0xff] %v198
                  %v200 = vld [vmem:[%s194 + $0x10] sm:$0xff]
                  %201 = vst [vmem:[%s195 + $0x10] sm:$0xff] %v200
                  %v202 = vld [vmem:[%s194 + $0x18] sm:$0xff]
                  %203 = vst [vmem:[%s195 + $0x18] sm:$0xff] %v202
                  %v204 = vld [vmem:[%s194 + $0x40] sm:$0xff]
                  %205 = vst [vmem:[%s195 + $0x20] sm:$0xff] %v204
                  %v206 = vld [vmem:[%s194 + $0x48] sm:$0xff]
                  %207 = vst [vmem:[%s195 + $0x28] sm:$0xff] %v206
                  %v208 = vld [vmem:[%s194 + $0x50] sm:$0xff]
                  %209 = vst [vmem:[%s195 + $0x30] sm:$0xff] %v208
                  %v210 = vld [vmem:[%s194 + $0x58] sm:$0xff]
                  %211 = vst [vmem:[%s195 + $0x38] sm:$0xff] %v210
                  %v212 = vld [vmem:[%s194 + $0x80] sm:$0xff]
                  %213 = vst [vmem:[%s195 + $0x40] sm:$0xff] %v212
                  %v214 = vld [vmem:[%s194 + $0x88] sm:$0xff]
                  %215 = vst [vmem:[%s195 + $0x48] sm:$0xff] %v214
                  %v216 = vld [vmem:[%s194 + $0x90] sm:$0xff]
                  %217 = vst [vmem:[%s195 + $0x50] sm:$0xff] %v216
                  %v218 = vld [vmem:[%s194 + $0x98] sm:$0xff]
                  %219 = vst [vmem:[%s195 + $0x58] sm:$0xff] %v218
                  %v220 = vld [vmem:[%s194 + $0xc0] sm:$0xff]
                  %221 = vst [vmem:[%s195 + $0x60] sm:$0xff] %v220
                  %v222 = vld [vmem:[%s194 + $0xc8] sm:$0xff]
                  %223 = vst [vmem:[%s195 + $0x68] sm:$0xff] %v222
                  %v224 = vld [vmem:[%s194 + $0xd0] sm:$0xff]
                  %225 = vst [vmem:[%s195 + $0x70] sm:$0xff] %v224
                  %v226 = vld [vmem:[%s194 + $0xd8] sm:$0xff]
                  %227 = vst [vmem:[%s195 + $0x78] sm:$0xff] %v226
                $region56: #{net_forward.4} parent=50 // loop_footer
                  %s193 = sadd.s32 1, %s189
                $region57: #{net_forward.4} parent=50 // loop_footer_branch
                  %188 = sbr.rel target = $region53
                $region58: #{net_forward.4} parent=50 // loop_exit
                  _
              $region51: #{net_forward.4} parent=35 // pred_fallthru
                _
              // Predicated region
              $region59: #{net_forward.4} parent=35 // pred_check
                _
              $region60: #{net_forward.4} parent=35 // pred_check_branch
                %229 = sbr.rel target = $region62
              $region61: #{net_forward.4} parent=35 // pred_region
                _
              $region62: #{net_forward.4} parent=35 // pred_fallthru
                _
            $region36: #{net_forward.4} parent=31 // pred_fallthru
              _
            // Predicated region
            $region37: #{net_forward.4} parent=31 // pred_check
              _
            $region38: #{net_forward.4} parent=31 // pred_check_branch
              %144 = sbr.rel target = $region40
            $region39: #{net_forward.4} parent=31 // pred_region
              loop: start=0, step=1, limit=1
              $region41: #{net_forward.4} parent=39 // loop_pre_header
                _
              $region42: #{net_forward.4} parent=39 // loop_header
                %s147 = sphi 0, %s151
                %p148 = scmp.ge.s32.totalorder %s147, 1
                %s152 = sphi %s138, %s138
                %s153 = sphi %s134, %s134
              $region43: #{net_forward.4} parent=39 // loop_header_branch
                %150 = sbr.rel (%p148) target = $region47
              $region44: #{net_forward.4} parent=39 // loop_body
                %v154 = vld [vmem:[%s152] sm:$0xff]
                %155 = vst [vmem:[%s153] sm:$0xff] %v154
                %v156 = vld [vmem:[%s152 + $0x8] sm:$0xff]
                %157 = vst [vmem:[%s153 + $0x8] sm:$0xff] %v156
                %v158 = vld [vmem:[%s152 + $0x10] sm:$0xff]
                %159 = vst [vmem:[%s153 + $0x10] sm:$0xff] %v158
                %v160 = vld [vmem:[%s152 + $0x18] sm:$0xff]
                %161 = vst [vmem:[%s153 + $0x18] sm:$0xff] %v160
                %v162 = vld [vmem:[%s152 + $0x40] sm:$0xff]
                %163 = vst [vmem:[%s153 + $0x20] sm:$0xff] %v162
                %v164 = vld [vmem:[%s152 + $0x48] sm:$0xff]
                %165 = vst [vmem:[%s153 + $0x28] sm:$0xff] %v164
                %v166 = vld [vmem:[%s152 + $0x50] sm:$0xff]
                %167 = vst [vmem:[%s153 + $0x30] sm:$0xff] %v166
                %v168 = vld [vmem:[%s152 + $0x58] sm:$0xff]
                %169 = vst [vmem:[%s153 + $0x38] sm:$0xff] %v168
                %v170 = vld [vmem:[%s152 + $0x80] sm:$0xff]
                %171 = vst [vmem:[%s153 + $0x40] sm:$0xff] %v170
                %v172 = vld [vmem:[%s152 + $0x88] sm:$0xff]
                %173 = vst [vmem:[%s153 + $0x48] sm:$0xff] %v172
                %v174 = vld [vmem:[%s152 + $0x90] sm:$0xff]
                %175 = vst [vmem:[%s153 + $0x50] sm:$0xff] %v174
                %v176 = vld [vmem:[%s152 + $0x98] sm:$0xff]
                %177 = vst [vmem:[%s153 + $0x58] sm:$0xff] %v176
                %v178 = vld [vmem:[%s152 + $0xc0] sm:$0xff]
                %179 = vst [vmem:[%s153 + $0x60] sm:$0xff] %v178
                %v180 = vld [vmem:[%s152 + $0xc8] sm:$0xff]
                %181 = vst [vmem:[%s153 + $0x68] sm:$0xff] %v180
                %v182 = vld [vmem:[%s152 + $0xd0] sm:$0xff]
                %183 = vst [vmem:[%s153 + $0x70] sm:$0xff] %v182
                %v184 = vld [vmem:[%s152 + $0xd8] sm:$0xff]
                %185 = vst [vmem:[%s153 + $0x78] sm:$0xff] %v184
              $region45: #{net_forward.4} parent=39 // loop_footer
                %s151 = sadd.s32 1, %s147
              $region46: #{net_forward.4} parent=39 // loop_footer_branch
                %146 = sbr.rel target = $region42
              $region47: #{net_forward.4} parent=39 // loop_exit
                _
            $region40: #{net_forward.4} parent=31 // pred_fallthru
              _
          $region32: #{net_forward.4} parent=27 // pred_fallthru
            _
          %230 = vnop
        $region28: #{net_forward.4} parent=23 // pred_fallthru
          _
      $region24: #{net_forward.4} parent=5 // pred_fallthru
        _
      %p231 = scmp.le.s32.totalorder 1, %s9
      %p232 = scmp.lt.s32.totalorder %s9, 3
      %p233 = pnand %p231, %p232
      %p234 = pneg %p233
      // Predicated region
      $region63: #{net_forward.4} parent=5 // pred_check
        _
      $region64: #{net_forward.4} parent=5 // pred_check_branch
        %236 = sbr.rel (%p233) target = $region66
      $region65: #{net_forward.4} parent=5 // pred_region
        %s237 = ssub.s32 %s9, 1
        %s238 = sand.u32 %s22, 1
        %s239 = sand.u32 %s22, 1
        %s240 = smul.addr %s239, 128
        %s241 = scalar_lea.vmem [#allocation2], %s240
        // Predicated region
        $region67: #{net_forward.4} parent=65 // pred_check
          %p242 = pneg %p35
        $region68: #{net_forward.4} parent=65 // pred_check_branch
          %244 = sbr.rel (%p242) target = $region70
        $region69: #{net_forward.4} parent=65 // pred_region
          _
        $region70: #{net_forward.4} parent=65 // pred_fallthru
          _
        %s245 = sand.u32 %s22, 1
        %s246 = sand.u32 %s22, 1
        %s247 = smul.addr %s246, 128
        %s248 = scalar_lea.vmem [#allocation2], %s247
        %p249 = pneg %p35
        %p250 = pneg %p32
        %p251 = pneg %p56
        %p252 = pneg %p53
        %p253 = pneg %p77
        %p254 = pneg %p74
        %p255 = pneg %p103
        %p256 = pneg %p100
        %s257 = smul.u32 4, %s14
        %p258 = scmp.lt.s32.totalorder %s257, 7
        %s259 = scalar_select %p258, %s257, 7
        %s260 = smul.addr %s259, 4
        %s261 = scalar_lea.vmem %s3, %s260
        %s262 = smul.u32 4, %s14
        %s263 = smul.u32 4, %s14
        %p264 = scmp.lt.s32.totalorder %s263, 7
        %s265 = scalar_select %p264, %s263, 7
        %s266 = smul.addr %s265, 4
        %s267 = scalar_lea.vmem %s3, %s266
        %s268 = smul.u32 4, %s14
        %v270 = vld [vmem:[%s1] sm:$0xf]
        %v271 = vld [vmem:[%s1 + $0x4] sm:$0xf]
        %v272 = vld [vmem:[%s1 + $0x8] sm:$0xf]
        %v273 = vld [vmem:[%s1 + $0xc] sm:$0xf]
        %v274 = vld [vmem:[%s1 + $0x10] sm:$0xf]
        %v275 = vld [vmem:[%s1 + $0x14] sm:$0xf]
        %v276 = vld [vmem:[%s1 + $0x18] sm:$0xf]
        %v277 = vld [vmem:[%s1 + $0x1c] sm:$0xf]
        %v278 = vld [vmem:[%s1 + $0x20] sm:$0xf]
        %v279 = vld [vmem:[%s1 + $0x24] sm:$0xf]
        %v280 = vld [vmem:[%s1 + $0x28] sm:$0xf]
        %v281 = vld [vmem:[%s1 + $0x2c] sm:$0xf]
        %v282 = vld [vmem:[%s1 + $0x30] sm:$0xf]
        %v283 = vld [vmem:[%s1 + $0x34] sm:$0xf]
        %v284 = vld [vmem:[%s1 + $0x38] sm:$0xf]
        %v285 = vld [vmem:[%s1 + $0x3c] sm:$0xf]
        %v286 = vld [vmem:[%s1 + $0x40] sm:$0xf]
        %v287 = vld [vmem:[%s1 + $0x44] sm:$0xf]
        %v288 = vld [vmem:[%s1 + $0x48] sm:$0xf]
        %v289 = vld [vmem:[%s1 + $0x4c] sm:$0xf]
        %v290 = vld [vmem:[%s1 + $0x50] sm:$0xf]
        %v291 = vld [vmem:[%s1 + $0x54] sm:$0xf]
        %v292 = vld [vmem:[%s1 + $0x58] sm:$0xf]
        %v293 = vld [vmem:[%s1 + $0x5c] sm:$0xf]
        %v294 = vld [vmem:[%s1 + $0x60] sm:$0xf]
        %v295 = vld [vmem:[%s1 + $0x64] sm:$0xf]
        %v296 = vld [vmem:[%s1 + $0x68] sm:$0xf]
        %v297 = vld [vmem:[%s1 + $0x6c] sm:$0xf]
        %v298 = vld [vmem:[%s1 + $0x70] sm:$0xf]
        %v299 = vld [vmem:[%s1 + $0x74] sm:$0xf]
        %v300 = vld [vmem:[%s1 + $0x78] sm:$0xf]
        %v301 = vld [vmem:[%s1 + $0x7c] sm:$0xf]
        %v302 = vld [vmem:[%s241] sm:$0xff]
        %v303 = vld [vmem:[%s241 + $0x8] sm:$0xff]
        %v304 = vld [vmem:[%s241 + $0x10] sm:$0xff]
        %v305 = vld [vmem:[%s241 + $0x18] sm:$0xff]
        %v310 = vunpack.c.l.b16 %v302
        %v311 = vunpack.c.h.b16 %v302
        %v312 = vunpack.c.l.b16 %v303
        %v313 = vunpack.c.h.b16 %v303
        %v314 = vunpack.c.l.b16 %v304
        %v315 = vunpack.c.h.b16 %v304
        %v316 = vunpack.c.l.b16 %v305
        %v317 = vunpack.c.h.b16 %v305
        %v318 = vpack.c.b16 %v312, %v310
        %v319 = vpack.c.b16 %v313, %v311
        %v320 = vpack.c.b16 %v316, %v314
        %v321 = vpack.c.b16 %v317, %v315
        %v358 = vunpack.c.l.b16 %v270
        %v359 = vunpack.c.l.b16 %v271
        %v360 = vunpack.c.l.b16 %v272
        %v361 = vunpack.c.l.b16 %v273
        %v362 = vunpack.c.l.b16 %v274
        %v363 = vunpack.c.l.b16 %v275
        %v364 = vunpack.c.l.b16 %v276
        %v365 = vunpack.c.l.b16 %v277
        %v366 = vunpack.c.l.b16 %v278
        %v367 = vunpack.c.l.b16 %v279
        %v368 = vunpack.c.l.b16 %v280
        %v369 = vunpack.c.l.b16 %v281
        %v370 = vunpack.c.l.b16 %v282
        %v371 = vunpack.c.l.b16 %v283
        %v372 = vunpack.c.l.b16 %v284
        %v373 = vunpack.c.l.b16 %v285
        %v374 = vunpack.c.l.b16 %v286
        %v375 = vunpack.c.l.b16 %v287
        %v376 = vunpack.c.l.b16 %v288
        %v377 = vunpack.c.l.b16 %v289
        %v378 = vunpack.c.l.b16 %v290
        %v379 = vunpack.c.l.b16 %v291
        %v380 = vunpack.c.l.b16 %v292
        %v381 = vunpack.c.l.b16 %v293
        %v382 = vunpack.c.l.b16 %v294
        %v383 = vunpack.c.l.b16 %v295
        %v384 = vunpack.c.l.b16 %v296
        %v385 = vunpack.c.l.b16 %v297
        %v386 = vunpack.c.l.b16 %v298
        %v387 = vunpack.c.l.b16 %v299
        %v388 = vunpack.c.l.b16 %v300
        %v389 = vunpack.c.l.b16 %v301
        %v390 = vpack.c.b16 %v359, %v358
        %v391 = vpack.c.b16 %v361, %v360
        %v392 = vpack.c.b16 %v363, %v362
        %v393 = vpack.c.b16 %v365, %v364
        %v394 = vpack.c.b16 %v367, %v366
        %v395 = vpack.c.b16 %v369, %v368
        %v396 = vpack.c.b16 %v371, %v370
        %v397 = vpack.c.b16 %v373, %v372
        %v398 = vpack.c.b16 %v375, %v374
        %v399 = vpack.c.b16 %v377, %v376
        %v400 = vpack.c.b16 %v379, %v378
        %v401 = vpack.c.b16 %v381, %v380
        %v402 = vpack.c.b16 %v383, %v382
        %v403 = vpack.c.b16 %v385, %v384
        %v404 = vpack.c.b16 %v387, %v386
        %v405 = vpack.c.b16 %v389, %v388
        %422 = vmatprep.subr.bf16.mxu0 0
        %423 = vmatpush1.bf16.msra.mxu0 %v390
        %424 = vmatprep.subr.bf16.mxu0 0
        %425 = vmatpush1.bf16.msra.mxu0 %v391
        %426 = vmatprep.subr.bf16.mxu0 0
        %427 = vmatpush1.bf16.msra.mxu0 %v392
        %428 = vmatprep.subr.bf16.mxu0 0
        %429 = vmatpush1.bf16.msra.mxu0 %v393
        %430 = vmatprep.subr.bf16.mxu0 0
        %431 = vmatpush1.bf16.msra.mxu0 %v394
        %432 = vmatprep.subr.bf16.mxu0 0
        %433 = vmatpush1.bf16.msra.mxu0 %v395
        %434 = vmatprep.subr.bf16.mxu0 0
        %435 = vmatpush1.bf16.msra.mxu0 %v396
        %436 = vmatprep.subr.bf16.mxu0 0
        %437 = vmatpush1.bf16.msra.mxu0 %v397
        %438 = vmatprep.subr.bf16.mxu0 0
        %439 = vmatpush1.bf16.msra.mxu0 %v398
        %440 = vmatprep.subr.bf16.mxu0 0
        %441 = vmatpush1.bf16.msra.mxu0 %v399
        %442 = vmatprep.subr.bf16.mxu0 0
        %443 = vmatpush1.bf16.msra.mxu0 %v400
        %444 = vmatprep.subr.bf16.mxu0 0
        %445 = vmatpush1.bf16.msra.mxu0 %v401
        %446 = vmatprep.subr.bf16.mxu0 0
        %447 = vmatpush1.bf16.msra.mxu0 %v402
        %448 = vmatprep.subr.bf16.mxu0 0
        %449 = vmatpush1.bf16.msra.mxu0 %v403
        %450 = vmatprep.subr.bf16.mxu0 0
        %451 = vmatpush1.bf16.msra.mxu0 %v404
        %452 = vmatprep.subr.bf16.mxu0 0
        %453 = vmatpush1.bf16.msra.mxu0 %v405
        %454 = vmatprep.mubr.bf16.mxu0 %v319
        %455 = vmatmul.mubr.bf16.gmra.mrb[0].mxu0 %v318
        %v456 = vpop.f32.mrb[0].mxu0
        %v457 = vadd.f32 0.0, %v456
        %v458 = vpop.f32.mrb[0].mxu0
        %v459 = vpop.f32.mrb[0].mxu0
        %v460 = vadd.f32 0.0, %v459
        %v461 = vpop.f32.mrb[0].mxu0
        %462 = vmatprep.mubr.bf16.mxu0 %v321
        %463 = vmatmul.mubr.bf16.gmra.mrb[0].mxu0 %v320
        %v464 = vpop.f32.mrb[0].mxu0
        %v465 = vadd.f32 0.0, %v464
        %v466 = vpop.f32.mrb[0].mxu0
        %v467 = vpop.f32.mrb[0].mxu0
        %v468 = vadd.f32 0.0, %v467
        %v469 = vpop.f32.mrb[0].mxu0
        %470 = vdwg.mxu0
        %s471 = scalar_lea.vmem %s241, 32 [#allocation2]
        %v472 = vld [vmem:[%s471] sm:$0xff]
        %v473 = vld [vmem:[%s471 + $0x8] sm:$0xff]
        %v474 = vld [vmem:[%s471 + $0x10] sm:$0xff]
        %v475 = vld [vmem:[%s471 + $0x18] sm:$0xff]
        %v480 = vunpack.c.l.b16 %v472
        %v481 = vunpack.c.h.b16 %v472
        %v482 = vunpack.c.l.b16 %v473
        %v483 = vunpack.c.h.b16 %v473
        %v484 = vunpack.c.l.b16 %v474
        %v485 = vunpack.c.h.b16 %v474
        %v486 = vunpack.c.l.b16 %v475
        %v487 = vunpack.c.h.b16 %v475
        %v488 = vpack.c.b16 %v482, %v480
        %v489 = vpack.c.b16 %v483, %v481
        %v490 = vpack.c.b16 %v486, %v484
        %v491 = vpack.c.b16 %v487, %v485
        %496 = vmatprep.subr.bf16.mxu0 0
        %497 = vmatpush1.bf16.msra.mxu0 %v390
        %498 = vmatprep.subr.bf16.mxu0 0
        %499 = vmatpush1.bf16.msra.mxu0 %v391
        %500 = vmatprep.subr.bf16.mxu0 0
        %501 = vmatpush1.bf16.msra.mxu0 %v392
        %502 = vmatprep.subr.bf16.mxu0 0
        %503 = vmatpush1.bf16.msra.mxu0 %v393
        %504 = vmatprep.subr.bf16.mxu0 0
        %505 = vmatpush1.bf16.msra.mxu0 %v394
        %506 = vmatprep.subr.bf16.mxu0 0
        %507 = vmatpush1.bf16.msra.mxu0 %v395
        %508 = vmatprep.subr.bf16.mxu0 0
        %509 = vmatpush1.bf16.msra.mxu0 %v396
        %510 = vmatprep.subr.bf16.mxu0 0
        %511 = vmatpush1.bf16.msra.mxu0 %v397
        %512 = vmatprep.subr.bf16.mxu0 0
        %513 = vmatpush1.bf16.msra.mxu0 %v398
        %514 = vmatprep.subr.bf16.mxu0 0
        %515 = vmatpush1.bf16.msra.mxu0 %v399
        %516 = vmatprep.subr.bf16.mxu0 0
        %517 = vmatpush1.bf16.msra.mxu0 %v400
        %518 = vmatprep.subr.bf16.mxu0 0
        %519 = vmatpush1.bf16.msra.mxu0 %v401
        %520 = vmatprep.subr.bf16.mxu0 0
        %521 = vmatpush1.bf16.msra.mxu0 %v402
        %522 = vmatprep.subr.bf16.mxu0 0
        %523 = vmatpush1.bf16.msra.mxu0 %v403
        %524 = vmatprep.subr.bf16.mxu0 0
        %525 = vmatpush1.bf16.msra.mxu0 %v404
        %526 = vmatprep.subr.bf16.mxu0 0
        %527 = vmatpush1.bf16.msra.mxu0 %v405
        %528 = vmatprep.mubr.bf16.mxu0 %v489
        %529 = vmatmul.mubr.bf16.gmra.mrb[0].mxu0 %v488
        %v530 = vpop.f32.mrb[0].mxu0
        %v531 = vadd.f32 0.0, %v530
        %v532 = vpop.f32.mrb[0].mxu0
        %v533 = vpop.f32.mrb[0].mxu0
        %v534 = vadd.f32 0.0, %v533
        %v535 = vpop.f32.mrb[0].mxu0
        %536 = vmatprep.mubr.bf16.mxu0 %v491
        %537 = vmatmul.mubr.bf16.gmra.mrb[0].mxu0 %v490
        %v538 = vpop.f32.mrb[0].mxu0
        %v539 = vadd.f32 0.0, %v538
        %v540 = vpop.f32.mrb[0].mxu0
        %v541 = vpop.f32.mrb[0].mxu0
        %v542 = vadd.f32 0.0, %v541
        %v543 = vpop.f32.mrb[0].mxu0
        %544 = vdwg.mxu0
        %s545 = scalar_lea.vmem %s241, 64 [#allocation2]
        %v546 = vld [vmem:[%s545] sm:$0xff]
        %v547 = vld [vmem:[%s545 + $0x8] sm:$0xff]
        %v548 = vld [vmem:[%s545 + $0x10] sm:$0xff]
        %v549 = vld [vmem:[%s545 + $0x18] sm:$0xff]
        %v554 = vunpack.c.l.b16 %v546
        %v555 = vunpack.c.h.b16 %v546
        %v556 = vunpack.c.l.b16 %v547
        %v557 = vunpack.c.h.b16 %v547
        %v558 = vunpack.c.l.b16 %v548
        %v559 = vunpack.c.h.b16 %v548
        %v560 = vunpack.c.l.b16 %v549
        %v561 = vunpack.c.h.b16 %v549
        %v562 = vpack.c.b16 %v556, %v554
        %v563 = vpack.c.b16 %v557, %v555
        %v564 = vpack.c.b16 %v560, %v558
        %v565 = vpack.c.b16 %v561, %v559
        %570 = vmatprep.subr.bf16.mxu0 0
        %571 = vmatpush1.bf16.msra.mxu0 %v390
        %572 = vmatprep.subr.bf16.mxu0 0
        %573 = vmatpush1.bf16.msra.mxu0 %v391
        %574 = vmatprep.subr.bf16.mxu0 0
        %575 = vmatpush1.bf16.msra.mxu0 %v392
        %576 = vmatprep.subr.bf16.mxu0 0
        %577 = vmatpush1.bf16.msra.mxu0 %v393
        %578 = vmatprep.subr.bf16.mxu0 0
        %579 = vmatpush1.bf16.msra.mxu0 %v394
        %580 = vmatprep.subr.bf16.mxu0 0
        %581 = vmatpush1.bf16.msra.mxu0 %v395
        %582 = vmatprep.subr.bf16.mxu0 0
        %583 = vmatpush1.bf16.msra.mxu0 %v396
        %584 = vmatprep.subr.bf16.mxu0 0
        %585 = vmatpush1.bf16.msra.mxu0 %v397
        %586 = vmatprep.subr.bf16.mxu0 0
        %587 = vmatpush1.bf16.msra.mxu0 %v398
        %588 = vmatprep.subr.bf16.mxu0 0
        %589 = vmatpush1.bf16.msra.mxu0 %v399
        %590 = vmatprep.subr.bf16.mxu0 0
        %591 = vmatpush1.bf16.msra.mxu0 %v400
        %592 = vmatprep.subr.bf16.mxu0 0
        %593 = vmatpush1.bf16.msra.mxu0 %v401
        %594 = vmatprep.subr.bf16.mxu0 0
        %595 = vmatpush1.bf16.msra.mxu0 %v402
        %596 = vmatprep.subr.bf16.mxu0 0
        %597 = vmatpush1.bf16.msra.mxu0 %v403
        %598 = vmatprep.subr.bf16.mxu0 0
        %599 = vmatpush1.bf16.msra.mxu0 %v404
        %600 = vmatprep.subr.bf16.mxu0 0
        %601 = vmatpush1.bf16.msra.mxu0 %v405
        %602 = vmatprep.mubr.bf16.mxu0 %v563
        %603 = vmatmul.mubr.bf16.gmra.mrb[0].mxu0 %v562
        %v604 = vpop.f32.mrb[0].mxu0
        %v605 = vadd.f32 0.0, %v604
        %v606 = vpop.f32.mrb[0].mxu0
        %v607 = vpop.f32.mrb[0].mxu0
        %v608 = vadd.f32 0.0, %v607
        %v609 = vpop.f32.mrb[0].mxu0
        %610 = vmatprep.mubr.bf16.mxu0 %v565
        %611 = vmatmul.mubr.bf16.gmra.mrb[0].mxu0 %v564
        %v612 = vpop.f32.mrb[0].mxu0
        %v613 = vadd.f32 0.0, %v612
        %v614 = vpop.f32.mrb[0].mxu0
        %v615 = vpop.f32.mrb[0].mxu0
        %v616 = vadd.f32 0.0, %v615
        %v617 = vpop.f32.mrb[0].mxu0
        %618 = vdwg.mxu0
        %s619 = scalar_lea.vmem %s241, 96 [#allocation2]
        %v620 = vld [vmem:[%s619] sm:$0xff]
        %v621 = vld [vmem:[%s619 + $0x8] sm:$0xff]
        %v622 = vld [vmem:[%s619 + $0x10] sm:$0xff]
        %v623 = vld [vmem:[%s619 + $0x18] sm:$0xff]
        %v628 = vunpack.c.l.b16 %v620
        %v629 = vunpack.c.h.b16 %v620
        %v630 = vunpack.c.l.b16 %v621
        %v631 = vunpack.c.h.b16 %v621
        %v632 = vunpack.c.l.b16 %v622
        %v633 = vunpack.c.h.b16 %v622
        %v634 = vunpack.c.l.b16 %v623
        %v635 = vunpack.c.h.b16 %v623
        %v636 = vpack.c.b16 %v630, %v628
        %v637 = vpack.c.b16 %v631, %v629
        %v638 = vpack.c.b16 %v634, %v632
        %v639 = vpack.c.b16 %v635, %v633
        %644 = vmatprep.subr.bf16.mxu0 0
        %645 = vmatpush1.bf16.msra.mxu0 %v390
        %646 = vmatprep.subr.bf16.mxu0 0
        %647 = vmatpush1.bf16.msra.mxu0 %v391
        %648 = vmatprep.subr.bf16.mxu0 0
        %649 = vmatpush1.bf16.msra.mxu0 %v392
        %650 = vmatprep.subr.bf16.mxu0 0
        %651 = vmatpush1.bf16.msra.mxu0 %v393
        %652 = vmatprep.subr.bf16.mxu0 0
        %653 = vmatpush1.bf16.msra.mxu0 %v394
        %654 = vmatprep.subr.bf16.mxu0 0
        %655 = vmatpush1.bf16.msra.mxu0 %v395
        %656 = vmatprep.subr.bf16.mxu0 0
        %657 = vmatpush1.bf16.msra.mxu0 %v396
        %658 = vmatprep.subr.bf16.mxu0 0
        %659 = vmatpush1.bf16.msra.mxu0 %v397
        %660 = vmatprep.subr.bf16.mxu0 0
        %661 = vmatpush1.bf16.msra.mxu0 %v398
        %662 = vmatprep.subr.bf16.mxu0 0
        %663 = vmatpush1.bf16.msra.mxu0 %v399
        %664 = vmatprep.subr.bf16.mxu0 0
        %665 = vmatpush1.bf16.msra.mxu0 %v400
        %666 = vmatprep.subr.bf16.mxu0 0
        %667 = vmatpush1.bf16.msra.mxu0 %v401
        %668 = vmatprep.subr.bf16.mxu0 0
        %669 = vmatpush1.bf16.msra.mxu0 %v402
        %670 = vmatprep.subr.bf16.mxu0 0
        %671 = vmatpush1.bf16.msra.mxu0 %v403
        %672 = vmatprep.subr.bf16.mxu0 0
        %673 = vmatpush1.bf16.msra.mxu0 %v404
        %674 = vmatprep.subr.bf16.mxu0 0
        %675 = vmatpush1.bf16.msra.mxu0 %v405
        %676 = vmatprep.mubr.bf16.mxu0 %v637
        %677 = vmatmul.mubr.bf16.gmra.mrb[0].mxu0 %v636
        %v678 = vpop.f32.mrb[0].mxu0
        %v679 = vadd.f32 0.0, %v678
        %v680 = vpop.f32.mrb[0].mxu0
        %v681 = vpop.f32.mrb[0].mxu0
        %v682 = vadd.f32 0.0, %v681
        %v683 = vpop.f32.mrb[0].mxu0
        %684 = vmatprep.mubr.bf16.mxu0 %v639
        %685 = vmatmul.mubr.bf16.gmra.mrb[0].mxu0 %v638
        %v686 = vpop.f32.mrb[0].mxu0
        %v687 = vadd.f32 0.0, %v686
        %v688 = vpop.f32.mrb[0].mxu0
        %v689 = vpop.f32.mrb[0].mxu0
        %v690 = vadd.f32 0.0, %v689
        %v691 = vpop.f32.mrb[0].mxu0
        %692 = vdwg.mxu0
        %v693 = vmax.f32 %v457, %v531
        %v694 = vmax.f32 %v460, %v534
        %v695 = vmax.f32 %v465, %v539
        %v696 = vmax.f32 %v468, %v542
        %v697 = vmax.f32 %v605, %v679
        %v698 = vmax.f32 %v608, %v682
        %v699 = vmax.f32 %v613, %v687
        %v700 = vmax.f32 %v616, %v690
        %v701 = vmax.f32 %v693, %v697
        %v702 = vmax.f32 %v694, %v698
        %v703 = vmax.f32 %v695, %v699
        %v704 = vmax.f32 %v696, %v700
        %v705 = vld [vmem:[%s2] sm:$0x1]
        %v707 = vlaneseq
        %v708 = vshrl.u32 %v707, 7
        %v709 = vsub.s32 0, %v708
        %v710 = vrot.slane %v705, %v709
        %v712 = vadd.f32 %v701, %v710
        %v713 = vadd.f32 %v702, %v710
        %v714 = vadd.f32 %v703, %v710
        %v715 = vadd.f32 %v704, %v710
        %v716 = vmax.f32 %v712, 0.0
        %v717 = vmax.f32 %v713, 0.0
        %v718 = vmax.f32 %v714, 0.0
        %v719 = vmax.f32 %v715, 0.0
        %v720 = vpack.c.bf16 %v717, %v716
        %v721 = vpack.c.bf16 %v719, %v718
        %v724 = vunpack.c.l.b16 %v720
        %v725 = vunpack.c.h.b16 %v720
        %v726 = vunpack.c.l.b16 %v721
        %v727 = vunpack.c.h.b16 %v721
        %v728 = vpack.c.b16 %v724, %v724
        %v729 = vpack.c.b16 %v725, %v725
        %v730 = vpack.c.b16 %v726, %v726
        %v731 = vpack.c.b16 %v727, %v727
        %736 = vst [vmem:[%s267] sm:$0xf] %v728
        %737 = vst [vmem:[%s267 + $0x4] sm:$0xf] %v729
        %738 = vst [vmem:[%s267 + $0x8] sm:$0xf] %v730
        %739 = vst [vmem:[%s267 + $0xc] sm:$0xf] %v731
        %s740 = smul.u32 4, %s14
        %p741 = scmp.lt.s32.totalorder %s740, 7
        %s742 = scalar_select %p741, %s740, 7
        %s743 = smul.addr %s742, 4
        %s744 = scalar_lea.vmem %s3, %s743
        // Predicated region
        $region71: #{net_forward.4} parent=65 // pred_check
          %p745 = pneg %p100
        $region72: #{net_forward.4} parent=65 // pred_check_branch
          %747 = sbr.rel (%p745) target = $region74
        $region73: #{net_forward.4} parent=65 // pred_region
          %s748 = smul.u32 4, %s14
        $region74: #{net_forward.4} parent=65 // pred_fallthru
          _
      $region66: #{net_forward.4} parent=5 // pred_fallthru
        _
      %p749 = scmp.le.s32.totalorder 2, %s9
      // Predicated region
      $region75: #{net_forward.4} parent=5 // pred_check
        %p750 = pneg %p749
      $region76: #{net_forward.4} parent=5 // pred_check_branch
        %752 = sbr.rel (%p750) target = $region78
      $region77: #{net_forward.4} parent=5 // pred_region
        %s753 = ssub.s32 %s9, 2
        // Predicated region
        $region79: #{net_forward.4} parent=77 // pred_check
          %p754 = pneg %p106
        $region80: #{net_forward.4} parent=77 // pred_check_branch
          %756 = sbr.rel (%p754) target = $region82
        $region81: #{net_forward.4} parent=77 // pred_region
          %s757 = smul.u32 4, %s15
          %p758 = scmp.lt.s32.totalorder %s757, 7
          %s759 = scalar_select %p758, %s757, 7
          %s760 = smul.addr %s759, 4
          %s761 = scalar_lea.vmem %s3, %s760
        $region82: #{net_forward.4} parent=77 // pred_fallthru
          _
      $region78: #{net_forward.4} parent=5 // pred_fallthru
        _
    $region6: #{net_forward.4} parent=1 // loop_footer
      %s13 = sadd.s32 1, %s9
    $region7: #{net_forward.4} parent=1 // loop_footer_branch
      %8 = sbr.rel target = $region3
    $region8: #{net_forward.4} parent=1 // loop_exit
      _

// kernel: net_forward.5
$region0: #{net_forward.5}
  #allocation0 [shape = 'u32[]', space=smem, size = 0x4, offset = 0x4, fixed_abs, tag = 'smem constant byte address 0x4 - core index']
  #allocation1 [shape = 'u32[144,128]{1,0:T(1,128)}', space=vmem, size = 0x12000, scoped, tag = 'internal scratch']
  %s0 = inlined_call_operand.vmem [shape: bf16[16,3200], index: 0, kind: input, shape index: {}]
  %s1 = inlined_call_operand.vmem [shape: bf16[3200,128], index: 1, kind: input, shape index: {}]
  %s2 = inlined_call_operand.vmem [shape: f32[1,128], index: 2, kind: input, shape index: {}]
  %s3 = inlined_call_operand.vmem [shape: bf16[128,128], index: 3, kind: input, shape index: {}]
  %s4 = inlined_call_operand.vmem [shape: f32[1,128], index: 4, kind: input, shape index: {}]
  %s5 = inlined_call_operand.vmem [shape: bf16[128,128], index: 5, kind: input, shape index: {}]
  %s6 = inlined_call_operand.vmem [shape: f32[1,128], index: 6, kind: input, shape index: {}]
  %s7 = inlined_call_operand.vmem [shape: f32[16,128], index: 7, kind: output, shape index: {}]
  %s8 = sld [smem:[#allocation0]]
  $region38: #{net_forward.5} parent=0
    _
  %s10 = ssub.s32 1, %s8
  %s11 = scalar_select 0, %s10, %s8
  // Predicated region
  $region2: #{net_forward.5} parent=0 // pred_check
    _
  $region3: #{net_forward.5} parent=0 // pred_check_branch
    %13 = sbr.rel (0) target = $region5
  $region4: #{net_forward.5} parent=0 // pred_region
    _
  $region5: #{net_forward.5} parent=0 // pred_fallthru
    _
  // Predicated region
  $region6: #{net_forward.5} parent=0 // pred_check
    _
  $region7: #{net_forward.5} parent=0 // pred_check_branch
    %15 = sbr.rel (0) target = $region9
  $region8: #{net_forward.5} parent=0 // pred_region
    _
  $region9: #{net_forward.5} parent=0 // pred_fallthru
    _
  // Predicated region
  $region10: #{net_forward.5} parent=0 // pred_check
    _
  $region11: #{net_forward.5} parent=0 // pred_check_branch
    %17 = sbr.rel (0) target = $region13
  $region12: #{net_forward.5} parent=0 // pred_region
    _
  $region13: #{net_forward.5} parent=0 // pred_fallthru
    _
  // Predicated region
  $region14: #{net_forward.5} parent=0 // pred_check
    _
  $region15: #{net_forward.5} parent=0 // pred_check_branch
    %19 = sbr.rel (0) target = $region17
  $region16: #{net_forward.5} parent=0 // pred_region
    _
  $region17: #{net_forward.5} parent=0 // pred_fallthru
    _
  // Predicated region
  $region18: #{net_forward.5} parent=0 // pred_check
    _
  $region19: #{net_forward.5} parent=0 // pred_check_branch
    %21 = sbr.rel (0) target = $region21
  $region20: #{net_forward.5} parent=0 // pred_region
    _
  $region21: #{net_forward.5} parent=0 // pred_fallthru
    _
  // Predicated region
  $region22: #{net_forward.5} parent=0 // pred_check
    _
  $region23: #{net_forward.5} parent=0 // pred_check_branch
    %23 = sbr.rel (0) target = $region25
  $region24: #{net_forward.5} parent=0 // pred_region
    _
  $region25: #{net_forward.5} parent=0 // pred_fallthru
    _
  // Predicated region
  $region26: #{net_forward.5} parent=0 // pred_check
    _
  $region27: #{net_forward.5} parent=0 // pred_check_branch
    %25 = sbr.rel (0) target = $region29
  $region28: #{net_forward.5} parent=0 // pred_region
    _
  $region29: #{net_forward.5} parent=0 // pred_fallthru
    _
  %v27 = vld [vmem:[%s0] sm:$0xff]
  %v28 = vld [vmem:[%s0 + $0x8] sm:$0xff]
  %v29 = vld [vmem:[%s0 + $0x10] sm:$0xff]
  %v30 = vld [vmem:[%s0 + $0x18] sm:$0xff]
  %v31 = vld [vmem:[%s0 + $0x20] sm:$0xff]
  %v32 = vld [vmem:[%s0 + $0x28] sm:$0xff]
  %v33 = vld [vmem:[%s0 + $0x30] sm:$0xff]
  %v34 = vld [vmem:[%s0 + $0x38] sm:$0xff]
  %v35 = vld [vmem:[%s0 + $0x40] sm:$0xff]
  %v36 = vld [vmem:[%s0 + $0x48] sm:$0xff]
  %v37 = vld [vmem:[%s0 + $0x50] sm:$0xff]
  %v38 = vld [vmem:[%s0 + $0x58] sm:$0xff]
  %v39 = vld [vmem:[%s0 + $0x60] sm:$0xf]
  %v40 = vld [vmem:[%s0 + $0x64] sm:$0xff]
  %v41 = vld [vmem:[%s0 + $0x6c] sm:$0xff]
  %v42 = vld [vmem:[%s0 + $0x74] sm:$0xff]
  %v43 = vld [vmem:[%s0 + $0x7c] sm:$0xff]
  %v44 = vld [vmem:[%s0 + $0x84] sm:$0xff]
  %v45 = vld [vmem:[%s0 + $0x8c] sm:$0xff]
  %v46 = vld [vmem:[%s0 + $0x94] sm:$0xff]
  %v47 = vld [vmem:[%s0 + $0x9c] sm:$0xff]
  %v48 = vld [vmem:[%s0 + $0xa4] sm:$0xff]
  %v49 = vld [vmem:[%s0 + $0xac] sm:$0xff]
  %v50 = vld [vmem:[%s0 + $0xb4] sm:$0xff]
  %v51 = vld [vmem:[%s0 + $0xbc] sm:$0xff]
  %v52 = vld [vmem:[%s0 + $0xc4] sm:$0xf]
  %v53 = vld [vmem:[%s1] sm:$0xf]
  %v54 = vld [vmem:[%s1 + $0x4] sm:$0xf]
  %v55 = vld [vmem:[%s1 + $0x8] sm:$0xf]
  %v56 = vld [vmem:[%s1 + $0xc] sm:$0xf]
  %v57 = vld [vmem:[%s1 + $0x10] sm:$0xf]
  %v58 = vld [vmem:[%s1 + $0x14] sm:$0xf]
  %v59 = vld [vmem:[%s1 + $0x18] sm:$0xf]
  %v60 = vld [vmem:[%s1 + $0x1c] sm:$0xf]
  %v61 = vld [vmem:[%s1 + $0x20] sm:$0xf]
  %v62 = vld [vmem:[%s1 + $0x24] sm:$0xf]
  %v63 = vld [vmem:[%s1 + $0x28] sm:$0xf]
  %v64 = vld [vmem:[%s1 + $0x2c] sm:$0xf]
  %v65 = vld [vmem:[%s1 + $0x30] sm:$0xf]
  %v66 = vld [vmem:[%s1 + $0x34] sm:$0xf]
  %v67 = vld [vmem:[%s1 + $0x38] sm:$0xf]
  %v68 = vld [vmem:[%s1 + $0x3c] sm:$0xf]
  %v69 = vld [vmem:[%s1 + $0x40] sm:$0xf]
  %v70 = vld [vmem:[%s1 + $0x44] sm:$0xf]
  %v71 = vld [vmem:[%s1 + $0x48] sm:$0xf]
  %v72 = vld [vmem:[%s1 + $0x4c] sm:$0xf]
  %v73 = vld [vmem:[%s1 + $0x50] sm:$0xf]
  %v74 = vld [vmem:[%s1 + $0x54] sm:$0xf]
  %v75 = vld [vmem:[%s1 + $0x58] sm:$0xf]
  %v76 = vld [vmem:[%s1 + $0x5c] sm:$0xf]
  %v77 = vld [vmem:[%s1 + $0x60] sm:$0xf]
  %v78 = vld [vmem:[%s1 + $0x64] sm:$0xf]
  %v79 = vld [vmem:[%s1 + $0x68] sm:$0xf]
  %v80 = vld [vmem:[%s1 + $0x6c] sm:$0xf]
  %v81 = vld [vmem:[%s1 + $0x70] sm:$0xf]
  %v82 = vld [vmem:[%s1 + $0x74] sm:$0xf]
  %v83 = vld [vmem:[%s1 + $0x78] sm:$0xf]
  %v84 = vld [vmem:[%s1 + $0x7c] sm:$0xf]
  %v85 = vld [vmem:[%s1 + $0x80] sm:$0xf]
  %v86 = vld [vmem:[%s1 + $0x84] sm:$0xf]
  %v87 = vld [vmem:[%s1 + $0x88] sm:$0xf]
  %v88 = vld [vmem:[%s1 + $0x8c] sm:$0xf]
  %v89 = vld [vmem:[%s1 + $0x90] sm:$0xf]
  %v90 = vld [vmem:[%s1 + $0x94] sm:$0xf]
  %v91 = vld [vmem:[%s1 + $0x98] sm:$0xf]
  %v92 = vld [vmem:[%s1 + $0x9c] sm:$0xf]
  %v93 = vld [vmem:[%s1 + $0xa0] sm:$0xf]
  %v94 = vld [vmem:[%s1 + $0xa4] sm:$0xf]
  %v95 = vld [vmem:[%s1 + $0xa8] sm:$0xf]
  %v96 = vld [vmem:[%s1 + $0xac] sm:$0xf]
  %v97 = vld [vmem:[%s1 + $0xb0] sm:$0xf]
  %v98 = vld [vmem:[%s1 + $0xb4] sm:$0xf]
  %v99 = vld [vmem:[%s1 + $0xb8] sm:$0xf]
  %v100 = vld [vmem:[%s1 + $0xbc] sm:$0xf]
  %v101 = vld [vmem:[%s1 + $0xc0] sm:$0xf]
  %v102 = vld [vmem:[%s1 + $0xc4] sm:$0xf]
  %v103 = vld [vmem:[%s1 + $0xc8] sm:$0xf]
  %v104 = vld [vmem:[%s1 + $0xcc] sm:$0xf]
  %v105 = vld [vmem:[%s1 + $0xd0] sm:$0xf]
  %v106 = vld [vmem:[%s1 + $0xd4] sm:$0xf]
  %v107 = vld [vmem:[%s1 + $0xd8] sm:$0xf]
  %v108 = vld [vmem:[%s1 + $0xdc] sm:$0xf]
  %v109 = vld [vmem:[%s1 + $0xe0] sm:$0xf]
  %v110 = vld [vmem:[%s1 + $0xe4] sm:$0xf]
  %v111 = vld [vmem:[%s1 + $0xe8] sm:$0xf]
  %v112 = vld [vmem:[%s1 + $0xec] sm:$0xf]
  %v113 = vld [vmem:[%s1 + $0xf0] sm:$0xf]
  %v114 = vld [vmem:[%s1 + $0xf4] sm:$0xf]
  %v115 = vld [vmem:[%s1 + $0xf8] sm:$0xf]
  %v116 = vld [vmem:[%s1 + $0xfc] sm:$0xf]
  %v117 = vld [vmem:[%s1 + $0x100] sm:$0xf]
  %v118 = vld [vmem:[%s1 + $0x104] sm:$0xf]
  %v119 = vld [vmem:[%s1 + $0x108] sm:$0xf]
  %v120 = vld [vmem:[%s1 + $0x10c] sm:$0xf]
  %v121 = vld [vmem:[%s1 + $0x110] sm:$0xf]
  %v122 = vld [vmem:[%s1 + $0x114] sm:$0xf]
  %v123 = vld [vmem:[%s1 + $0x118] sm:$0xf]
  %v124 = vld [vmem:[%s1 + $0x11c] sm:$0xf]
  %v125 = vld [vmem:[%s1 + $0x120] sm:$0xf]
  %v126 = vld [vmem:[%s1 + $0x124] sm:$0xf]
  %v127 = vld [vmem:[%s1 + $0x128] sm:$0xf]
  %v128 = vld [vmem:[%s1 + $0x12c] sm:$0xf]
  %v129 = vld [vmem:[%s1 + $0x130] sm:$0xf]
  %v130 = vld [vmem:[%s1 + $0x134] sm:$0xf]
  %v131 = vld [vmem:[%s1 + $0x138] sm:$0xf]
  %v132 = vld [vmem:[%s1 + $0x13c] sm:$0xf]
  %v133 = vld [vmem:[%s1 + $0x140] sm:$0xf]
  %v134 = vld [vmem:[%s1 + $0x144] sm:$0xf]
  %v135 = vld [vmem:[%s1 + $0x148] sm:$0xf]
  %v136 = vld [vmem:[%s1 + $0x14c] sm:$0xf]
  %v137 = vld [vmem:[%s1 + $0x150] sm:$0xf]
  %v138 = vld [vmem:[%s1 + $0x154] sm:$0xf]
  %v139 = vld [vmem:[%s1 + $0x158] sm:$0xf]
  %v140 = vld [vmem:[%s1 + $0x15c] sm:$0xf]
  %v141 = vld [vmem:[%s1 + $0x160] sm:$0xf]
  %v142 = vld [vmem:[%s1 + $0x164] sm:$0xf]
  %v143 = vld [vmem:[%s1 + $0x168] sm:$0xf]
  %v144 = vld [vmem:[%s1 + $0x16c] sm:$0xf]
  %v145 = vld [vmem:[%s1 + $0x170] sm:$0xf]
  %v146 = vld [vmem:[%s1 + $0x174] sm:$0xf]
  %v147 = vld [vmem:[%s1 + $0x178] sm:$0xf]
  %v148 = vld [vmem:[%s1 + $0x17c] sm:$0xf]
  %v149 = vld [vmem:[%s1 + $0x180] sm:$0xf]
  %v150 = vld [vmem:[%s1 + $0x184] sm:$0xf]
  %v151 = vld [vmem:[%s1 + $0x188] sm:$0xf]
  %v152 = vld [vmem:[%s1 + $0x18c] sm:$0xf]
  %v153 = vld [vmem:[%s1 + $0x190] sm:$0xf]
  %v154 = vld [vmem:[%s1 + $0x194] sm:$0xf]
  %v155 = vld [vmem:[%s1 + $0x198] sm:$0xf]
  %v156 = vld [vmem:[%s1 + $0x19c] sm:$0xf]
  %v157 = vld [vmem:[%s1 + $0x1a0] sm:$0xf]
  %v158 = vld [vmem:[%s1 + $0x1a4] sm:$0xf]
  %v159 = vld [vmem:[%s1 + $0x1a8] sm:$0xf]
  %v160 = vld [vmem:[%s1 + $0x1ac] sm:$0xf]
  %v161 = vld [vmem:[%s1 + $0x1b0] sm:$0xf]
  %v162 = vld [vmem:[%s1 + $0x1b4] sm:$0xf]
  %v163 = vld [vmem:[%s1 + $0x1b8] sm:$0xf]
  %v164 = vld [vmem:[%s1 + $0x1bc] sm:$0xf]
  %v165 = vld [vmem:[%s1 + $0x1c0] sm:$0xf]
  %v166 = vld [vmem:[%s1 + $0x1c4] sm:$0xf]
  %v167 = vld [vmem:[%s1 + $0x1c8] sm:$0xf]
  %v168 = vld [vmem:[%s1 + $0x1cc] sm:$0xf]
  %v169 = vld [vmem:[%s1 + $0x1d0] sm:$0xf]
  %v170 = vld [vmem:[%s1 + $0x1d4] sm:$0xf]
  %v171 = vld [vmem:[%s1 + $0x1d8] sm:$0xf]
  %v172 = vld [vmem:[%s1 + $0x1dc] sm:$0xf]
  %v173 = vld [vmem:[%s1 + $0x1e0] sm:$0xf]
  %v174 = vld [vmem:[%s1 + $0x1e4] sm:$0xf]
  %v175 = vld [vmem:[%s1 + $0x1e8] sm:$0xf]
  %v176 = vld [vmem:[%s1 + $0x1ec] sm:$0xf]
  %v177 = vld [vmem:[%s1 + $0x1f0] sm:$0xf]
  %v178 = vld [vmem:[%s1 + $0x1f4] sm:$0xf]
  %v179 = vld [vmem:[%s1 + $0x1f8] sm:$0xf]
  %v180 = vld [vmem:[%s1 + $0x1fc] sm:$0xf]
  %v181 = vld [vmem:[%s1 + $0x200] sm:$0xf]
  %v182 = vld [vmem:[%s1 + $0x204] sm:$0xf]
  %v183 = vld [vmem:[%s1 + $0x208] sm:$0xf]
  %v184 = vld [vmem:[%s1 + $0x20c] sm:$0xf]
  %v185 = vld [vmem:[%s1 + $0x210] sm:$0xf]
  %v186 = vld [vmem:[%s1 + $0x214] sm:$0xf]
  %v187 = vld [vmem:[%s1 + $0x218] sm:$0xf]
  %v188 = vld [vmem:[%s1 + $0x21c] sm:$0xf]
  %v189 = vld [vmem:[%s1 + $0x220] sm:$0xf]
  %v190 = vld [vmem:[%s1 + $0x224] sm:$0xf]
  %v191 = vld [vmem:[%s1 + $0x228] sm:$0xf]
  %v192 = vld [vmem:[%s1 + $0x22c] sm:$0xf]
  %v193 = vld [vmem:[%s1 + $0x230] sm:$0xf]
  %v194 = vld [vmem:[%s1 + $0x234] sm:$0xf]
  %v195 = vld [vmem:[%s1 + $0x238] sm:$0xf]
  %v196 = vld [vmem:[%s1 + $0x23c] sm:$0xf]
  %v197 = vld [vmem:[%s1 + $0x240] sm:$0xf]
  %v198 = vld [vmem:[%s1 + $0x244] sm:$0xf]
  %v199 = vld [vmem:[%s1 + $0x248] sm:$0xf]
  %v200 = vld [vmem:[%s1 + $0x24c] sm:$0xf]
  %v201 = vld [vmem:[%s1 + $0x250] sm:$0xf]
  %v202 = vld [vmem:[%s1 + $0x254] sm:$0xf]
  %v203 = vld [vmem:[%s1 + $0x258] sm:$0xf]
  %v204 = vld [vmem:[%s1 + $0x25c] sm:$0xf]
  %v205 = vld [vmem:[%s1 + $0x260] sm:$0xf]
  %v206 = vld [vmem:[%s1 + $0x264] sm:$0xf]
  %v207 = vld [vmem:[%s1 + $0x268] sm:$0xf]
  %v208 = vld [vmem:[%s1 + $0x26c] sm:$0xf]
  %v209 = vld [vmem:[%s1 + $0x270] sm:$0xf]
  %v210 = vld [vmem:[%s1 + $0x274] sm:$0xf]
  %v211 = vld [vmem:[%s1 + $0x278] sm:$0xf]
  %v212 = vld [vmem:[%s1 + $0x27c] sm:$0xf]
  %v213 = vld [vmem:[%s1 + $0x280] sm:$0xf]
  %v214 = vld [vmem:[%s1 + $0x284] sm:$0xf]
  %v215 = vld [vmem:[%s1 + $0x288] sm:$0xf]
  %v216 = vld [vmem:[%s1 + $0x28c] sm:$0xf]
  %v217 = vld [vmem:[%s1 + $0x290] sm:$0xf]
  %v218 = vld [vmem:[%s1 + $0x294] sm:$0xf]
  %v219 = vld [vmem:[%s1 + $0x298] sm:$0xf]
  %v220 = vld [vmem:[%s1 + $0x29c] sm:$0xf]
  %v221 = vld [vmem:[%s1 + $0x2a0] sm:$0xf]
  %v222 = vld [vmem:[%s1 + $0x2a4] sm:$0xf]
  %v223 = vld [vmem:[%s1 + $0x2a8] sm:$0xf]
  %v224 = vld [vmem:[%s1 + $0x2ac] sm:$0xf]
  %v225 = vld [vmem:[%s1 + $0x2b0] sm:$0xf]
  %v226 = vld [vmem:[%s1 + $0x2b4] sm:$0xf]
  %v227 = vld [vmem:[%s1 + $0x2b8] sm:$0xf]
  %v228 = vld [vmem:[%s1 + $0x2bc] sm:$0xf]
  %v229 = vld [vmem:[%s1 + $0x2c0] sm:$0xf]
  %v230 = vld [vmem:[%s1 + $0x2c4] sm:$0xf]
  %v231 = vld [vmem:[%s1 + $0x2c8] sm:$0xf]
  %v232 = vld [vmem:[%s1 + $0x2cc] sm:$0xf]
  %v233 = vld [vmem:[%s1 + $0x2d0] sm:$0xf]
  %v234 = vld [vmem:[%s1 + $0x2d4] sm:$0xf]
  %v235 = vld [vmem:[%s1 + $0x2d8] sm:$0xf]
  %v236 = vld [vmem:[%s1 + $0x2dc] sm:$0xf]
  %v237 = vld [vmem:[%s1 + $0x2e0] sm:$0xf]
  %v238 = vld [vmem:[%s1 + $0x2e4] sm:$0xf]
  %v239 = vld [vmem:[%s1 + $0x2e8] sm:$0xf]
  %v240 = vld [vmem:[%s1 + $0x2ec] sm:$0xf]
  %v241 = vld [vmem:[%s1 + $0x2f0] sm:$0xf]
  %v242 = vld [vmem:[%s1 + $0x2f4] sm:$0xf]
  %v243 = vld [vmem:[%s1 + $0x2f8] sm:$0xf]
  %v244 = vld [vmem:[%s1 + $0x2fc] sm:$0xf]
  %v245 = vld [vmem:[%s1 + $0x300] sm:$0xf]
  %v246 = vld [vmem:[%s1 + $0x304] sm:$0xf]
  %v247 = vld [vmem:[%s1 + $0x308] sm:$0xf]
  %v248 = vld [vmem:[%s1 + $0x30c] sm:$0xf]
  %v249 = vld [vmem:[%s1 + $0x310] sm:$0xf]
  %v250 = vld [vmem:[%s1 + $0x314] sm:$0xf]
  %v251 = vld [vmem:[%s1 + $0x318] sm:$0xf]
  %v252 = vld [vmem:[%s1 + $0x31c] sm:$0xf]
  %v253 = vld [vmem:[%s1 + $0x320] sm:$0xf]
  %v254 = vld [vmem:[%s1 + $0x324] sm:$0xf]
  %v255 = vld [vmem:[%s1 + $0x328] sm:$0xf]
  %v256 = vld [vmem:[%s1 + $0x32c] sm:$0xf]
  %v257 = vld [vmem:[%s1 + $0x330] sm:$0xf]
  %v258 = vld [vmem:[%s1 + $0x334] sm:$0xf]
  %v259 = vld [vmem:[%s1 + $0x338] sm:$0xf]
  %v260 = vld [vmem:[%s1 + $0x33c] sm:$0xf]
  %v261 = vld [vmem:[%s1 + $0x340] sm:$0xf]
  %v262 = vld [vmem:[%s1 + $0x344] sm:$0xf]
  %v263 = vld [vmem:[%s1 + $0x348] sm:$0xf]
  %v264 = vld [vmem:[%s1 + $0x34c] sm:$0xf]
  %v265 = vld [vmem:[%s1 + $0x350] sm:$0xf]
  %v266 = vld [vmem:[%s1 + $0x354] sm:$0xf]
  %v267 = vld [vmem:[%s1 + $0x358] sm:$0xf]
  %v268 = vld [vmem:[%s1 + $0x35c] sm:$0xf]
  %v269 = vld [vmem:[%s1 + $0x360] sm:$0xf]
  %v270 = vld [vmem:[%s1 + $0x364] sm:$0xf]
  %v271 = vld [vmem:[%s1 + $0x368] sm:$0xf]
  %v272 = vld [vmem:[%s1 + $0x36c] sm:$0xf]
  %v273 = vld [vmem:[%s1 + $0x370] sm:$0xf]
  %v274 = vld [vmem:[%s1 + $0x374] sm:$0xf]
  %v275 = vld [vmem:[%s1 + $0x378] sm:$0xf]
  %v276 = vld [vmem:[%s1 + $0x37c] sm:$0xf]
  %v277 = vld [vmem:[%s1 + $0x380] sm:$0xf]
  %v278 = vld [vmem:[%s1 + $0x384] sm:$0xf]
  %v279 = vld [vmem:[%s1 + $0x388] sm:$0xf]
  %v280 = vld [vmem:[%s1 + $0x38c] sm:$0xf]
  %v281 = vld [vmem:[%s1 + $0x390] sm:$0xf]
  %v282 = vld [vmem:[%s1 + $0x394] sm:$0xf]
  %v283 = vld [vmem:[%s1 + $0x398] sm:$0xf]
  %v284 = vld [vmem:[%s1 + $0x39c] sm:$0xf]
  %v285 = vld [vmem:[%s1 + $0x3a0] sm:$0xf]
  %v286 = vld [vmem:[%s1 + $0x3a4] sm:$0xf]
  %v287 = vld [vmem:[%s1 + $0x3a8] sm:$0xf]
  %v288 = vld [vmem:[%s1 + $0x3ac] sm:$0xf]
  %v289 = vld [vmem:[%s1 + $0x3b0] sm:$0xf]
  %v290 = vld [vmem:[%s1 + $0x3b4] sm:$0xf]
  %v291 = vld [vmem:[%s1 + $0x3b8] sm:$0xf]
  %v292 = vld [vmem:[%s1 + $0x3bc] sm:$0xf]
  %v293 = vld [vmem:[%s1 + $0x3c0] sm:$0xf]
  %v294 = vld [vmem:[%s1 + $0x3c4] sm:$0xf]
  %v295 = vld [vmem:[%s1 + $0x3c8] sm:$0xf]
  %v296 = vld [vmem:[%s1 + $0x3cc] sm:$0xf]
  %v297 = vld [vmem:[%s1 + $0x3d0] sm:$0xf]
  %v298 = vld [vmem:[%s1 + $0x3d4] sm:$0xf]
  %v299 = vld [vmem:[%s1 + $0x3d8] sm:$0xf]
  %v300 = vld [vmem:[%s1 + $0x3dc] sm:$0xf]
  %v301 = vld [vmem:[%s1 + $0x3e0] sm:$0xf]
  %v302 = vld [vmem:[%s1 + $0x3e4] sm:$0xf]
  %v303 = vld [vmem:[%s1 + $0x3e8] sm:$0xf]
  %v304 = vld [vmem:[%s1 + $0x3ec] sm:$0xf]
  %v305 = vld [vmem:[%s1 + $0x3f0] sm:$0xf]
  %v306 = vld [vmem:[%s1 + $0x3f4] sm:$0xf]
  %v307 = vld [vmem:[%s1 + $0x3f8] sm:$0xf]
  %v308 = vld [vmem:[%s1 + $0x3fc] sm:$0xf]
  %v309 = vld [vmem:[%s1 + $0x400] sm:$0xf]
  %v310 = vld [vmem:[%s1 + $0x404] sm:$0xf]
  %v311 = vld [vmem:[%s1 + $0x408] sm:$0xf]
  %v312 = vld [vmem:[%s1 + $0x40c] sm:$0xf]
  %v313 = vld [vmem:[%s1 + $0x410] sm:$0xf]
  %v314 = vld [vmem:[%s1 + $0x414] sm:$0xf]
  %v315 = vld [vmem:[%s1 + $0x418] sm:$0xf]
  %v316 = vld [vmem:[%s1 + $0x41c] sm:$0xf]
  %v317 = vld [vmem:[%s1 + $0x420] sm:$0xf]
  %v318 = vld [vmem:[%s1 + $0x424] sm:$0xf]
  %v319 = vld [vmem:[%s1 + $0x428] sm:$0xf]
  %v320 = vld [vmem:[%s1 + $0x42c] sm:$0xf]
  %v321 = vld [vmem:[%s1 + $0x430] sm:$0xf]
  %v322 = vld [vmem:[%s1 + $0x434] sm:$0xf]
  %v323 = vld [vmem:[%s1 + $0x438] sm:$0xf]
  %v324 = vld [vmem:[%s1 + $0x43c] sm:$0xf]
  %v325 = vld [vmem:[%s1 + $0x440] sm:$0xf]
  %v326 = vld [vmem:[%s1 + $0x444] sm:$0xf]
  %v327 = vld [vmem:[%s1 + $0x448] sm:$0xf]
  %v328 = vld [vmem:[%s1 + $0x44c] sm:$0xf]
  %v329 = vld [vmem:[%s1 + $0x450] sm:$0xf]
  %v330 = vld [vmem:[%s1 + $0x454] sm:$0xf]
  %v331 = vld [vmem:[%s1 + $0x458] sm:$0xf]
  %v332 = vld [vmem:[%s1 + $0x45c] sm:$0xf]
  %v333 = vld [vmem:[%s1 + $0x460] sm:$0xf]
  %v334 = vld [vmem:[%s1 + $0x464] sm:$0xf]
  %v335 = vld [vmem:[%s1 + $0x468] sm:$0xf]
  %v336 = vld [vmem:[%s1 + $0x46c] sm:$0xf]
  %v337 = vld [vmem:[%s1 + $0x470] sm:$0xf]
  %v338 = vld [vmem:[%s1 + $0x474] sm:$0xf]
  %v339 = vld [vmem:[%s1 + $0x478] sm:$0xf]
  %v340 = vld [vmem:[%s1 + $0x47c] sm:$0xf]
  %v341 = vld [vmem:[%s1 + $0x480] sm:$0xf]
  %v342 = vld [vmem:[%s1 + $0x484] sm:$0xf]
  %v343 = vld [vmem:[%s1 + $0x488] sm:$0xf]
  %v344 = vld [vmem:[%s1 + $0x48c] sm:$0xf]
  %v345 = vld [vmem:[%s1 + $0x490] sm:$0xf]
  %v346 = vld [vmem:[%s1 + $0x494] sm:$0xf]
  %v347 = vld [vmem:[%s1 + $0x498] sm:$0xf]
  %v348 = vld [vmem:[%s1 + $0x49c] sm:$0xf]
  %v349 = vld [vmem:[%s1 + $0x4a0] sm:$0xf]
  %v350 = vld [vmem:[%s1 + $0x4a4] sm:$0xf]
  %v351 = vld [vmem:[%s1 + $0x4a8] sm:$0xf]
  %v352 = vld [vmem:[%s1 + $0x4ac] sm:$0xf]
  %v353 = vld [vmem:[%s1 + $0x4b0] sm:$0xf]
  %v354 = vld [vmem:[%s1 + $0x4b4] sm:$0xf]
  %v355 = vld [vmem:[%s1 + $0x4b8] sm:$0xf]
  %v356 = vld [vmem:[%s1 + $0x4bc] sm:$0xf]
  %v357 = vld [vmem:[%s1 + $0x4c0] sm:$0xf]
  %v358 = vld [vmem:[%s1 + $0x4c4] sm:$0xf]
  %v359 = vld [vmem:[%s1 + $0x4c8] sm:$0xf]
  %v360 = vld [vmem:[%s1 + $0x4cc] sm:$0xf]
  %v361 = vld [vmem:[%s1 + $0x4d0] sm:$0xf]
  %v362 = vld [vmem:[%s1 + $0x4d4] sm:$0xf]
  %v363 = vld [vmem:[%s1 + $0x4d8] sm:$0xf]
  %v364 = vld [vmem:[%s1 + $0x4dc] sm:$0xf]
  %v365 = vld [vmem:[%s1 + $0x4e0] sm:$0xf]
  %v366 = vld [vmem:[%s1 + $0x4e4] sm:$0xf]
  %v367 = vld [vmem:[%s1 + $0x4e8] sm:$0xf]
  %v368 = vld [vmem:[%s1 + $0x4ec] sm:$0xf]
  %v369 = vld [vmem:[%s1 + $0x4f0] sm:$0xf]
  %v370 = vld [vmem:[%s1 + $0x4f4] sm:$0xf]
  %v371 = vld [vmem:[%s1 + $0x4f8] sm:$0xf]
  %v372 = vld [vmem:[%s1 + $0x4fc] sm:$0xf]
  %v373 = vld [vmem:[%s1 + $0x500] sm:$0xf]
  %v374 = vld [vmem:[%s1 + $0x504] sm:$0xf]
  %v375 = vld [vmem:[%s1 + $0x508] sm:$0xf]
  %v376 = vld [vmem:[%s1 + $0x50c] sm:$0xf]
  %v377 = vld [vmem:[%s1 + $0x510] sm:$0xf]
  %v378 = vld [vmem:[%s1 + $0x514] sm:$0xf]
  %v379 = vld [vmem:[%s1 + $0x518] sm:$0xf]
  %v380 = vld [vmem:[%s1 + $0x51c] sm:$0xf]
  %v381 = vld [vmem:[%s1 + $0x520] sm:$0xf]
  %v382 = vld [vmem:[%s1 + $0x524] sm:$0xf]
  %v383 = vld [vmem:[%s1 + $0x528] sm:$0xf]
  %v384 = vld [vmem:[%s1 + $0x52c] sm:$0xf]
  %v385 = vld [vmem:[%s1 + $0x530] sm:$0xf]
  %v386 = vld [vmem:[%s1 + $0x534] sm:$0xf]
  %v387 = vld [vmem:[%s1 + $0x538] sm:$0xf]
  %v388 = vld [vmem:[%s1 + $0x53c] sm:$0xf]
  %v389 = vld [vmem:[%s1 + $0x540] sm:$0xf]
  %v390 = vld [vmem:[%s1 + $0x544] sm:$0xf]
  %v391 = vld [vmem:[%s1 + $0x548] sm:$0xf]
  %v392 = vld [vmem:[%s1 + $0x54c] sm:$0xf]
  %v393 = vld [vmem:[%s1 + $0x550] sm:$0xf]
  %v394 = vld [vmem:[%s1 + $0x554] sm:$0xf]
  %v395 = vld [vmem:[%s1 + $0x558] sm:$0xf]
  %v396 = vld [vmem:[%s1 + $0x55c] sm:$0xf]
  %v397 = vld [vmem:[%s1 + $0x560] sm:$0xf]
  %v398 = vld [vmem:[%s1 + $0x564] sm:$0xf]
  %v399 = vld [vmem:[%s1 + $0x568] sm:$0xf]
  %v400 = vld [vmem:[%s1 + $0x56c] sm:$0xf]
  %v401 = vld [vmem:[%s1 + $0x570] sm:$0xf]
  %v402 = vld [vmem:[%s1 + $0x574] sm:$0xf]
  %v403 = vld [vmem:[%s1 + $0x578] sm:$0xf]
  %v404 = vld [vmem:[%s1 + $0x57c] sm:$0xf]
  %v405 = vld [vmem:[%s1 + $0x580] sm:$0xf]
  %v406 = vld [vmem:[%s1 + $0x584] sm:$0xf]
  %v407 = vld [vmem:[%s1 + $0x588] sm:$0xf]
  %v408 = vld [vmem:[%s1 + $0x58c] sm:$0xf]
  %v409 = vld [vmem:[%s1 + $0x590] sm:$0xf]
  %v410 = vld [vmem:[%s1 + $0x594] sm:$0xf]
  %v411 = vld [vmem:[%s1 + $0x598] sm:$0xf]
  %v412 = vld [vmem:[%s1 + $0x59c] sm:$0xf]
  %v413 = vld [vmem:[%s1 + $0x5a0] sm:$0xf]
  %v414 = vld [vmem:[%s1 + $0x5a4] sm:$0xf]
  %v415 = vld [vmem:[%s1 + $0x5a8] sm:$0xf]
  %v416 = vld [vmem:[%s1 + $0x5ac] sm:$0xf]
  %v417 = vld [vmem:[%s1 + $0x5b0] sm:$0xf]
  %v418 = vld [vmem:[%s1 + $0x5b4] sm:$0xf]
  %v419 = vld [vmem:[%s1 + $0x5b8] sm:$0xf]
  %v420 = vld [vmem:[%s1 + $0x5bc] sm:$0xf]
  %v421 = vld [vmem:[%s1 + $0x5c0] sm:$0xf]
  %v422 = vld [vmem:[%s1 + $0x5c4] sm:$0xf]
  %v423 = vld [vmem:[%s1 + $0x5c8] sm:$0xf]
  %v424 = vld [vmem:[%s1 + $0x5cc] sm:$0xf]
  %v425 = vld [vmem:[%s1 + $0x5d0] sm:$0xf]
  %v426 = vld [vmem:[%s1 + $0x5d4] sm:$0xf]
  %v427 = vld [vmem:[%s1 + $0x5d8] sm:$0xf]
  %v428 = vld [vmem:[%s1 + $0x5dc] sm:$0xf]
  %v429 = vld [vmem:[%s1 + $0x5e0] sm:$0xf]
  %v430 = vld [vmem:[%s1 + $0x5e4] sm:$0xf]
  %v431 = vld [vmem:[%s1 + $0x5e8] sm:$0xf]
  %v432 = vld [vmem:[%s1 + $0x5ec] sm:$0xf]
  %v433 = vld [vmem:[%s1 + $0x5f0] sm:$0xf]
  %v434 = vld [vmem:[%s1 + $0x5f4] sm:$0xf]
  %v435 = vld [vmem:[%s1 + $0x5f8] sm:$0xf]
  %v436 = vld [vmem:[%s1 + $0x5fc] sm:$0xf]
  %v437 = vld [vmem:[%s1 + $0x600] sm:$0xf]
  %v438 = vld [vmem:[%s1 + $0x604] sm:$0xf]
  %v439 = vld [vmem:[%s1 + $0x608] sm:$0xf]
  %v440 = vld [vmem:[%s1 + $0x60c] sm:$0xf]
  %v441 = vld [vmem:[%s1 + $0x610] sm:$0xf]
  %v442 = vld [vmem:[%s1 + $0x614] sm:$0xf]
  %v443 = vld [vmem:[%s1 + $0x618] sm:$0xf]
  %v444 = vld [vmem:[%s1 + $0x61c] sm:$0xf]
  %v445 = vld [vmem:[%s1 + $0x620] sm:$0xf]
  %v446 = vld [vmem:[%s1 + $0x624] sm:$0xf]
  %v447 = vld [vmem:[%s1 + $0x628] sm:$0xf]
  %v448 = vld [vmem:[%s1 + $0x62c] sm:$0xf]
  %v449 = vld [vmem:[%s1 + $0x630] sm:$0xf]
  %v450 = vld [vmem:[%s1 + $0x634] sm:$0xf]
  %v451 = vld [vmem:[%s1 + $0x638] sm:$0xf]
  %v452 = vld [vmem:[%s1 + $0x63c] sm:$0xf]
  %v453 = vld [vmem:[%s2] sm:$0x1]
  %v455 = vlaneseq
  %v456 = vshrl.u32 %v455, 7
  %v457 = vsub.s32 0, %v456
  %v458 = vrot.slane %v453, %v457
  %v486 = vunpack.c.l.b16 %v27
  %v487 = vunpack.c.h.b16 %v27
  %v488 = vunpack.c.l.b16 %v28
  %v489 = vunpack.c.h.b16 %v28
  %v490 = vunpack.c.l.b16 %v29
  %v491 = vunpack.c.h.b16 %v29
  %v492 = vunpack.c.l.b16 %v30
  %v493 = vunpack.c.h.b16 %v30
  %v494 = vunpack.c.l.b16 %v31
  %v495 = vunpack.c.h.b16 %v31
  %v496 = vunpack.c.l.b16 %v32
  %v497 = vunpack.c.h.b16 %v32
  %v498 = vunpack.c.l.b16 %v33
  %v499 = vunpack.c.h.b16 %v33
  %v500 = vunpack.c.l.b16 %v34
  %v501 = vunpack.c.h.b16 %v34
  %v502 = vunpack.c.l.b16 %v35
  %v503 = vunpack.c.h.b16 %v35
  %v504 = vunpack.c.l.b16 %v36
  %v505 = vunpack.c.h.b16 %v36
  %v506 = vunpack.c.l.b16 %v37
  %v507 = vunpack.c.h.b16 %v37
  %v508 = vunpack.c.l.b16 %v38
  %v509 = vunpack.c.h.b16 %v38
  %v510 = vunpack.c.l.b16 %v39
  %v511 = vunpack.c.l.b16 %v40
  %v512 = vunpack.c.h.b16 %v40
  %v513 = vunpack.c.l.b16 %v41
  %v514 = vunpack.c.h.b16 %v41
  %v515 = vunpack.c.l.b16 %v42
  %v516 = vunpack.c.h.b16 %v42
  %v517 = vunpack.c.l.b16 %v43
  %v518 = vunpack.c.h.b16 %v43
  %v519 = vunpack.c.l.b16 %v44
  %v520 = vunpack.c.h.b16 %v44
  %v521 = vunpack.c.l.b16 %v45
  %v522 = vunpack.c.h.b16 %v45
  %v523 = vunpack.c.l.b16 %v46
  %v524 = vunpack.c.h.b16 %v46
  %v525 = vunpack.c.l.b16 %v47
  %v526 = vunpack.c.h.b16 %v47
  %v527 = vunpack.c.l.b16 %v48
  %v528 = vunpack.c.h.b16 %v48
  %v529 = vunpack.c.l.b16 %v49
  %v530 = vunpack.c.h.b16 %v49
  %v531 = vunpack.c.l.b16 %v50
  %v532 = vunpack.c.h.b16 %v50
  %v533 = vunpack.c.l.b16 %v51
  %v534 = vunpack.c.h.b16 %v51
  %v535 = vunpack.c.l.b16 %v52
  %v536 = vpack.c.b16 %v511, %v486
  %v537 = vpack.c.b16 %v512, %v487
  %v538 = vpack.c.b16 %v513, %v488
  %v539 = vpack.c.b16 %v514, %v489
  %v540 = vpack.c.b16 %v515, %v490
  %v541 = vpack.c.b16 %v516, %v491
  %v542 = vpack.c.b16 %v517, %v492
  %v543 = vpack.c.b16 %v518, %v493
  %v544 = vpack.c.b16 %v519, %v494
  %v545 = vpack.c.b16 %v520, %v495
  %v546 = vpack.c.b16 %v521, %v496
  %v547 = vpack.c.b16 %v522, %v497
  %v548 = vpack.c.b16 %v523, %v498
  %v549 = vpack.c.b16 %v524, %v499
  %v550 = vpack.c.b16 %v525, %v500
  %v551 = vpack.c.b16 %v526, %v501
  %v552 = vpack.c.b16 %v527, %v502
  %v553 = vpack.c.b16 %v528, %v503
  %v554 = vpack.c.b16 %v529, %v504
  %v555 = vpack.c.b16 %v530, %v505
  %v556 = vpack.c.b16 %v531, %v506
  %v557 = vpack.c.b16 %v532, %v507
  %v558 = vpack.c.b16 %v533, %v508
  %v559 = vpack.c.b16 %v534, %v509
  %v560 = vpack.c.b16 %v535, %v510
  %v986 = vunpack.c.l.b16 %v53
  %v987 = vunpack.c.l.b16 %v54
  %v988 = vunpack.c.l.b16 %v55
  %v989 = vunpack.c.l.b16 %v56
  %v990 = vunpack.c.l.b16 %v57
  %v991 = vunpack.c.l.b16 %v58
  %v992 = vunpack.c.l.b16 %v59
  %v993 = vunpack.c.l.b16 %v60
  %v994 = vunpack.c.l.b16 %v61
  %v995 = vunpack.c.l.b16 %v62
  %v996 = vunpack.c.l.b16 %v63
  %v997 = vunpack.c.l.b16 %v64
  %v998 = vunpack.c.l.b16 %v65
  %v999 = vunpack.c.l.b16 %v66
  %v1000 = vunpack.c.l.b16 %v67
  %v1001 = vunpack.c.l.b16 %v68
  %v1002 = vunpack.c.l.b16 %v69
  %v1003 = vunpack.c.l.b16 %v70
  %v1004 = vunpack.c.l.b16 %v71
  %v1005 = vunpack.c.l.b16 %v72
  %v1006 = vunpack.c.l.b16 %v73
  %v1007 = vunpack.c.l.b16 %v74
  %v1008 = vunpack.c.l.b16 %v75
  %v1009 = vunpack.c.l.b16 %v76
  %v1010 = vunpack.c.l.b16 %v77
  %v1011 = vunpack.c.l.b16 %v78
  %v1012 = vunpack.c.l.b16 %v79
  %v1013 = vunpack.c.l.b16 %v80
  %v1014 = vunpack.c.l.b16 %v81
  %v1015 = vunpack.c.l.b16 %v82
  %v1016 = vunpack.c.l.b16 %v83
  %v1017 = vunpack.c.l.b16 %v84
  %v1018 = vunpack.c.l.b16 %v85
  %v1019 = vunpack.c.l.b16 %v86
  %v1020 = vunpack.c.l.b16 %v87
  %v1021 = vunpack.c.l.b16 %v88
  %v1022 = vunpack.c.l.b16 %v89
  %v1023 = vunpack.c.l.b16 %v90
  %v1024 = vunpack.c.l.b16 %v91
  %v1025 = vunpack.c.l.b16 %v92
  %v1026 = vunpack.c.l.b16 %v93
  %v1027 = vunpack.c.l.b16 %v94
  %v1028 = vunpack.c.l.b16 %v95
  %v1029 = vunpack.c.l.b16 %v96
  %v1030 = vunpack.c.l.b16 %v97
  %v1031 = vunpack.c.l.b16 %v98
  %v1032 = vunpack.c.l.b16 %v99
  %v1033 = vunpack.c.l.b16 %v100
  %v1034 = vunpack.c.l.b16 %v101
  %v1035 = vunpack.c.l.b16 %v102
  %v1036 = vunpack.c.l.b16 %v103
  %v1037 = vunpack.c.l.b16 %v104
  %v1038 = vunpack.c.l.b16 %v105
  %v1039 = vunpack.c.l.b16 %v106
  %v1040 = vunpack.c.l.b16 %v107
  %v1041 = vunpack.c.l.b16 %v108
  %v1042 = vunpack.c.l.b16 %v109
  %v1043 = vunpack.c.l.b16 %v110
  %v1044 = vunpack.c.l.b16 %v111
  %v1045 = vunpack.c.l.b16 %v112
  %v1046 = vunpack.c.l.b16 %v113
  %v1047 = vunpack.c.l.b16 %v114
  %v1048 = vunpack.c.l.b16 %v115
  %v1049 = vunpack.c.l.b16 %v116
  %v1050 = vunpack.c.l.b16 %v117
  %v1051 = vunpack.c.l.b16 %v118
  %v1052 = vunpack.c.l.b16 %v119
  %v1053 = vunpack.c.l.b16 %v120
  %v1054 = vunpack.c.l.b16 %v121
  %v1055 = vunpack.c.l.b16 %v122
  %v1056 = vunpack.c.l.b16 %v123
  %v1057 = vunpack.c.l.b16 %v124
  %v1058 = vunpack.c.l.b16 %v125
  %v1059 = vunpack.c.l.b16 %v126
  %v1060 = vunpack.c.l.b16 %v127
  %v1061 = vunpack.c.l.b16 %v128
  %v1062 = vunpack.c.l.b16 %v129
  %v1063 = vunpack.c.l.b16 %v130
  %v1064 = vunpack.c.l.b16 %v131
  %v1065 = vunpack.c.l.b16 %v132
  %v1066 = vunpack.c.l.b16 %v133
  %v1067 = vunpack.c.l.b16 %v134
  %v1068 = vunpack.c.l.b16 %v135
  %v1069 = vunpack.c.l.b16 %v136
  %v1070 = vunpack.c.l.b16 %v137
  %v1071 = vunpack.c.l.b16 %v138
  %v1072 = vunpack.c.l.b16 %v139
  %v1073 = vunpack.c.l.b16 %v140
  %v1074 = vunpack.c.l.b16 %v141
  %v1075 = vunpack.c.l.b16 %v142
  %v1076 = vunpack.c.l.b16 %v143
  %v1077 = vunpack.c.l.b16 %v144
  %v1078 = vunpack.c.l.b16 %v145
  %v1079 = vunpack.c.l.b16 %v146
  %v1080 = vunpack.c.l.b16 %v147
  %v1081 = vunpack.c.l.b16 %v148
  %v1082 = vunpack.c.l.b16 %v149
  %v1083 = vunpack.c.l.b16 %v150
  %v1084 = vunpack.c.l.b16 %v151
  %v1085 = vunpack.c.l.b16 %v152
  %v1086 = vunpack.c.l.b16 %v153
  %v1087 = vunpack.c.l.b16 %v154
  %v1088 = vunpack.c.l.b16 %v155
  %v1089 = vunpack.c.l.b16 %v156
  %v1090 = vunpack.c.l.b16 %v157
  %v1091 = vunpack.c.l.b16 %v158
  %v1092 = vunpack.c.l.b16 %v159
  %v1093 = vunpack.c.l.b16 %v160
  %v1094 = vunpack.c.l.b16 %v161
  %v1095 = vunpack.c.l.b16 %v162
  %v1096 = vunpack.c.l.b16 %v163
  %v1097 = vunpack.c.l.b16 %v164
  %v1098 = vunpack.c.l.b16 %v165
  %v1099 = vunpack.c.l.b16 %v166
  %v1100 = vunpack.c.l.b16 %v167
  %v1101 = vunpack.c.l.b16 %v168
  %v1102 = vunpack.c.l.b16 %v169
  %v1103 = vunpack.c.l.b16 %v170
  %v1104 = vunpack.c.l.b16 %v171
  %v1105 = vunpack.c.l.b16 %v172
  %v1106 = vunpack.c.l.b16 %v173
  %v1107 = vunpack.c.l.b16 %v174
  %v1108 = vunpack.c.l.b16 %v175
  %v1109 = vunpack.c.l.b16 %v176
  %v1110 = vunpack.c.l.b16 %v177
  %v1111 = vunpack.c.l.b16 %v178
  %v1112 = vunpack.c.l.b16 %v179
  %v1113 = vunpack.c.l.b16 %v180
  %v1114 = vunpack.c.l.b16 %v181
  %v1115 = vunpack.c.l.b16 %v182
  %v1116 = vunpack.c.l.b16 %v183
  %v1117 = vunpack.c.l.b16 %v184
  %v1118 = vunpack.c.l.b16 %v185
  %v1119 = vunpack.c.l.b16 %v186
  %v1120 = vunpack.c.l.b16 %v187
  %v1121 = vunpack.c.l.b16 %v188
  %v1122 = vunpack.c.l.b16 %v189
  %v1123 = vunpack.c.l.b16 %v190
  %v1124 = vunpack.c.l.b16 %v191
  %v1125 = vunpack.c.l.b16 %v192
  %v1126 = vunpack.c.l.b16 %v193
  %v1127 = vunpack.c.l.b16 %v194
  %v1128 = vunpack.c.l.b16 %v195
  %v1129 = vunpack.c.l.b16 %v196
  %v1130 = vunpack.c.l.b16 %v197
  %v1131 = vunpack.c.l.b16 %v198
  %v1132 = vunpack.c.l.b16 %v199
  %v1133 = vunpack.c.l.b16 %v200
  %v1134 = vunpack.c.l.b16 %v201
  %v1135 = vunpack.c.l.b16 %v202
  %v1136 = vunpack.c.l.b16 %v203
  %v1137 = vunpack.c.l.b16 %v204
  %v1138 = vunpack.c.l.b16 %v205
  %v1139 = vunpack.c.l.b16 %v206
  %v1140 = vunpack.c.l.b16 %v207
  %v1141 = vunpack.c.l.b16 %v208
  %v1142 = vunpack.c.l.b16 %v209
  %v1143 = vunpack.c.l.b16 %v210
  %v1144 = vunpack.c.l.b16 %v211
  %v1145 = vunpack.c.l.b16 %v212
  %v1146 = vunpack.c.l.b16 %v213
  %v1147 = vunpack.c.l.b16 %v214
  %v1148 = vunpack.c.l.b16 %v215
  %v1149 = vunpack.c.l.b16 %v216
  %v1150 = vunpack.c.l.b16 %v217
  %v1151 = vunpack.c.l.b16 %v218
  %v1152 = vunpack.c.l.b16 %v219
  %v1153 = vunpack.c.l.b16 %v220
  %v1154 = vunpack.c.l.b16 %v221
  %v1155 = vunpack.c.l.b16 %v222
  %v1156 = vunpack.c.l.b16 %v223
  %v1157 = vunpack.c.l.b16 %v224
  %v1158 = vunpack.c.l.b16 %v225
  %v1159 = vunpack.c.l.b16 %v226
  %v1160 = vunpack.c.l.b16 %v227
  %v1161 = vunpack.c.l.b16 %v228
  %v1162 = vunpack.c.l.b16 %v229
  %v1163 = vunpack.c.l.b16 %v230
  %v1164 = vunpack.c.l.b16 %v231
  %v1165 = vunpack.c.l.b16 %v232
  %v1166 = vunpack.c.l.b16 %v233
  %v1167 = vunpack.c.l.b16 %v234
  %v1168 = vunpack.c.l.b16 %v235
  %v1169 = vunpack.c.l.b16 %v236
  %v1170 = vunpack.c.l.b16 %v237
  %v1171 = vunpack.c.l.b16 %v238
  %v1172 = vunpack.c.l.b16 %v239
  %v1173 = vunpack.c.l.b16 %v240
  %v1174 = vunpack.c.l.b16 %v241
  %v1175 = vunpack.c.l.b16 %v242
  %v1176 = vunpack.c.l.b16 %v243
  %v1177 = vunpack.c.l.b16 %v244
  %v1178 = vunpack.c.l.b16 %v245
  %v1179 = vunpack.c.l.b16 %v246
  %v1180 = vunpack.c.l.b16 %v247
  %v1181 = vunpack.c.l.b16 %v248
  %v1182 = vunpack.c.l.b16 %v249
  %v1183 = vunpack.c.l.b16 %v250
  %v1184 = vunpack.c.l.b16 %v251
  %v1185 = vunpack.c.l.b16 %v252
  %v1186 = vunpack.c.l.b16 %v253
  %v1187 = vunpack.c.l.b16 %v254
  %v1188 = vunpack.c.l.b16 %v255
  %v1189 = vunpack.c.l.b16 %v256
  %v1190 = vunpack.c.l.b16 %v257
  %v1191 = vunpack.c.l.b16 %v258
  %v1192 = vunpack.c.l.b16 %v259
  %v1193 = vunpack.c.l.b16 %v260
  %v1194 = vunpack.c.l.b16 %v261
  %v1195 = vunpack.c.l.b16 %v262
  %v1196 = vunpack.c.l.b16 %v263
  %v1197 = vunpack.c.l.b16 %v264
  %v1198 = vunpack.c.l.b16 %v265
  %v1199 = vunpack.c.l.b16 %v266
  %v1200 = vunpack.c.l.b16 %v267
  %v1201 = vunpack.c.l.b16 %v268
  %v1202 = vunpack.c.l.b16 %v269
  %v1203 = vunpack.c.l.b16 %v270
  %v1204 = vunpack.c.l.b16 %v271
  %v1205 = vunpack.c.l.b16 %v272
  %v1206 = vunpack.c.l.b16 %v273
  %v1207 = vunpack.c.l.b16 %v274
  %v1208 = vunpack.c.l.b16 %v275
  %v1209 = vunpack.c.l.b16 %v276
  %v1210 = vunpack.c.l.b16 %v277
  %v1211 = vunpack.c.l.b16 %v278
  %v1212 = vunpack.c.l.b16 %v279
  %v1213 = vunpack.c.l.b16 %v280
  %v1214 = vunpack.c.l.b16 %v281
  %v1215 = vunpack.c.l.b16 %v282
  %v1216 = vunpack.c.l.b16 %v283
  %v1217 = vunpack.c.l.b16 %v284
  %v1218 = vunpack.c.l.b16 %v285
  %v1219 = vunpack.c.l.b16 %v286
  %v1220 = vunpack.c.l.b16 %v287
  %v1221 = vunpack.c.l.b16 %v288
  %v1222 = vunpack.c.l.b16 %v289
  %v1223 = vunpack.c.l.b16 %v290
  %v1224 = vunpack.c.l.b16 %v291
  %v1225 = vunpack.c.l.b16 %v292
  %v1226 = vunpack.c.l.b16 %v293
  %v1227 = vunpack.c.l.b16 %v294
  %v1228 = vunpack.c.l.b16 %v295
  %v1229 = vunpack.c.l.b16 %v296
  %v1230 = vunpack.c.l.b16 %v297
  %v1231 = vunpack.c.l.b16 %v298
  %v1232 = vunpack.c.l.b16 %v299
  %v1233 = vunpack.c.l.b16 %v300
  %v1234 = vunpack.c.l.b16 %v301
  %v1235 = vunpack.c.l.b16 %v302
  %v1236 = vunpack.c.l.b16 %v303
  %v1237 = vunpack.c.l.b16 %v304
  %v1238 = vunpack.c.l.b16 %v305
  %v1239 = vunpack.c.l.b16 %v306
  %v1240 = vunpack.c.l.b16 %v307
  %v1241 = vunpack.c.l.b16 %v308
  %v1242 = vunpack.c.l.b16 %v309
  %v1243 = vunpack.c.l.b16 %v310
  %v1244 = vunpack.c.l.b16 %v311
  %v1245 = vunpack.c.l.b16 %v312
  %v1246 = vunpack.c.l.b16 %v313
  %v1247 = vunpack.c.l.b16 %v314
  %v1248 = vunpack.c.l.b16 %v315
  %v1249 = vunpack.c.l.b16 %v316
  %v1250 = vunpack.c.l.b16 %v317
  %v1251 = vunpack.c.l.b16 %v318
  %v1252 = vunpack.c.l.b16 %v319
  %v1253 = vunpack.c.l.b16 %v320
  %v1254 = vunpack.c.l.b16 %v321
  %v1255 = vunpack.c.l.b16 %v322
  %v1256 = vunpack.c.l.b16 %v323
  %v1257 = vunpack.c.l.b16 %v324
  %v1258 = vunpack.c.l.b16 %v325
  %v1259 = vunpack.c.l.b16 %v326
  %v1260 = vunpack.c.l.b16 %v327
  %v1261 = vunpack.c.l.b16 %v328
  %v1262 = vunpack.c.l.b16 %v329
  %v1263 = vunpack.c.l.b16 %v330
  %v1264 = vunpack.c.l.b16 %v331
  %v1265 = vunpack.c.l.b16 %v332
  %v1266 = vunpack.c.l.b16 %v333
  %v1267 = vunpack.c.l.b16 %v334
  %v1268 = vunpack.c.l.b16 %v335
  %v1269 = vunpack.c.l.b16 %v336
  %v1270 = vunpack.c.l.b16 %v337
  %v1271 = vunpack.c.l.b16 %v338
  %v1272 = vunpack.c.l.b16 %v339
  %v1273 = vunpack.c.l.b16 %v340
  %v1274 = vunpack.c.l.b16 %v341
  %v1275 = vunpack.c.l.b16 %v342
  %v1276 = vunpack.c.l.b16 %v343
  %v1277 = vunpack.c.l.b16 %v344
  %v1278 = vunpack.c.l.b16 %v345
  %v1279 = vunpack.c.l.b16 %v346
  %v1280 = vunpack.c.l.b16 %v347
  %v1281 = vunpack.c.l.b16 %v348
  %v1282 = vunpack.c.l.b16 %v349
  %v1283 = vunpack.c.l.b16 %v350
  %v1284 = vunpack.c.l.b16 %v351
  %v1285 = vunpack.c.l.b16 %v352
  %v1286 = vunpack.c.l.b16 %v353
  %v1287 = vunpack.c.l.b16 %v354
  %v1288 = vunpack.c.l.b16 %v355
  %v1289 = vunpack.c.l.b16 %v356
  %v1290 = vunpack.c.l.b16 %v357
  %v1291 = vunpack.c.l.b16 %v358
  %v1292 = vunpack.c.l.b16 %v359
  %v1293 = vunpack.c.l.b16 %v360
  %v1294 = vunpack.c.l.b16 %v361
  %v1295 = vunpack.c.l.b16 %v362
  %v1296 = vunpack.c.l.b16 %v363
  %v1297 = vunpack.c.l.b16 %v364
  %v1298 = vunpack.c.l.b16 %v365
  %v1299 = vunpack.c.l.b16 %v366
  %v1300 = vunpack.c.l.b16 %v367
  %v1301 = vunpack.c.l.b16 %v368
  %v1302 = vunpack.c.l.b16 %v369
  %v1303 = vunpack.c.l.b16 %v370
  %v1304 = vunpack.c.l.b16 %v371
  %v1305 = vunpack.c.l.b16 %v372
  %v1306 = vunpack.c.l.b16 %v373
  %v1307 = vunpack.c.l.b16 %v374
  %v1308 = vunpack.c.l.b16 %v375
  %v1309 = vunpack.c.l.b16 %v376
  %v1310 = vunpack.c.l.b16 %v377
  %v1311 = vunpack.c.l.b16 %v378
  %v1312 = vunpack.c.l.b16 %v379
  %v1313 = vunpack.c.l.b16 %v380
  %v1314 = vunpack.c.l.b16 %v381
  %v1315 = vunpack.c.l.b16 %v382
  %v1316 = vunpack.c.l.b16 %v383
  %v1317 = vunpack.c.l.b16 %v384
  %v1318 = vunpack.c.l.b16 %v385
  %v1319 = vunpack.c.l.b16 %v386
  %v1320 = vunpack.c.l.b16 %v387
  %v1321 = vunpack.c.l.b16 %v388
  %v1322 = vunpack.c.l.b16 %v389
  %v1323 = vunpack.c.l.b16 %v390
  %v1324 = vunpack.c.l.b16 %v391
  %v1325 = vunpack.c.l.b16 %v392
  %v1326 = vunpack.c.l.b16 %v393
  %v1327 = vunpack.c.l.b16 %v394
  %v1328 = vunpack.c.l.b16 %v395
  %v1329 = vunpack.c.l.b16 %v396
  %v1330 = vunpack.c.l.b16 %v397
  %v1331 = vunpack.c.l.b16 %v398
  %v1332 = vunpack.c.l.b16 %v399
  %v1333 = vunpack.c.l.b16 %v400
  %v1334 = vunpack.c.l.b16 %v401
  %v1335 = vunpack.c.l.b16 %v402
  %v1336 = vunpack.c.l.b16 %v403
  %v1337 = vunpack.c.l.b16 %v404
  %v1338 = vunpack.c.l.b16 %v405
  %v1339 = vunpack.c.l.b16 %v406
  %v1340 = vunpack.c.l.b16 %v407
  %v1341 = vunpack.c.l.b16 %v408
  %v1342 = vunpack.c.l.b16 %v409
  %v1343 = vunpack.c.l.b16 %v410
  %v1344 = vunpack.c.l.b16 %v411
  %v1345 = vunpack.c.l.b16 %v412
  %v1346 = vunpack.c.l.b16 %v413
  %v1347 = vunpack.c.l.b16 %v414
  %v1348 = vunpack.c.l.b16 %v415
  %v1349 = vunpack.c.l.b16 %v416
  %v1350 = vunpack.c.l.b16 %v417
  %v1351 = vunpack.c.l.b16 %v418
  %v1352 = vunpack.c.l.b16 %v419
  %v1353 = vunpack.c.l.b16 %v420
  %v1354 = vunpack.c.l.b16 %v421
  %v1355 = vunpack.c.l.b16 %v422
  %v1356 = vunpack.c.l.b16 %v423
  %v1357 = vunpack.c.l.b16 %v424
  %v1358 = vunpack.c.l.b16 %v425
  %v1359 = vunpack.c.l.b16 %v426
  %v1360 = vunpack.c.l.b16 %v427
  %v1361 = vunpack.c.l.b16 %v428
  %v1362 = vunpack.c.l.b16 %v429
  %v1363 = vunpack.c.l.b16 %v430
  %v1364 = vunpack.c.l.b16 %v431
  %v1365 = vunpack.c.l.b16 %v432
  %v1366 = vunpack.c.l.b16 %v433
  %v1367 = vunpack.c.l.b16 %v434
  %v1368 = vunpack.c.l.b16 %v435
  %v1369 = vunpack.c.l.b16 %v436
  %v1370 = vunpack.c.l.b16 %v437
  %v1371 = vunpack.c.l.b16 %v438
  %v1372 = vunpack.c.l.b16 %v439
  %v1373 = vunpack.c.l.b16 %v440
  %v1374 = vunpack.c.l.b16 %v441
  %v1375 = vunpack.c.l.b16 %v442
  %v1376 = vunpack.c.l.b16 %v443
  %v1377 = vunpack.c.l.b16 %v444
  %v1378 = vunpack.c.l.b16 %v445
  %v1379 = vunpack.c.l.b16 %v446
  %v1380 = vunpack.c.l.b16 %v447
  %v1381 = vunpack.c.l.b16 %v448
  %v1382 = vunpack.c.l.b16 %v449
  %v1383 = vunpack.c.l.b16 %v450
  %v1384 = vunpack.c.l.b16 %v451
  %v1385 = vunpack.c.l.b16 %v452
  %v1386 = vpack.c.b16 %v987, %v986
  %v1387 = vpack.c.b16 %v989, %v988
  %v1388 = vpack.c.b16 %v991, %v990
  %v1389 = vpack.c.b16 %v993, %v992
  %v1390 = vpack.c.b16 %v995, %v994
  %v1391 = vpack.c.b16 %v997, %v996
  %v1392 = vpack.c.b16 %v999, %v998
  %v1393 = vpack.c.b16 %v1001, %v1000
  %v1394 = vpack.c.b16 %v1003, %v1002
  %v1395 = vpack.c.b16 %v1005, %v1004
  %v1396 = vpack.c.b16 %v1007, %v1006
  %v1397 = vpack.c.b16 %v1009, %v1008
  %v1398 = vpack.c.b16 %v1011, %v1010
  %v1399 = vpack.c.b16 %v1013, %v1012
  %v1400 = vpack.c.b16 %v1015, %v1014
  %v1401 = vpack.c.b16 %v1017, %v1016
  %v1402 = vpack.c.b16 %v1019, %v1018
  %v1403 = vpack.c.b16 %v1021, %v1020
  %v1404 = vpack.c.b16 %v1023, %v1022
  %v1405 = vpack.c.b16 %v1025, %v1024
  %v1406 = vpack.c.b16 %v1027, %v1026
  %v1407 = vpack.c.b16 %v1029, %v1028
  %v1408 = vpack.c.b16 %v1031, %v1030
  %v1409 = vpack.c.b16 %v1033, %v1032
  %v1410 = vpack.c.b16 %v1035, %v1034
  %v1411 = vpack.c.b16 %v1037, %v1036
  %v1412 = vpack.c.b16 %v1039, %v1038
  %v1413 = vpack.c.b16 %v1041, %v1040
  %v1414 = vpack.c.b16 %v1043, %v1042
  %v1415 = vpack.c.b16 %v1045, %v1044
  %v1416 = vpack.c.b16 %v1047, %v1046
  %v1417 = vpack.c.b16 %v1049, %v1048
  %v1418 = vpack.c.b16 %v1051, %v1050
  %v1419 = vpack.c.b16 %v1053, %v1052
  %v1420 = vpack.c.b16 %v1055, %v1054
  %v1421 = vpack.c.b16 %v1057, %v1056
  %v1422 = vpack.c.b16 %v1059, %v1058
  %v1423 = vpack.c.b16 %v1061, %v1060
  %v1424 = vpack.c.b16 %v1063, %v1062
  %v1425 = vpack.c.b16 %v1065, %v1064
  %v1426 = vpack.c.b16 %v1067, %v1066
  %v1427 = vpack.c.b16 %v1069, %v1068
  %v1428 = vpack.c.b16 %v1071, %v1070
  %v1429 = vpack.c.b16 %v1073, %v1072
  %v1430 = vpack.c.b16 %v1075, %v1074
  %v1431 = vpack.c.b16 %v1077, %v1076
  %v1432 = vpack.c.b16 %v1079, %v1078
  %v1433 = vpack.c.b16 %v1081, %v1080
  %v1434 = vpack.c.b16 %v1083, %v1082
  %v1435 = vpack.c.b16 %v1085, %v1084
  %v1436 = vpack.c.b16 %v1087, %v1086
  %v1437 = vpack.c.b16 %v1089, %v1088
  %v1438 = vpack.c.b16 %v1091, %v1090
  %v1439 = vpack.c.b16 %v1093, %v1092
  %v1440 = vpack.c.b16 %v1095, %v1094
  %v1441 = vpack.c.b16 %v1097, %v1096
  %v1442 = vpack.c.b16 %v1099, %v1098
  %v1443 = vpack.c.b16 %v1101, %v1100
  %v1444 = vpack.c.b16 %v1103, %v1102
  %v1445 = vpack.c.b16 %v1105, %v1104
  %v1446 = vpack.c.b16 %v1107, %v1106
  %v1447 = vpack.c.b16 %v1109, %v1108
  %v1448 = vpack.c.b16 %v1111, %v1110
  %v1449 = vpack.c.b16 %v1113, %v1112
  %v1450 = vpack.c.b16 %v1115, %v1114
  %v1451 = vpack.c.b16 %v1117, %v1116
  %v1452 = vpack.c.b16 %v1119, %v1118
  %v1453 = vpack.c.b16 %v1121, %v1120
  %v1454 = vpack.c.b16 %v1123, %v1122
  %v1455 = vpack.c.b16 %v1125, %v1124
  %v1456 = vpack.c.b16 %v1127, %v1126
  %v1457 = vpack.c.b16 %v1129, %v1128
  %v1458 = vpack.c.b16 %v1131, %v1130
  %v1459 = vpack.c.b16 %v1133, %v1132
  %v1460 = vpack.c.b16 %v1135, %v1134
  %v1461 = vpack.c.b16 %v1137, %v1136
  %v1462 = vpack.c.b16 %v1139, %v1138
  %v1463 = vpack.c.b16 %v1141, %v1140
  %v1464 = vpack.c.b16 %v1143, %v1142
  %v1465 = vpack.c.b16 %v1145, %v1144
  %v1466 = vpack.c.b16 %v1147, %v1146
  %v1467 = vpack.c.b16 %v1149, %v1148
  %v1468 = vpack.c.b16 %v1151, %v1150
  %v1469 = vpack.c.b16 %v1153, %v1152
  %v1470 = vpack.c.b16 %v1155, %v1154
  %v1471 = vpack.c.b16 %v1157, %v1156
  %v1472 = vpack.c.b16 %v1159, %v1158
  %v1473 = vpack.c.b16 %v1161, %v1160
  %v1474 = vpack.c.b16 %v1163, %v1162
  %v1475 = vpack.c.b16 %v1165, %v1164
  %v1476 = vpack.c.b16 %v1167, %v1166
  %v1477 = vpack.c.b16 %v1169, %v1168
  %v1478 = vpack.c.b16 %v1171, %v1170
  %v1479 = vpack.c.b16 %v1173, %v1172
  %v1480 = vpack.c.b16 %v1175, %v1174
  %v1481 = vpack.c.b16 %v1177, %v1176
  %v1482 = vpack.c.b16 %v1179, %v1178
  %v1483 = vpack.c.b16 %v1181, %v1180
  %v1484 = vpack.c.b16 %v1183, %v1182
  %v1485 = vpack.c.b16 %v1185, %v1184
  %v1486 = vpack.c.b16 %v1187, %v1186
  %v1487 = vpack.c.b16 %v1189, %v1188
  %v1488 = vpack.c.b16 %v1191, %v1190
  %v1489 = vpack.c.b16 %v1193, %v1192
  %v1490 = vpack.c.b16 %v1195, %v1194
  %v1491 = vpack.c.b16 %v1197, %v1196
  %v1492 = vpack.c.b16 %v1199, %v1198
  %v1493 = vpack.c.b16 %v1201, %v1200
  %v1494 = vpack.c.b16 %v1203, %v1202
  %v1495 = vpack.c.b16 %v1205, %v1204
  %v1496 = vpack.c.b16 %v1207, %v1206
  %v1497 = vpack.c.b16 %v1209, %v1208
  %v1498 = vpack.c.b16 %v1211, %v1210
  %v1499 = vpack.c.b16 %v1213, %v1212
  %v1500 = vpack.c.b16 %v1215, %v1214
  %v1501 = vpack.c.b16 %v1217, %v1216
  %v1502 = vpack.c.b16 %v1219, %v1218
  %v1503 = vpack.c.b16 %v1221, %v1220
  %v1504 = vpack.c.b16 %v1223, %v1222
  %v1505 = vpack.c.b16 %v1225, %v1224
  %v1506 = vpack.c.b16 %v1227, %v1226
  %v1507 = vpack.c.b16 %v1229, %v1228
  %v1508 = vpack.c.b16 %v1231, %v1230
  %v1509 = vpack.c.b16 %v1233, %v1232
  %v1510 = vpack.c.b16 %v1235, %v1234
  %v1511 = vpack.c.b16 %v1237, %v1236
  %v1512 = vpack.c.b16 %v1239, %v1238
  %v1513 = vpack.c.b16 %v1241, %v1240
  %v1514 = vpack.c.b16 %v1243, %v1242
  %v1515 = vpack.c.b16 %v1245, %v1244
  %v1516 = vpack.c.b16 %v1247, %v1246
  %v1517 = vpack.c.b16 %v1249, %v1248
  %v1518 = vpack.c.b16 %v1251, %v1250
  %v1519 = vpack.c.b16 %v1253, %v1252
  %v1520 = vpack.c.b16 %v1255, %v1254
  %v1521 = vpack.c.b16 %v1257, %v1256
  %v1522 = vpack.c.b16 %v1259, %v1258
  %v1523 = vpack.c.b16 %v1261, %v1260
  %v1524 = vpack.c.b16 %v1263, %v1262
  %v1525 = vpack.c.b16 %v1265, %v1264
  %v1526 = vpack.c.b16 %v1267, %v1266
  %v1527 = vpack.c.b16 %v1269, %v1268
  %v1528 = vpack.c.b16 %v1271, %v1270
  %v1529 = vpack.c.b16 %v1273, %v1272
  %v1530 = vpack.c.b16 %v1275, %v1274
  %v1531 = vpack.c.b16 %v1277, %v1276
  %v1532 = vpack.c.b16 %v1279, %v1278
  %v1533 = vpack.c.b16 %v1281, %v1280
  %v1534 = vpack.c.b16 %v1283, %v1282
  %v1535 = vpack.c.b16 %v1285, %v1284
  %v1536 = vpack.c.b16 %v1287, %v1286
  %v1537 = vpack.c.b16 %v1289, %v1288
  %v1538 = vpack.c.b16 %v1291, %v1290
  %v1539 = vpack.c.b16 %v1293, %v1292
  %v1540 = vpack.c.b16 %v1295, %v1294
  %v1541 = vpack.c.b16 %v1297, %v1296
  %v1542 = vpack.c.b16 %v1299, %v1298
  %v1543 = vpack.c.b16 %v1301, %v1300
  %v1544 = vpack.c.b16 %v1303, %v1302
  %v1545 = vpack.c.b16 %v1305, %v1304
  %v1546 = vpack.c.b16 %v1307, %v1306
  %v1547 = vpack.c.b16 %v1309, %v1308
  %v1548 = vpack.c.b16 %v1311, %v1310
  %v1549 = vpack.c.b16 %v1313, %v1312
  %v1550 = vpack.c.b16 %v1315, %v1314
  %v1551 = vpack.c.b16 %v1317, %v1316
  %v1552 = vpack.c.b16 %v1319, %v1318
  %v1553 = vpack.c.b16 %v1321, %v1320
  %v1554 = vpack.c.b16 %v1323, %v1322
  %v1555 = vpack.c.b16 %v1325, %v1324
  %v1556 = vpack.c.b16 %v1327, %v1326
  %v1557 = vpack.c.b16 %v1329, %v1328
  %v1558 = vpack.c.b16 %v1331, %v1330
  %v1559 = vpack.c.b16 %v1333, %v1332
  %v1560 = vpack.c.b16 %v1335, %v1334
  %v1561 = vpack.c.b16 %v1337, %v1336
  %v1562 = vpack.c.b16 %v1339, %v1338
  %v1563 = vpack.c.b16 %v1341, %v1340
  %v1564 = vpack.c.b16 %v1343, %v1342
  %v1565 = vpack.c.b16 %v1345, %v1344
  %v1566 = vpack.c.b16 %v1347, %v1346
  %v1567 = vpack.c.b16 %v1349, %v1348
  %v1568 = vpack.c.b16 %v1351, %v1350
  %v1569 = vpack.c.b16 %v1353, %v1352
  %v1570 = vpack.c.b16 %v1355, %v1354
  %v1571 = vpack.c.b16 %v1357, %v1356
  %v1572 = vpack.c.b16 %v1359, %v1358
  %v1573 = vpack.c.b16 %v1361, %v1360
  %v1574 = vpack.c.b16 %v1363, %v1362
  %v1575 = vpack.c.b16 %v1365, %v1364
  %v1576 = vpack.c.b16 %v1367, %v1366
  %v1577 = vpack.c.b16 %v1369, %v1368
  %v1578 = vpack.c.b16 %v1371, %v1370
  %v1579 = vpack.c.b16 %v1373, %v1372
  %v1580 = vpack.c.b16 %v1375, %v1374
  %v1581 = vpack.c.b16 %v1377, %v1376
  %v1582 = vpack.c.b16 %v1379, %v1378
  %v1583 = vpack.c.b16 %v1381, %v1380
  %v1584 = vpack.c.b16 %v1383, %v1382
  %v1585 = vpack.c.b16 %v1385, %v1384
  %1786 = vmatprep.subr.bf16.mxu0 0
  %1787 = vmatpush1.bf16.msra.mxu0 %v1386
  %1788 = vmatprep.subr.bf16.mxu0 0
  %1789 = vmatpush1.bf16.msra.mxu0 %v1387
  %1790 = vmatprep.subr.bf16.mxu0 0
  %1791 = vmatpush1.bf16.msra.mxu0 %v1388
  %1792 = vmatprep.subr.bf16.mxu0 0
  %1793 = vmatpush1.bf16.msra.mxu0 %v1389
  %1794 = vmatprep.subr.bf16.mxu0 0
  %1795 = vmatpush1.bf16.msra.mxu0 %v1390
  %1796 = vmatprep.subr.bf16.mxu0 0
  %1797 = vmatpush1.bf16.msra.mxu0 %v1391
  %1798 = vmatprep.subr.bf16.mxu0 0
  %1799 = vmatpush1.bf16.msra.mxu0 %v1392
  %1800 = vmatprep.subr.bf16.mxu0 0
  %1801 = vmatpush1.bf16.msra.mxu0 %v1393
  %1802 = vmatprep.subr.bf16.mxu0 0
  %1803 = vmatpush1.bf16.msra.mxu0 %v1394
  %1804 = vmatprep.subr.bf16.mxu0 0
  %1805 = vmatpush1.bf16.msra.mxu0 %v1395
  %1806 = vmatprep.subr.bf16.mxu0 0
  %1807 = vmatpush1.bf16.msra.mxu0 %v1396
  %1808 = vmatprep.subr.bf16.mxu0 0
  %1809 = vmatpush1.bf16.msra.mxu0 %v1397
  %1810 = vmatprep.subr.bf16.mxu0 0
  %1811 = vmatpush1.bf16.msra.mxu0 %v1398
  %1812 = vmatprep.subr.bf16.mxu0 0
  %1813 = vmatpush1.bf16.msra.mxu0 %v1399
  %1814 = vmatprep.subr.bf16.mxu0 0
  %1815 = vmatpush1.bf16.msra.mxu0 %v1400
  %1816 = vmatprep.subr.bf16.mxu0 0
  %1817 = vmatpush1.bf16.msra.mxu0 %v1401
  %1818 = vmatprep.mubr.bf16.mxu0 %v537
  %1819 = vmatmul.mubr.bf16.gmra.mrb[0].mxu0 %v536
  %v1820 = vpop.f32.mrb[0].mxu0
  %v1821 = vadd.f32 %v458, %v1820
  %v1822 = vpop.f32.mrb[0].mxu0
  %v1823 = vpop.f32.mrb[0].mxu0
  %v1824 = vadd.f32 %v458, %v1823
  %v1825 = vpop.f32.mrb[0].mxu0
  %1826 = vdwg.mxu0
  %1827 = vmatprep.subr.bf16.mxu0 0
  %1828 = vmatpush1.bf16.msra.mxu0 %v1402
  %1829 = vmatprep.subr.bf16.mxu0 0
  %1830 = vmatpush1.bf16.msra.mxu0 %v1403
  %1831 = vmatprep.subr.bf16.mxu0 0
  %1832 = vmatpush1.bf16.msra.mxu0 %v1404
  %1833 = vmatprep.subr.bf16.mxu0 0
  %1834 = vmatpush1.bf16.msra.mxu0 %v1405
  %1835 = vmatprep.subr.bf16.mxu0 0
  %1836 = vmatpush1.bf16.msra.mxu0 %v1406
  %1837 = vmatprep.subr.bf16.mxu0 0
  %1838 = vmatpush1.bf16.msra.mxu0 %v1407
  %1839 = vmatprep.subr.bf16.mxu0 0
  %1840 = vmatpush1.bf16.msra.mxu0 %v1408
  %1841 = vmatprep.subr.bf16.mxu0 0
  %1842 = vmatpush1.bf16.msra.mxu0 %v1409
  %1843 = vmatprep.subr.bf16.mxu0 0
  %1844 = vmatpush1.bf16.msra.mxu0 %v1410
  %1845 = vmatprep.subr.bf16.mxu0 0
  %1846 = vmatpush1.bf16.msra.mxu0 %v1411
  %1847 = vmatprep.subr.bf16.mxu0 0
  %1848 = vmatpush1.bf16.msra.mxu0 %v1412
  %1849 = vmatprep.subr.bf16.mxu0 0
  %1850 = vmatpush1.bf16.msra.mxu0 %v1413
  %1851 = vmatprep.subr.bf16.mxu0 0
  %1852 = vmatpush1.bf16.msra.mxu0 %v1414
  %1853 = vmatprep.subr.bf16.mxu0 0
  %1854 = vmatpush1.bf16.msra.mxu0 %v1415
  %1855 = vmatprep.subr.bf16.mxu0 0
  %1856 = vmatpush1.bf16.msra.mxu0 %v1416
  %1857 = vmatprep.subr.bf16.mxu0 0
  %1858 = vmatpush1.bf16.msra.mxu0 %v1417
  %1859 = vmatprep.mubr.bf16.mxu0 %v539
  %1860 = vmatmul.mubr.bf16.gmra.mrb[0].mxu0 %v538
  %v1861 = vpop.f32.mrb[0].mxu0
  %v1862 = vadd.f32 %v1821, %v1861
  %v1863 = vpop.f32.mrb[0].mxu0
  %v1864 = vpop.f32.mrb[0].mxu0
  %v1865 = vadd.f32 %v1824, %v1864
  %v1866 = vpop.f32.mrb[0].mxu0
  %1867 = vdwg.mxu0
  %1868 = vmatprep.subr.bf16.mxu0 0
  %1869 = vmatpush1.bf16.msra.mxu0 %v1418
  %1870 = vmatprep.subr.bf16.mxu0 0
  %1871 = vmatpush1.bf16.msra.mxu0 %v1419
  %1872 = vmatprep.subr.bf16.mxu0 0
  %1873 = vmatpush1.bf16.msra.mxu0 %v1420
  %1874 = vmatprep.subr.bf16.mxu0 0
  %1875 = vmatpush1.bf16.msra.mxu0 %v1421
  %1876 = vmatprep.subr.bf16.mxu0 0
  %1877 = vmatpush1.bf16.msra.mxu0 %v1422
  %1878 = vmatprep.subr.bf16.mxu0 0
  %1879 = vmatpush1.bf16.msra.mxu0 %v1423
  %1880 = vmatprep.subr.bf16.mxu0 0
  %1881 = vmatpush1.bf16.msra.mxu0 %v1424
  %1882 = vmatprep.subr.bf16.mxu0 0
  %1883 = vmatpush1.bf16.msra.mxu0 %v1425
  %1884 = vmatprep.subr.bf16.mxu0 0
  %1885 = vmatpush1.bf16.msra.mxu0 %v1426
  %1886 = vmatprep.subr.bf16.mxu0 0
  %1887 = vmatpush1.bf16.msra.mxu0 %v1427
  %1888 = vmatprep.subr.bf16.mxu0 0
  %1889 = vmatpush1.bf16.msra.mxu0 %v1428
  %1890 = vmatprep.subr.bf16.mxu0 0
  %1891 = vmatpush1.bf16.msra.mxu0 %v1429
  %1892 = vmatprep.subr.bf16.mxu0 0
  %1893 = vmatpush1.bf16.msra.mxu0 %v1430
  %1894 = vmatprep.subr.bf16.mxu0 0
  %1895 = vmatpush1.bf16.msra.mxu0 %v1431
  %1896 = vmatprep.subr.bf16.mxu0 0
  %1897 = vmatpush1.bf16.msra.mxu0 %v1432
  %1898 = vmatprep.subr.bf16.mxu0 0
  %1899 = vmatpush1.bf16.msra.mxu0 %v1433
  %1900 = vmatprep.mubr.bf16.mxu0 %v541
  %1901 = vmatmul.mubr.bf16.gmra.mrb[0].mxu0 %v540
  %v1902 = vpop.f32.mrb[0].mxu0
  %v1903 = vadd.f32 %v1862, %v1902
  %v1904 = vpop.f32.mrb[0].mxu0
  %v1905 = vpop.f32.mrb[0].mxu0
  %v1906 = vadd.f32 %v1865, %v1905
  %v1907 = vpop.f32.mrb[0].mxu0
  %1908 = vdwg.mxu0
  %1909 = vmatprep.subr.bf16.mxu0 0
  %1910 = vmatpush1.bf16.msra.mxu0 %v1434
  %1911 = vmatprep.subr.bf16.mxu0 0
  %1912 = vmatpush1.bf16.msra.mxu0 %v1435
  %1913 = vmatprep.subr.bf16.mxu0 0
  %1914 = vmatpush1.bf16.msra.mxu0 %v1436
  %1915 = vmatprep.subr.bf16.mxu0 0
  %1916 = vmatpush1.bf16.msra.mxu0 %v1437
  %1917 = vmatprep.subr.bf16.mxu0 0
  %1918 = vmatpush1.bf16.msra.mxu0 %v1438
  %1919 = vmatprep.subr.bf16.mxu0 0
  %1920 = vmatpush1.bf16.msra.mxu0 %v1439
  %1921 = vmatprep.subr.bf16.mxu0 0
  %1922 = vmatpush1.bf16.msra.mxu0 %v1440
  %1923 = vmatprep.subr.bf16.mxu0 0
  %1924 = vmatpush1.bf16.msra.mxu0 %v1441
  %1925 = vmatprep.subr.bf16.mxu0 0
  %1926 = vmatpush1.bf16.msra.mxu0 %v1442
  %1927 = vmatprep.subr.bf16.mxu0 0
  %1928 = vmatpush1.bf16.msra.mxu0 %v1443
  %1929 = vmatprep.subr.bf16.mxu0 0
  %1930 = vmatpush1.bf16.msra.mxu0 %v1444
  %1931 = vmatprep.subr.bf16.mxu0 0
  %1932 = vmatpush1.bf16.msra.mxu0 %v1445
  %1933 = vmatprep.subr.bf16.mxu0 0
  %1934 = vmatpush1.bf16.msra.mxu0 %v1446
  %1935 = vmatprep.subr.bf16.mxu0 0
  %1936 = vmatpush1.bf16.msra.mxu0 %v1447
  %1937 = vmatprep.subr.bf16.mxu0 0
  %1938 = vmatpush1.bf16.msra.mxu0 %v1448
  %1939 = vmatprep.subr.bf16.mxu0 0
  %1940 = vmatpush1.bf16.msra.mxu0 %v1449
  %1941 = vmatprep.mubr.bf16.mxu0 %v543
  %1942 = vmatmul.mubr.bf16.gmra.mrb[0].mxu0 %v542
  %v1943 = vpop.f32.mrb[0].mxu0
  %v1944 = vadd.f32 %v1903, %v1943
  %v1945 = vpop.f32.mrb[0].mxu0
  %v1946 = vpop.f32.mrb[0].mxu0
  %v1947 = vadd.f32 %v1906, %v1946
  %v1948 = vpop.f32.mrb[0].mxu0
  %1949 = vdwg.mxu0
  %1950 = vmatprep.subr.bf16.mxu0 0
  %1951 = vmatpush1.bf16.msra.mxu0 %v1450
  %1952 = vmatprep.subr.bf16.mxu0 0
  %1953 = vmatpush1.bf16.msra.mxu0 %v1451
  %1954 = vmatprep.subr.bf16.mxu0 0
  %1955 = vmatpush1.bf16.msra.mxu0 %v1452
  %1956 = vmatprep.subr.bf16.mxu0 0
  %1957 = vmatpush1.bf16.msra.mxu0 %v1453
  %1958 = vmatprep.subr.bf16.mxu0 0
  %1959 = vmatpush1.bf16.msra.mxu0 %v1454
  %1960 = vmatprep.subr.bf16.mxu0 0
  %1961 = vmatpush1.bf16.msra.mxu0 %v1455
  %1962 = vmatprep.subr.bf16.mxu0 0
  %1963 = vmatpush1.bf16.msra.mxu0 %v1456
  %1964 = vmatprep.subr.bf16.mxu0 0
  %1965 = vmatpush1.bf16.msra.mxu0 %v1457
  %1966 = vmatprep.subr.bf16.mxu0 0
  %1967 = vmatpush1.bf16.msra.mxu0 %v1458
  %1968 = vmatprep.subr.bf16.mxu0 0
  %1969 = vmatpush1.bf16.msra.mxu0 %v1459
  %1970 = vmatprep.subr.bf16.mxu0 0
  %1971 = vmatpush1.bf16.msra.mxu0 %v1460
  %1972 = vmatprep.subr.bf16.mxu0 0
  %1973 = vmatpush1.bf16.msra.mxu0 %v1461
  %1974 = vmatprep.subr.bf16.mxu0 0
  %1975 = vmatpush1.bf16.msra.mxu0 %v1462
  %1976 = vmatprep.subr.bf16.mxu0 0
  %1977 = vmatpush1.bf16.msra.mxu0 %v1463
  %1978 = vmatprep.subr.bf16.mxu0 0
  %1979 = vmatpush1.bf16.msra.mxu0 %v1464
  %1980 = vmatprep.subr.bf16.mxu0 0
  %1981 = vmatpush1.bf16.msra.mxu0 %v1465
  %1982 = vmatprep.mubr.bf16.mxu0 %v545
  %1983 = vmatmul.mubr.bf16.gmra.mrb[0].mxu0 %v544
  %v1984 = vpop.f32.mrb[0].mxu0
  %v1985 = vadd.f32 %v1944, %v1984
  %v1986 = vpop.f32.mrb[0].mxu0
  %v1987 = vpop.f32.mrb[0].mxu0
  %v1988 = vadd.f32 %v1947, %v1987
  %v1989 = vpop.f32.mrb[0].mxu0
  %1990 = vdwg.mxu0
  %1991 = vmatprep.subr.bf16.mxu0 0
  %1992 = vmatpush1.bf16.msra.mxu0 %v1466
  %1993 = vmatprep.subr.bf16.mxu0 0
  %1994 = vmatpush1.bf16.msra.mxu0 %v1467
  %1995 = vmatprep.subr.bf16.mxu0 0
  %1996 = vmatpush1.bf16.msra.mxu0 %v1468
  %1997 = vmatprep.subr.bf16.mxu0 0
  %1998 = vmatpush1.bf16.msra.mxu0 %v1469
  %1999 = vmatprep.subr.bf16.mxu0 0
  %2000 = vmatpush1.bf16.msra.mxu0 %v1470
  %2001 = vmatprep.subr.bf16.mxu0 0
  %2002 = vmatpush1.bf16.msra.mxu0 %v1471
  %2003 = vmatprep.subr.bf16.mxu0 0
  %2004 = vmatpush1.bf16.msra.mxu0 %v1472
  %2005 = vmatprep.subr.bf16.mxu0 0
  %2006 = vmatpush1.bf16.msra.mxu0 %v1473
  %2007 = vmatprep.subr.bf16.mxu0 0
  %2008 = vmatpush1.bf16.msra.mxu0 %v1474
  %2009 = vmatprep.subr.bf16.mxu0 0
  %2010 = vmatpush1.bf16.msra.mxu0 %v1475
  %2011 = vmatprep.subr.bf16.mxu0 0
  %2012 = vmatpush1.bf16.msra.mxu0 %v1476
  %2013 = vmatprep.subr.bf16.mxu0 0
  %2014 = vmatpush1.bf16.msra.mxu0 %v1477
  %2015 = vmatprep.subr.bf16.mxu0 0
  %2016 = vmatpush1.bf16.msra.mxu0 %v1478
  %2017 = vmatprep.subr.bf16.mxu0 0
  %2018 = vmatpush1.bf16.msra.mxu0 %v1479
  %2019 = vmatprep.subr.bf16.mxu0 0
  %2020 = vmatpush1.bf16.msra.mxu0 %v1480
  %2021 = vmatprep.subr.bf16.mxu0 0
  %2022 = vmatpush1.bf16.msra.mxu0 %v1481
  %2023 = vmatprep.mubr.bf16.mxu0 %v547
  %2024 = vmatmul.mubr.bf16.gmra.mrb[0].mxu0 %v546
  %v2025 = vpop.f32.mrb[0].mxu0
  %v2026 = vadd.f32 %v1985, %v2025
  %v2027 = vpop.f32.mrb[0].mxu0
  %v2028 = vpop.f32.mrb[0].mxu0
  %v2029 = vadd.f32 %v1988, %v2028
  %v2030 = vpop.f32.mrb[0].mxu0
  %2031 = vdwg.mxu0
  %2032 = vmatprep.subr.bf16.mxu0 0
  %2033 = vmatpush1.bf16.msra.mxu0 %v1482
  %2034 = vmatprep.subr.bf16.mxu0 0
  %2035 = vmatpush1.bf16.msra.mxu0 %v1483
  %2036 = vmatprep.subr.bf16.mxu0 0
  %2037 = vmatpush1.bf16.msra.mxu0 %v1484
  %2038 = vmatprep.subr.bf16.mxu0 0
  %2039 = vmatpush1.bf16.msra.mxu0 %v1485
  %2040 = vmatprep.subr.bf16.mxu0 0
  %2041 = vmatpush1.bf16.msra.mxu0 %v1486
  %2042 = vmatprep.subr.bf16.mxu0 0
  %2043 = vmatpush1.bf16.msra.mxu0 %v1487
  %2044 = vmatprep.subr.bf16.mxu0 0
  %2045 = vmatpush1.bf16.msra.mxu0 %v1488
  %2046 = vmatprep.subr.bf16.mxu0 0
  %2047 = vmatpush1.bf16.msra.mxu0 %v1489
  %2048 = vmatprep.subr.bf16.mxu0 0
  %2049 = vmatpush1.bf16.msra.mxu0 %v1490
  %2050 = vmatprep.subr.bf16.mxu0 0
  %2051 = vmatpush1.bf16.msra.mxu0 %v1491
  %2052 = vmatprep.subr.bf16.mxu0 0
  %2053 = vmatpush1.bf16.msra.mxu0 %v1492
  %2054 = vmatprep.subr.bf16.mxu0 0
  %2055 = vmatpush1.bf16.msra.mxu0 %v1493
  %2056 = vmatprep.subr.bf16.mxu0 0
  %2057 = vmatpush1.bf16.msra.mxu0 %v1494
  %2058 = vmatprep.subr.bf16.mxu0 0
  %2059 = vmatpush1.bf16.msra.mxu0 %v1495
  %2060 = vmatprep.subr.bf16.mxu0 0
  %2061 = vmatpush1.bf16.msra.mxu0 %v1496
  %2062 = vmatprep.subr.bf16.mxu0 0
  %2063 = vmatpush1.bf16.msra.mxu0 %v1497
  %2064 = vmatprep.mubr.bf16.mxu0 %v549
  %2065 = vmatmul.mubr.bf16.gmra.mrb[0].mxu0 %v548
  %v2066 = vpop.f32.mrb[0].mxu0
  %v2067 = vadd.f32 %v2026, %v2066
  %v2068 = vpop.f32.mrb[0].mxu0
  %v2069 = vpop.f32.mrb[0].mxu0
  %v2070 = vadd.f32 %v2029, %v2069
  %v2071 = vpop.f32.mrb[0].mxu0
  %2072 = vdwg.mxu0
  %2073 = vmatprep.subr.bf16.mxu0 0
  %2074 = vmatpush1.bf16.msra.mxu0 %v1498
  %2075 = vmatprep.subr.bf16.mxu0 0
  %2076 = vmatpush1.bf16.msra.mxu0 %v1499
  %2077 = vmatprep.subr.bf16.mxu0 0
  %2078 = vmatpush1.bf16.msra.mxu0 %v1500
  %2079 = vmatprep.subr.bf16.mxu0 0
  %2080 = vmatpush1.bf16.msra.mxu0 %v1501
  %2081 = vmatprep.subr.bf16.mxu0 0
  %2082 = vmatpush1.bf16.msra.mxu0 %v1502
  %2083 = vmatprep.subr.bf16.mxu0 0
  %2084 = vmatpush1.bf16.msra.mxu0 %v1503
  %2085 = vmatprep.subr.bf16.mxu0 0
  %2086 = vmatpush1.bf16.msra.mxu0 %v1504
  %2087 = vmatprep.subr.bf16.mxu0 0
  %2088 = vmatpush1.bf16.msra.mxu0 %v1505
  %2089 = vmatprep.subr.bf16.mxu0 0
  %2090 = vmatpush1.bf16.msra.mxu0 %v1506
  %2091 = vmatprep.subr.bf16.mxu0 0
  %2092 = vmatpush1.bf16.msra.mxu0 %v1507
  %2093 = vmatprep.subr.bf16.mxu0 0
  %2094 = vmatpush1.bf16.msra.mxu0 %v1508
  %2095 = vmatprep.subr.bf16.mxu0 0
  %2096 = vmatpush1.bf16.msra.mxu0 %v1509
  %2097 = vmatprep.subr.bf16.mxu0 0
  %2098 = vmatpush1.bf16.msra.mxu0 %v1510
  %2099 = vmatprep.subr.bf16.mxu0 0
  %2100 = vmatpush1.bf16.msra.mxu0 %v1511
  %2101 = vmatprep.subr.bf16.mxu0 0
  %2102 = vmatpush1.bf16.msra.mxu0 %v1512
  %2103 = vmatprep.subr.bf16.mxu0 0
  %2104 = vmatpush1.bf16.msra.mxu0 %v1513
  %2105 = vmatprep.mubr.bf16.mxu0 %v551
  %2106 = vmatmul.mubr.bf16.gmra.mrb[0].mxu0 %v550
  %v2107 = vpop.f32.mrb[0].mxu0
  %v2108 = vadd.f32 %v2067, %v2107
  %v2109 = vpop.f32.mrb[0].mxu0
  %v2110 = vpop.f32.mrb[0].mxu0
  %v2111 = vadd.f32 %v2070, %v2110
  %v2112 = vpop.f32.mrb[0].mxu0
  %2113 = vdwg.mxu0
  %2114 = vmatprep.subr.bf16.mxu0 0
  %2115 = vmatpush1.bf16.msra.mxu0 %v1514
  %2116 = vmatprep.subr.bf16.mxu0 0
  %2117 = vmatpush1.bf16.msra.mxu0 %v1515
  %2118 = vmatprep.subr.bf16.mxu0 0
  %2119 = vmatpush1.bf16.msra.mxu0 %v1516
  %2120 = vmatprep.subr.bf16.mxu0 0
  %2121 = vmatpush1.bf16.msra.mxu0 %v1517
  %2122 = vmatprep.subr.bf16.mxu0 0
  %2123 = vmatpush1.bf16.msra.mxu0 %v1518
  %2124 = vmatprep.subr.bf16.mxu0 0
  %2125 = vmatpush1.bf16.msra.mxu0 %v1519
  %2126 = vmatprep.subr.bf16.mxu0 0
  %2127 = vmatpush1.bf16.msra.mxu0 %v1520
  %2128 = vmatprep.subr.bf16.mxu0 0
  %2129 = vmatpush1.bf16.msra.mxu0 %v1521
  %2130 = vmatprep.subr.bf16.mxu0 0
  %2131 = vmatpush1.bf16.msra.mxu0 %v1522
  %2132 = vmatprep.subr.bf16.mxu0 0
  %2133 = vmatpush1.bf16.msra.mxu0 %v1523
  %2134 = vmatprep.subr.bf16.mxu0 0
  %2135 = vmatpush1.bf16.msra.mxu0 %v1524
  %2136 = vmatprep.subr.bf16.mxu0 0
  %2137 = vmatpush1.bf16.msra.mxu0 %v1525
  %2138 = vmatprep.subr.bf16.mxu0 0
  %2139 = vmatpush1.bf16.msra.mxu0 %v1526
  %2140 = vmatprep.subr.bf16.mxu0 0
  %2141 = vmatpush1.bf16.msra.mxu0 %v1527
  %2142 = vmatprep.subr.bf16.mxu0 0
  %2143 = vmatpush1.bf16.msra.mxu0 %v1528
  %2144 = vmatprep.subr.bf16.mxu0 0
  %2145 = vmatpush1.bf16.msra.mxu0 %v1529
  %2146 = vmatprep.mubr.bf16.mxu0 %v553
  %2147 = vmatmul.mubr.bf16.gmra.mrb[0].mxu0 %v552
  %v2148 = vpop.f32.mrb[0].mxu0
  %v2149 = vadd.f32 %v2108, %v2148
  %v2150 = vpop.f32.mrb[0].mxu0
  %v2151 = vpop.f32.mrb[0].mxu0
  %v2152 = vadd.f32 %v2111, %v2151
  %v2153 = vpop.f32.mrb[0].mxu0
  %2154 = vdwg.mxu0
  %2155 = vmatprep.subr.bf16.mxu0 0
  %2156 = vmatpush1.bf16.msra.mxu0 %v1530
  %2157 = vmatprep.subr.bf16.mxu0 0
  %2158 = vmatpush1.bf16.msra.mxu0 %v1531
  %2159 = vmatprep.subr.bf16.mxu0 0
  %2160 = vmatpush1.bf16.msra.mxu0 %v1532
  %2161 = vmatprep.subr.bf16.mxu0 0
  %2162 = vmatpush1.bf16.msra.mxu0 %v1533
  %2163 = vmatprep.subr.bf16.mxu0 0
  %2164 = vmatpush1.bf16.msra.mxu0 %v1534
  %2165 = vmatprep.subr.bf16.mxu0 0
  %2166 = vmatpush1.bf16.msra.mxu0 %v1535
  %2167 = vmatprep.subr.bf16.mxu0 0
  %2168 = vmatpush1.bf16.msra.mxu0 %v1536
  %2169 = vmatprep.subr.bf16.mxu0 0
  %2170 = vmatpush1.bf16.msra.mxu0 %v1537
  %2171 = vmatprep.subr.bf16.mxu0 0
  %2172 = vmatpush1.bf16.msra.mxu0 %v1538
  %2173 = vmatprep.subr.bf16.mxu0 0
  %2174 = vmatpush1.bf16.msra.mxu0 %v1539
  %2175 = vmatprep.subr.bf16.mxu0 0
  %2176 = vmatpush1.bf16.msra.mxu0 %v1540
  %2177 = vmatprep.subr.bf16.mxu0 0
  %2178 = vmatpush1.bf16.msra.mxu0 %v1541
  %2179 = vmatprep.subr.bf16.mxu0 0
  %2180 = vmatpush1.bf16.msra.mxu0 %v1542
  %2181 = vmatprep.subr.bf16.mxu0 0
  %2182 = vmatpush1.bf16.msra.mxu0 %v1543
  %2183 = vmatprep.subr.bf16.mxu0 0
  %2184 = vmatpush1.bf16.msra.mxu0 %v1544
  %2185 = vmatprep.subr.bf16.mxu0 0
  %2186 = vmatpush1.bf16.msra.mxu0 %v1545
  %2187 = vmatprep.mubr.bf16.mxu0 %v555
  %2188 = vmatmul.mubr.bf16.gmra.mrb[0].mxu0 %v554
  %v2189 = vpop.f32.mrb[0].mxu0
  %v2190 = vadd.f32 %v2149, %v2189
  %v2191 = vpop.f32.mrb[0].mxu0
  %v2192 = vpop.f32.mrb[0].mxu0
  %v2193 = vadd.f32 %v2152, %v2192
  %v2194 = vpop.f32.mrb[0].mxu0
  %2195 = vdwg.mxu0
  %2196 = vmatprep.subr.bf16.mxu0 0
  %2197 = vmatpush1.bf16.msra.mxu0 %v1546
  %2198 = vmatprep.subr.bf16.mxu0 0
  %2199 = vmatpush1.bf16.msra.mxu0 %v1547
  %2200 = vmatprep.subr.bf16.mxu0 0
  %2201 = vmatpush1.bf16.msra.mxu0 %v1548
  %2202 = vmatprep.subr.bf16.mxu0 0
  %2203 = vmatpush1.bf16.msra.mxu0 %v1549
  %2204 = vmatprep.subr.bf16.mxu0 0
  %2205 = vmatpush1.bf16.msra.mxu0 %v1550
  %2206 = vmatprep.subr.bf16.mxu0 0
  %2207 = vmatpush1.bf16.msra.mxu0 %v1551
  %2208 = vmatprep.subr.bf16.mxu0 0
  %2209 = vmatpush1.bf16.msra.mxu0 %v1552
  %2210 = vmatprep.subr.bf16.mxu0 0
  %2211 = vmatpush1.bf16.msra.mxu0 %v1553
  %2212 = vmatprep.subr.bf16.mxu0 0
  %2213 = vmatpush1.bf16.msra.mxu0 %v1554
  %2214 = vmatprep.subr.bf16.mxu0 0
  %2215 = vmatpush1.bf16.msra.mxu0 %v1555
  %2216 = vmatprep.subr.bf16.mxu0 0
  %2217 = vmatpush1.bf16.msra.mxu0 %v1556
  %2218 = vmatprep.subr.bf16.mxu0 0
  %2219 = vmatpush1.bf16.msra.mxu0 %v1557
  %2220 = vmatprep.subr.bf16.mxu0 0
  %2221 = vmatpush1.bf16.msra.mxu0 %v1558
  %2222 = vmatprep.subr.bf16.mxu0 0
  %2223 = vmatpush1.bf16.msra.mxu0 %v1559
  %2224 = vmatprep.subr.bf16.mxu0 0
  %2225 = vmatpush1.bf16.msra.mxu0 %v1560
  %2226 = vmatprep.subr.bf16.mxu0 0
  %2227 = vmatpush1.bf16.msra.mxu0 %v1561
  %2228 = vmatprep.mubr.bf16.mxu0 %v557
  %2229 = vmatmul.mubr.bf16.gmra.mrb[0].mxu0 %v556
  %v2230 = vpop.f32.mrb[0].mxu0
  %v2231 = vadd.f32 %v2190, %v2230
  %v2232 = vpop.f32.mrb[0].mxu0
  %v2233 = vpop.f32.mrb[0].mxu0
  %v2234 = vadd.f32 %v2193, %v2233
  %v2235 = vpop.f32.mrb[0].mxu0
  %2236 = vdwg.mxu0
  %2237 = vmatprep.subr.bf16.mxu0 0
  %2238 = vmatpush1.bf16.msra.mxu0 %v1562
  %2239 = vmatprep.subr.bf16.mxu0 0
  %2240 = vmatpush1.bf16.msra.mxu0 %v1563
  %2241 = vmatprep.subr.bf16.mxu0 0
  %2242 = vmatpush1.bf16.msra.mxu0 %v1564
  %2243 = vmatprep.subr.bf16.mxu0 0
  %2244 = vmatpush1.bf16.msra.mxu0 %v1565
  %2245 = vmatprep.subr.bf16.mxu0 0
  %2246 = vmatpush1.bf16.msra.mxu0 %v1566
  %2247 = vmatprep.subr.bf16.mxu0 0
  %2248 = vmatpush1.bf16.msra.mxu0 %v1567
  %2249 = vmatprep.subr.bf16.mxu0 0
  %2250 = vmatpush1.bf16.msra.mxu0 %v1568
  %2251 = vmatprep.subr.bf16.mxu0 0
  %2252 = vmatpush1.bf16.msra.mxu0 %v1569
  %2253 = vmatprep.subr.bf16.mxu0 0
  %2254 = vmatpush1.bf16.msra.mxu0 %v1570
  %2255 = vmatprep.subr.bf16.mxu0 0
  %2256 = vmatpush1.bf16.msra.mxu0 %v1571
  %2257 = vmatprep.subr.bf16.mxu0 0
  %2258 = vmatpush1.bf16.msra.mxu0 %v1572
  %2259 = vmatprep.subr.bf16.mxu0 0
  %2260 = vmatpush1.bf16.msra.mxu0 %v1573
  %2261 = vmatprep.subr.bf16.mxu0 0
  %2262 = vmatpush1.bf16.msra.mxu0 %v1574
  %2263 = vmatprep.subr.bf16.mxu0 0
  %2264 = vmatpush1.bf16.msra.mxu0 %v1575
  %2265 = vmatprep.subr.bf16.mxu0 0
  %2266 = vmatpush1.bf16.msra.mxu0 %v1576
  %2267 = vmatprep.subr.bf16.mxu0 0
  %2268 = vmatpush1.bf16.msra.mxu0 %v1577
  %2269 = vmatprep.mubr.bf16.mxu0 %v559
  %2270 = vmatmul.mubr.bf16.gmra.mrb[0].mxu0 %v558
  %v2271 = vpop.f32.mrb[0].mxu0
  %v2272 = vadd.f32 %v2231, %v2271
  %v2273 = vpop.f32.mrb[0].mxu0
  %v2274 = vpop.f32.mrb[0].mxu0
  %v2275 = vadd.f32 %v2234, %v2274
  %v2276 = vpop.f32.mrb[0].mxu0
  %2277 = vdwg.mxu0
  %2278 = vmatprep.subr.bf16.mxu0 0
  %2279 = vmatpush1.bf16.msra.mxu0 %v1578
  %2280 = vmatprep.subr.bf16.mxu0 0
  %2281 = vmatpush1.bf16.msra.mxu0 %v1579
  %2282 = vmatprep.subr.bf16.mxu0 0
  %2283 = vmatpush1.bf16.msra.mxu0 %v1580
  %2284 = vmatprep.subr.bf16.mxu0 0
  %2285 = vmatpush1.bf16.msra.mxu0 %v1581
  %2286 = vmatprep.subr.bf16.mxu0 0
  %2287 = vmatpush1.bf16.msra.mxu0 %v1582
  %2288 = vmatprep.subr.bf16.mxu0 0
  %2289 = vmatpush1.bf16.msra.mxu0 %v1583
  %2290 = vmatprep.subr.bf16.mxu0 0
  %2291 = vmatpush1.bf16.msra.mxu0 %v1584
  %2292 = vmatprep.subr.bf16.mxu0 0
  %2293 = vmatpush1.bf16.msra.mxu0 %v1585
  %2294 = vmatprep.subr.bf16.mxu0 0
  %2295 = vmatpush1.bf16.msra.mxu0 0
  %2296 = vmatprep.subr.bf16.mxu0 0
  %2297 = vmatpush1.bf16.msra.mxu0 0
  %2298 = vmatprep.subr.bf16.mxu0 0
  %2299 = vmatpush1.bf16.msra.mxu0 0
  %2300 = vmatprep.subr.bf16.mxu0 0
  %2301 = vmatpush1.bf16.msra.mxu0 0
  %2302 = vmatprep.subr.bf16.mxu0 0
  %2303 = vmatpush1.bf16.msra.mxu0 0
  %2304 = vmatprep.subr.bf16.mxu0 0
  %2305 = vmatpush1.bf16.msra.mxu0 0
  %2306 = vmatprep.subr.bf16.mxu0 0
  %2307 = vmatpush1.bf16.msra.mxu0 0
  %2308 = vmatprep.subr.bf16.mxu0 0
  %2309 = vmatpush1.bf16.msra.mxu0 0
  %2310 = vmatprep.mubr.bf16.mxu0 0
  %2311 = vmatmul.mubr.bf16.gmra.mrb[0].mxu0 %v560
  %v2312 = vpop.f32.mrb[0].mxu0
  %v2313 = vadd.f32 %v2272, %v2312
  %v2314 = vpop.f32.mrb[0].mxu0
  %v2315 = vpop.f32.mrb[0].mxu0
  %v2316 = vadd.f32 %v2275, %v2315
  %v2317 = vpop.f32.mrb[0].mxu0
  %2318 = vdwg.mxu0
  %v2319 = vmax.f32 %v2313, 0.0
  %v2320 = vmax.f32 %v2316, 0.0
  %v2321 = vpack.c.bf16 %v2320, %v2319
  %v2322 = vld [vmem:[%s3] sm:$0xf]
  %v2323 = vld [vmem:[%s3 + $0x4] sm:$0xf]
  %v2324 = vld [vmem:[%s3 + $0x8] sm:$0xf]
  %v2325 = vld [vmem:[%s3 + $0xc] sm:$0xf]
  %v2326 = vld [vmem:[%s3 + $0x10] sm:$0xf]
  %v2327 = vld [vmem:[%s3 + $0x14] sm:$0xf]
  %v2328 = vld [vmem:[%s3 + $0x18] sm:$0xf]
  %v2329 = vld [vmem:[%s3 + $0x1c] sm:$0xf]
  %v2330 = vld [vmem:[%s3 + $0x20] sm:$0xf]
  %v2331 = vld [vmem:[%s3 + $0x24] sm:$0xf]
  %v2332 = vld [vmem:[%s3 + $0x28] sm:$0xf]
  %v2333 = vld [vmem:[%s3 + $0x2c] sm:$0xf]
  %v2334 = vld [vmem:[%s3 + $0x30] sm:$0xf]
  %v2335 = vld [vmem:[%s3 + $0x34] sm:$0xf]
  %v2336 = vld [vmem:[%s3 + $0x38] sm:$0xf]
  %v2337 = vld [vmem:[%s3 + $0x3c] sm:$0xf]
  %v2338 = vld [vmem:[%s4] sm:$0x1]
  %v2340 = vlaneseq
  %v2341 = vshrl.u32 %v2340, 7
  %v2342 = vsub.s32 0, %v2341
  %v2343 = vrot.slane %v2338, %v2342
  %v2361 = vunpack.c.l.b16 %v2322
  %v2362 = vunpack.c.l.b16 %v2323
  %v2363 = vunpack.c.l.b16 %v2324
  %v2364 = vunpack.c.l.b16 %v2325
  %v2365 = vunpack.c.l.b16 %v2326
  %v2366 = vunpack.c.l.b16 %v2327
  %v2367 = vunpack.c.l.b16 %v2328
  %v2368 = vunpack.c.l.b16 %v2329
  %v2369 = vunpack.c.l.b16 %v2330
  %v2370 = vunpack.c.l.b16 %v2331
  %v2371 = vunpack.c.l.b16 %v2332
  %v2372 = vunpack.c.l.b16 %v2333
  %v2373 = vunpack.c.l.b16 %v2334
  %v2374 = vunpack.c.l.b16 %v2335
  %v2375 = vunpack.c.l.b16 %v2336
  %v2376 = vunpack.c.l.b16 %v2337
  %v2377 = vpack.c.b16 %v2362, %v2361
  %v2378 = vpack.c.b16 %v2364, %v2363
  %v2379 = vpack.c.b16 %v2366, %v2365
  %v2380 = vpack.c.b16 %v2368, %v2367
  %v2381 = vpack.c.b16 %v2370, %v2369
  %v2382 = vpack.c.b16 %v2372, %v2371
  %v2383 = vpack.c.b16 %v2374, %v2373
  %v2384 = vpack.c.b16 %v2376, %v2375
  %2393 = vmatprep.subr.bf16.mxu0 0
  %2394 = vmatpush1.bf16.msra.mxu0 %v2377
  %2395 = vmatprep.subr.bf16.mxu0 0
  %2396 = vmatpush1.bf16.msra.mxu0 %v2378
  %2397 = vmatprep.subr.bf16.mxu0 0
  %2398 = vmatpush1.bf16.msra.mxu0 %v2379
  %2399 = vmatprep.subr.bf16.mxu0 0
  %2400 = vmatpush1.bf16.msra.mxu0 %v2380
  %2401 = vmatprep.subr.bf16.mxu0 0
  %2402 = vmatpush1.bf16.msra.mxu0 %v2381
  %2403 = vmatprep.subr.bf16.mxu0 0
  %2404 = vmatpush1.bf16.msra.mxu0 %v2382
  %2405 = vmatprep.subr.bf16.mxu0 0
  %2406 = vmatpush1.bf16.msra.mxu0 %v2383
  %2407 = vmatprep.subr.bf16.mxu0 0
  %2408 = vmatpush1.bf16.msra.mxu0 %v2384
  %2409 = vmatprep.subr.bf16.mxu0 0
  %2410 = vmatpush1.bf16.msra.mxu0 0
  %2411 = vmatprep.subr.bf16.mxu0 0
  %2412 = vmatpush1.bf16.msra.mxu0 0
  %2413 = vmatprep.subr.bf16.mxu0 0
  %2414 = vmatpush1.bf16.msra.mxu0 0
  %2415 = vmatprep.subr.bf16.mxu0 0
  %2416 = vmatpush1.bf16.msra.mxu0 0
  %2417 = vmatprep.subr.bf16.mxu0 0
  %2418 = vmatpush1.bf16.msra.mxu0 0
  %2419 = vmatprep.subr.bf16.mxu0 0
  %2420 = vmatpush1.bf16.msra.mxu0 0
  %2421 = vmatprep.subr.bf16.mxu0 0
  %2422 = vmatpush1.bf16.msra.mxu0 0
  %2423 = vmatprep.subr.bf16.mxu0 0
  %2424 = vmatpush1.bf16.msra.mxu0 0
  %2425 = vmatprep.mubr.bf16.mxu0 0
  %2426 = vmatmul.mubr.bf16.gmra.mrb[0].mxu0 %v2321
  %v2427 = vpop.f32.mrb[0].mxu0
  %v2428 = vadd.f32 %v2343, %v2427
  %v2429 = vpop.f32.mrb[0].mxu0
  %v2430 = vpop.f32.mrb[0].mxu0
  %v2431 = vadd.f32 %v2343, %v2430
  %v2432 = vpop.f32.mrb[0].mxu0
  %2433 = vdwg.mxu0
  %v2434 = vmax.f32 %v2428, 0.0
  %v2435 = vmax.f32 %v2431, 0.0
  %v2436 = vpack.c.bf16 %v2435, %v2434
  %v2437 = vld [vmem:[%s5] sm:$0xf]
  %v2438 = vld [vmem:[%s5 + $0x4] sm:$0xf]
  %v2439 = vld [vmem:[%s5 + $0x8] sm:$0xf]
  %v2440 = vld [vmem:[%s5 + $0xc] sm:$0xf]
  %v2441 = vld [vmem:[%s5 + $0x10] sm:$0xf]
  %v2442 = vld [vmem:[%s5 + $0x14] sm:$0xf]
  %v2443 = vld [vmem:[%s5 + $0x18] sm:$0xf]
  %v2444 = vld [vmem:[%s5 + $0x1c] sm:$0xf]
  %v2445 = vld [vmem:[%s5 + $0x20] sm:$0xf]
  %v2446 = vld [vmem:[%s5 + $0x24] sm:$0xf]
  %v2447 = vld [vmem:[%s5 + $0x28] sm:$0xf]
  %v2448 = vld [vmem:[%s5 + $0x2c] sm:$0xf]
  %v2449 = vld [vmem:[%s5 + $0x30] sm:$0xf]
  %v2450 = vld [vmem:[%s5 + $0x34] sm:$0xf]
  %v2451 = vld [vmem:[%s5 + $0x38] sm:$0xf]
  %v2452 = vld [vmem:[%s5 + $0x3c] sm:$0xf]
  %v2453 = vld [vmem:[%s6] sm:$0x1]
  %v2455 = vlaneseq
  %v2456 = vshrl.u32 %v2455, 7
  %v2457 = vsub.s32 0, %v2456
  %v2458 = vrot.slane %v2453, %v2457
  %v2476 = vunpack.c.l.b16 %v2437
  %v2477 = vunpack.c.l.b16 %v2438
  %v2478 = vunpack.c.l.b16 %v2439
  %v2479 = vunpack.c.l.b16 %v2440
  %v2480 = vunpack.c.l.b16 %v2441
  %v2481 = vunpack.c.l.b16 %v2442
  %v2482 = vunpack.c.l.b16 %v2443
  %v2483 = vunpack.c.l.b16 %v2444
  %v2484 = vunpack.c.l.b16 %v2445
  %v2485 = vunpack.c.l.b16 %v2446
  %v2486 = vunpack.c.l.b16 %v2447
  %v2487 = vunpack.c.l.b16 %v2448
  %v2488 = vunpack.c.l.b16 %v2449
  %v2489 = vunpack.c.l.b16 %v2450
  %v2490 = vunpack.c.l.b16 %v2451
  %v2491 = vunpack.c.l.b16 %v2452
  %v2492 = vpack.c.b16 %v2477, %v2476
  %v2493 = vpack.c.b16 %v2479, %v2478
  %v2494 = vpack.c.b16 %v2481, %v2480
  %v2495 = vpack.c.b16 %v2483, %v2482
  %v2496 = vpack.c.b16 %v2485, %v2484
  %v2497 = vpack.c.b16 %v2487, %v2486
  %v2498 = vpack.c.b16 %v2489, %v2488
  %v2499 = vpack.c.b16 %v2491, %v2490
  %2508 = vmatprep.subr.bf16.mxu0 0
  %2509 = vmatpush1.bf16.msra.mxu0 %v2492
  %2510 = vmatprep.subr.bf16.mxu0 0
  %2511 = vmatpush1.bf16.msra.mxu0 %v2493
  %2512 = vmatprep.subr.bf16.mxu0 0
  %2513 = vmatpush1.bf16.msra.mxu0 %v2494
  %2514 = vmatprep.subr.bf16.mxu0 0
  %2515 = vmatpush1.bf16.msra.mxu0 %v2495
  %2516 = vmatprep.subr.bf16.mxu0 0
  %2517 = vmatpush1.bf16.msra.mxu0 %v2496
  %2518 = vmatprep.subr.bf16.mxu0 0
  %2519 = vmatpush1.bf16.msra.mxu0 %v2497
  %2520 = vmatprep.subr.bf16.mxu0 0
  %2521 = vmatpush1.bf16.msra.mxu0 %v2498
  %2522 = vmatprep.subr.bf16.mxu0 0
  %2523 = vmatpush1.bf16.msra.mxu0 %v2499
  %2524 = vmatprep.subr.bf16.mxu0 0
  %2525 = vmatpush1.bf16.msra.mxu0 0
  %2526 = vmatprep.subr.bf16.mxu0 0
  %2527 = vmatpush1.bf16.msra.mxu0 0
  %2528 = vmatprep.subr.bf16.mxu0 0
  %2529 = vmatpush1.bf16.msra.mxu0 0
  %2530 = vmatprep.subr.bf16.mxu0 0
  %2531 = vmatpush1.bf16.msra.mxu0 0
  %2532 = vmatprep.subr.bf16.mxu0 0
  %2533 = vmatpush1.bf16.msra.mxu0 0
  %2534 = vmatprep.subr.bf16.mxu0 0
  %2535 = vmatpush1.bf16.msra.mxu0 0
  %2536 = vmatprep.subr.bf16.mxu0 0
  %2537 = vmatpush1.bf16.msra.mxu0 0
  %2538 = vmatprep.subr.bf16.mxu0 0
  %2539 = vmatpush1.bf16.msra.mxu0 0
  %2540 = vmatprep.mubr.bf16.mxu0 0
  %2541 = vmatmul.mubr.bf16.gmra.mrb[0].mxu0 %v2436
  %v2542 = vpop.f32.mrb[0].mxu0
  %v2543 = vadd.f32 %v2458, %v2542
  %v2544 = vpop.f32.mrb[0].mxu0
  %v2545 = vpop.f32.mrb[0].mxu0
  %v2546 = vadd.f32 %v2458, %v2545
  %v2547 = vpop.f32.mrb[0].mxu0
  %2548 = vdwg.mxu0
  %2549 = vst [vmem:[%s7] sm:$0xff] %v2543
  %2550 = vst [vmem:[%s7 + $0x8] sm:$0xff] %v2546
  // Predicated region
  $region30: #{net_forward.5} parent=0 // pred_check
    _
  $region31: #{net_forward.5} parent=0 // pred_check_branch
    %2552 = sbr.rel (0) target = $region33
  $region32: #{net_forward.5} parent=0 // pred_region
    _
  $region33: #{net_forward.5} parent=0 // pred_fallthru
    _
  // Predicated region
  $region34: #{net_forward.5} parent=0 // pred_check
    _
  $region35: #{net_forward.5} parent=0 // pred_check_branch
    %2554 = sbr.rel (0) target = $region37
  $region36: #{net_forward.5} parent=0 // pred_region
    _
  $region37: #{net_forward.5} parent=0 // pred_fallthru
    _

</llo_original>
